<compile_context>
chip_gen: v6e
topology: v6e:2x2x1
jax: 0.10.0
libtpu: 0.0.40
codegen_flags: <defaults>
</compile_context>

<pallas_src>
import jax
import jax.numpy as jnp
import numpy as np
from jax.experimental import pallas as pl
from jax.experimental.pallas import tpu as pltpu


def _largest_divisor_chunk(T, candidates):
    for cand in candidates:
        if T % cand == 0:
            return cand
    return T


def _pick_lstm_time_chunk(T):
    # 16-32 unrolled steps amortize the ~600-cycle per-grid-step overhead while
    # keeping the unrolled recurrence a reasonable code size.  Must be a
    # multiple of 8 (sublane tiling) or the full time extent.
    return _largest_divisor_chunk(T, (32, 16, 8))


def _pick_attn_time_chunk(T, L, H, budget_bytes=8 << 20):
    # Large time tiles fill the MXU rows (128 on v5e, 256 on v6e/v7x) and
    # amortize grid-step overhead.  Bound the [tt, L, H] tanh intermediate so
    # the same tile also fits v7x's 64 MiB VMEM.
    # TODO(synk): at production L the [tt, L, H] intermediate should be
    # L-chunked so tt can stay at 128/256 regardless of L.
    for cand in (256, 128, 64, 32, 16, 8):
        if T % cand == 0 and cand * L * H * 4 <= budget_bytes:
            return cand
    return T


def _pick_batch_blocks(B):
    # v7x megacore: split the batch across the two TensorCores.  The win only
    # materializes when the per-step recurrence is row-bound, so require at
    # least 8 rows per core (throughput heuristic -- Bb is the leading block
    # dim, so this is NOT a sublane constraint).
    if B % 2 == 0 and (B // 2) >= 8:
        return 2
    return 1


# ----------------------------------------------------------------------------
# Kernel 1: single-layer LSTM (batch_first, zero init state).
# grid = (batch_blocks, T // Tc); h/c state lives in VMEM scratch across the
# time-chunk axis, so that axis MUST stay sequential / "arbitrary".
# ----------------------------------------------------------------------------
def lstm_kernel(x_ref, wih_ref, whh_ref, b_ref, out_ref, hN_ref, cN_ref,
                h_sc, c_sc):
    tchunk = pl.program_id(1)
    Bb, tc, I = x_ref.shape
    H = h_sc.shape[-1]

    @pl.when(tchunk == 0)
    def _():
        h_sc[...] = jnp.zeros_like(h_sc)
        c_sc[...] = jnp.zeros_like(c_sc)

    # Input half of the gate pre-activation for the whole chunk as one 2-D
    # matmul (off the serial h->h critical path); bias folds in here.
    x2d = x_ref[...].reshape(Bb * tc, I)                                   # [Bb*tc, I]
    xg = jnp.dot(x2d, wih_ref[...], preferred_element_type=jnp.float32)
    xg = (xg + b_ref[...]).reshape(Bb, tc, 4 * H)                          # [Bb, tc, 4H]

    whh = whh_ref[...]                                                     # [H, 4H]
    # TODO(synk): on v5e hold whh resident in the MXU weight registers across
    # the unrolled steps (pltpu.matmul_push_rhs / matmul_acc_lhs).

    # Carry h/c as loop-local values; the scratch is written once per chunk.
    h = h_sc[...]
    c = c_sc[...]
    for t in range(tc):                      # fully unrolled static time loop
        gates = xg[:, t, :] + jnp.dot(h, whh, preferred_element_type=jnp.float32)
        i_g = jax.nn.sigmoid(gates[:, 0 * H:1 * H])
        f_g = jax.nn.sigmoid(gates[:, 1 * H:2 * H])
        g_g = jnp.tanh(gates[:, 2 * H:3 * H])
        o_g = jax.nn.sigmoid(gates[:, 3 * H:4 * H])
        c = f_g * c + i_g * g_g
        h = o_g * jnp.tanh(c)
        out_ref[:, t, :] = h                 # off the recurrent chain; [B,T,H] layout
    h_sc[...] = h
    c_sc[...] = c

    # Only the last time chunk writes the final hidden/cell state.
    @pl.when(tchunk == pl.num_programs(1) - 1)
    def _():
        hN_ref[...] = h
        cN_ref[...] = c


def run_lstm(x_bti, wih_t, whh_t, bias, *, time_chunk=None, batch_blocks=None):
    B, T, I = x_bti.shape
    H4 = wih_t.shape[1]
    H = H4 // 4
    tc = time_chunk or _pick_lstm_time_chunk(T)
    nb = batch_blocks or _pick_batch_blocks(B)
    assert T % tc == 0 and B % nb == 0
    Bb = B // nb

    # Explicit VMEM budget: double-buffered in/out tiles + resident weights.
    # TODO(synk): constant-index weight BlockSpecs could be single-buffered
    # (pipeline_mode=pl.Buffered(1)) at production sizes to halve their VMEM.
    fp = 4 * (2 * Bb * tc * I                      # input tiles
              + 2 * (I * H4 + H * H4 + H4)         # weights + bias (dbl-buffered)
              + 2 * (Bb * tc * H + 2 * Bb * H)     # outputs
              + 2 * Bb * H                         # h/c scratch
              + Bb * tc * H4)                      # xg intermediate
    vmem_limit = int(min(max(2 * fp + (2 << 20), 16 << 20), 48 << 20))

    grid_spec = pltpu.PrefetchScalarGridSpec(
        num_scalar_prefetch=0,
        grid=(nb, T // tc),
        in_specs=[
            pl.BlockSpec((Bb, tc, I), lambda b, t: (b, t, 0)),
            pl.BlockSpec((I, H4), lambda b, t: (0, 0)),    # W_ih^T
            pl.BlockSpec((H, H4), lambda b, t: (0, 0)),    # W_hh^T
            pl.BlockSpec((1, H4), lambda b, t: (0, 0)),    # fused bias
        ],
        out_specs=[
            pl.BlockSpec((Bb, tc, H), lambda b, t: (b, t, 0)),   # [B, T, H]
            pl.BlockSpec((Bb, H), lambda b, t: (b, 0)),
            pl.BlockSpec((Bb, H), lambda b, t: (b, 0)),
        ],
        scratch_shapes=[pltpu.VMEM((Bb, H), jnp.float32),
                        pltpu.VMEM((Bb, H), jnp.float32)],
    )
    return pl.pallas_call(
        lstm_kernel,
        out_shape=(
            jax.ShapeDtypeStruct((B, T, H), jnp.float32),
            jax.ShapeDtypeStruct((B, H), jnp.float32),
            jax.ShapeDtypeStruct((B, H), jnp.float32),
        ),
        grid_spec=grid_spec,
        compiler_params=pltpu.CompilerParams(
            # Time axis MUST stay "arbitrary": h_sc/c_sc carry state across it.
            dimension_semantics=("parallel", "arbitrary"),
            vmem_limit_bytes=vmem_limit),
    )(x_bti, wih_t, whh_t, bias)


# ----------------------------------------------------------------------------
# Kernel 2: 'cat' attention + vocab projection + pointer scatter + mixture.
# grid = (B, T // Tt); each program owns one (Tt, ...) slab of one batch row.
# The one-hot scatter matrix is batch-row state carried across the time axis.
# ----------------------------------------------------------------------------
# TODO(synk): kernels 1 and 2 could be fused (attention epilogue per LSTM time
# chunk) to avoid the [B,T,H] HBM round trip between them.
def attn_ptr_kernel(out_ref, ctx_ref, words_ref,
                    wa_ref, ba_ref, wd_ref, bd_ref, wq_ref, bq_ref, wp_ref, bp_ref,
                    pred_ref, ptr_sm_ref, attn_ref, onehot_sc):
    out = out_ref[0]                   # [Tt, H] rnn outputs
    ctx = ctx_ref[0]                   # [L, A]  sentinel + context
    V = wp_ref.shape[1]
    Aw = words_ref.shape[1]

    # One-hot pointer-scatter matrix depends only on the batch row: build it
    # once per row (first time chunk) and reuse it for all T//Tt chunks.
    @pl.when(pl.program_id(1) == 0)
    def _():
        wcol = words_ref[0]                                             # [Aw, 1] int32
        v_iota = jax.lax.broadcasted_iota(jnp.int32, (Aw, V), 1)
        onehot_sc[...] = (wcol == v_iota).astype(jnp.bfloat16)          # [Aw, V]

    # cat-attention scores: query_w(tanh(attn_w(ctx) + dec_w(out)))
    ma = jnp.dot(ctx, wa_ref[...], preferred_element_type=jnp.float32) + ba_ref[...]   # [L, H]
    mo = jnp.dot(out, wd_ref[...], preferred_element_type=jnp.float32) + bd_ref[...]   # [Tt, H]
    fc1 = jnp.tanh(mo[:, None, :] + ma[None, :, :])                                    # [Tt, L, H]
    # TODO(synk): at production L/H, chunk the L axis and push this reduction
    # to the MXU ([Tt*L, H] @ [H, 1]); the XLU reduce is trivial at these sizes.
    scores = jnp.sum(fc1 * wq_ref[...], axis=-1) + bq_ref[...]                         # [Tt, L]

    scores = scores - jnp.max(scores, axis=-1, keepdims=True)
    e = jnp.exp(scores)
    attn = e / jnp.sum(e, axis=-1, keepdims=True)          # exact softmax (feeds log-probs)

    g = attn[:, 0:1]                   # [Tt, 1]  sentinel weight
    ptr_attn = attn[:, 1:]             # [Tt, Aw]

    # rnn softmax over the vocabulary (weight pre-cast to bf16 at the wrapper,
    # f32 accumulation / softmax).
    logits = jnp.dot(out.astype(jnp.bfloat16), wp_ref[...],
                     preferred_element_type=jnp.float32) + bp_ref[...]                 # [Tt, V]
    logits = logits - jnp.max(logits, axis=-1, keepdims=True)
    er = jnp.exp(logits)
    rnn_sm = er / jnp.sum(er, axis=-1, keepdims=True)                                  # [Tt, V]

    # pointer scatter (duplicates sum) via one-hot matmul on the MXU
    ptr_sm = jnp.dot(ptr_attn.astype(jnp.bfloat16), onehot_sc[...],
                     preferred_element_type=jnp.float32)                               # [Tt, V]

    mixture = rnn_sm * g + ptr_sm
    pred_ref[0] = jnp.log(jnp.maximum(mixture, 1e-8))
    ptr_sm_ref[0] = ptr_sm
    attn_ref[0] = attn                 # single lane-dense output; g/ptr_attn sliced outside
    # TODO(synk): at production sizes pad V (and the [.,.,L] slab) to multiples
    # of 128 in the wrapper so the stores are unmasked vst.


def run_attn_ptr(out_bth, ctx, words3, p, *, time_chunk=None):
    B, T, H = out_bth.shape
    L, A = ctx.shape[1], ctx.shape[2]
    Aw = words3.shape[1]
    V = p["wp_t"].shape[1]
    tt = time_chunk or _pick_attn_time_chunk(T, L, H)
    assert T % tt == 0

    # Cast the vocab projection weight once at the boundary (halves its DMA
    # bytes / VMEM footprint; MXU is bf16-native, accumulation stays f32).
    wp_bf = p["wp_t"].astype(jnp.bfloat16)

    fp = (4 * (2 * tt * H + 2 * L * A + 2 * Aw            # input tiles
               + A * H + H * H + H + 1 + H + V)           # f32 weights/biases
          + 2 * (2 * H * V + Aw * V)                      # bf16 wp + one-hot scratch
          + 4 * 2 * (2 * tt * V + tt * L)                 # output tiles (dbl-buffered)
          + 4 * tt * L * H)                               # fc1 intermediate
    vmem_limit = int(min(max(2 * fp + (2 << 20), 16 << 20), 48 << 20))

    grid_spec = pltpu.PrefetchScalarGridSpec(
        num_scalar_prefetch=0,
        grid=(B, T // tt),
        in_specs=[
            pl.BlockSpec((1, tt, H), lambda b, t: (b, t, 0)),
            pl.BlockSpec((1, L, A), lambda b, t: (b, 0, 0)),
            pl.BlockSpec((1, Aw, 1), lambda b, t: (b, 0, 0)),
            pl.BlockSpec((A, H), lambda b, t: (0, 0)),   # attn_w.T
            pl.BlockSpec((1, H), lambda b, t: (0, 0)),   # attn_w bias
            pl.BlockSpec((H, H), lambda b, t: (0, 0)),   # dec_w.T
            pl.BlockSpec((1, H), lambda b, t: (0, 0)),   # dec_w bias
            pl.BlockSpec((1, H), lambda b, t: (0, 0)),   # query_w weight [1,H]
            pl.BlockSpec((1, 1), lambda b, t: (0, 0)),   # query_w bias
            pl.BlockSpec((H, V), lambda b, t: (0, 0)),   # project.T (bf16)
            pl.BlockSpec((1, V), lambda b, t: (0, 0)),   # project bias
        ],
        out_specs=[
            pl.BlockSpec((1, tt, V), lambda b, t: (b, t, 0)),
            pl.BlockSpec((1, tt, V), lambda b, t: (b, t, 0)),
            pl.BlockSpec((1, tt, L), lambda b, t: (b, t, 0)),
        ],
        scratch_shapes=[pltpu.VMEM((Aw, V), jnp.bfloat16)],
    )
    return pl.pallas_call(
        attn_ptr_kernel,
        out_shape=(
            jax.ShapeDtypeStruct((B, T, V), jnp.float32),
            jax.ShapeDtypeStruct((B, T, V), jnp.float32),
            jax.ShapeDtypeStruct((B, T, L), jnp.float32),
        ),
        grid_spec=grid_spec,
        compiler_params=pltpu.CompilerParams(
            # Time axis "arbitrary": the one-hot scratch is carried across it.
            dimension_semantics=("parallel", "arbitrary"),
            vmem_limit_bytes=vmem_limit),
    )(out_bth, ctx, words3, p["wa_t"], p["ba"], p["wd_t"], p["bd"],
      p["wq"], p["bq"], wp_bf, p["bp"])


# ----------------------------------------------------------------------------
# DecoderPointerGen.forward (mode=TEACH_FORCE, init_state=None, ctx_embed=None)
# ----------------------------------------------------------------------------
def decoder_pointer_gen_forward(params, attn_context, attn_words, inputs):
    B, T = inputs.shape
    A = attn_context.shape[-1]
    embedded = params["embedding"][inputs]                              # [B, T, I]
    sentinel = jnp.broadcast_to(params["sentinel"], (B, 1, A))
    ctx = jnp.concatenate([sentinel, attn_context.astype(jnp.float32)], axis=1)  # [B, L, A]

    out_bth, hN, cN = run_lstm(embedded, params["wih_t"], params["whh_t"],
                               params["lstm_bias"])                     # [B, T, H]

    words3 = attn_words.astype(jnp.int32)[:, :, None]                   # [B, Aw, 1]
    pred, ptr_sm, attn_all = run_attn_ptr(out_bth, ctx, words3, params)
    g = attn_all[:, :, 0]                                               # [B, T]
    ptr_attn = attn_all[:, :, 1:]                                       # [B, T, Aw]

    ret_dict = {
        "attention_score": ptr_attn,          # [B, T, Aw]
        "sequence": [],
        "length": np.array([params["max_length"]] * B),
        "g": g,                               # [B, T]
        "ptr_softmax": ptr_sm,                # [B, T, V]
        "ptr_context": attn_words,
    }
    decoder_hidden = (hN[None, :, :], cN[None, :, :])                   # ([1,B,H], [1,B,H])
    return pred, decoder_hidden, ret_dict


# ----------------------------------------------------------------------------
# Pure-JAX reference mirroring the PyTorch code (for validation).
# ----------------------------------------------------------------------------
def reference_forward(params, attn_context, attn_words, inputs):
    B, T = inputs.shape
    A = attn_context.shape[-1]
    H = params["whh_t"].shape[0]
    V = params["wp_t"].shape[1]
    emb = params["embedding"][inputs]
    sentinel = jnp.broadcast_to(params["sentinel"], (B, 1, A))
    ctx = jnp.concatenate([sentinel, attn_context], axis=1)

    def step(carry, x_t):
        h, c = carry
        gates = x_t @ params["wih_t"] + h @ params["whh_t"] + params["lstm_bias"]
        i_g = jax.nn.sigmoid(gates[:, :H])
        f_g = jax.nn.sigmoid(gates[:, H:2 * H])
        g_g = jnp.tanh(gates[:, 2 * H:3 * H])
        o_g = jax.nn.sigmoid(gates[:, 3 * H:])
        c_new = f_g * c + i_g * g_g
        h_new = o_g * jnp.tanh(c_new)
        return (h_new, c_new), h_new

    h0 = jnp.zeros((B, H), jnp.float32)
    c0 = jnp.zeros((B, H), jnp.float32)
    (hN, cN), outs = jax.lax.scan(step, (h0, c0), jnp.transpose(emb, (1, 0, 2)))
    out = jnp.transpose(outs, (1, 0, 2))                                # [B, T, H]

    ma = ctx @ params["wa_t"] + params["ba"]                            # [B, L, H]
    mo = out @ params["wd_t"] + params["bd"]                            # [B, T, H]
    fc1 = jnp.tanh(mo[:, :, None, :] + ma[:, None, :, :])               # [B, T, L, H]
    scores = jnp.sum(fc1 * params["wq"], axis=-1) + params["bq"][0, 0]  # [B, T, L]
    attn = jax.nn.softmax(scores, axis=-1)
    g = attn[..., 0]
    ptr_attn = attn[..., 1:]
    rnn_sm = jax.nn.softmax(out @ params["wp_t"] + params["bp"], axis=-1)
    onehot = jax.nn.one_hot(attn_words, V, dtype=jnp.float32)
    ptr_sm = jnp.einsum("bta,bav->btv", ptr_attn, onehot)
    mixture = rnn_sm * g[..., None] + ptr_sm
    pred = jnp.log(jnp.clip(mixture, 1e-8))
    return pred, (hN, cN), ptr_sm, ptr_attn, g


if __name__ == "__main__":
    # Small shapes: vocab=64, seq=16, input=16, hidden=32, attn_size=24, ctx_len=8
    B, T, I, H, A, Lc, V = 2, 16, 16, 32, 24, 8, 64
    key = jax.random.PRNGKey(0)
    ks = jax.random.split(key, 20)
    s = 0.1

    b_ih = jax.random.normal(ks[3], (4 * H,), jnp.float32) * s
    b_hh = jax.random.normal(ks[4], (4 * H,), jnp.float32) * s
    b_ih = b_ih.at[H:2 * H].set(1.0)   # forget-gate bias fill (PyTorch BaseRNN init)
    b_hh = b_hh.at[H:2 * H].set(1.0)

    params = {
        "embedding": jax.random.normal(ks[0], (V, I), jnp.float32) * s,
        "wih_t": jax.random.normal(ks[1], (I, 4 * H), jnp.float32) * s,
        "whh_t": jax.random.normal(ks[2], (H, 4 * H), jnp.float32) * s,
        "lstm_bias": (b_ih + b_hh)[None, :],
        "wa_t": jax.random.normal(ks[5], (A, H), jnp.float32) * s,   # Attention.attn_w
        "ba": jax.random.normal(ks[6], (1, H), jnp.float32) * s,
        "wd_t": jax.random.normal(ks[7], (H, H), jnp.float32) * s,   # Attention.dec_w
        "bd": jax.random.normal(ks[8], (1, H), jnp.float32) * s,
        "wq": jax.random.normal(ks[9], (1, H), jnp.float32) * s,     # Attention.query_w
        "bq": jax.random.normal(ks[10], (1, 1), jnp.float32) * s,
        "wp_t": jax.random.normal(ks[11], (H, V), jnp.float32) * s,  # project
        "bp": jax.random.normal(ks[12], (1, V), jnp.float32) * s,
        "sentinel": jax.random.normal(ks[13], (1, 1, A), jnp.float32),
        "max_length": 20,
    }

    inputs = jax.random.randint(ks[14], (B, T), 0, V).astype(jnp.int32)
    attn_context = jax.random.normal(ks[15], (B, Lc, A), jnp.float32)
    attn_words = jax.random.randint(ks[16], (B, Lc), 0, V).astype(jnp.int32)

    pred, (hN, cN), ret = decoder_pointer_gen_forward(params, attn_context, attn_words, inputs)
    jax.block_until_ready(pred)

    # Validate against pure-JAX reference
    r_pred, (r_h, r_c), r_ptr, r_attn, r_g = reference_forward(params, attn_context, attn_words, inputs)
    assert np.allclose(np.asarray(pred), np.asarray(r_pred), atol=2e-2, rtol=2e-2)
    assert np.allclose(np.asarray(ret["ptr_softmax"]), np.asarray(r_ptr), atol=2e-2, rtol=2e-2)
    assert np.allclose(np.asarray(ret["attention_score"]), np.asarray(r_attn), atol=2e-2, rtol=2e-2)
    assert np.allclose(np.asarray(ret["g"]), np.asarray(r_g), atol=2e-2, rtol=2e-2)
    assert np.allclose(np.asarray(hN[0]), np.asarray(r_h), atol=2e-2, rtol=2e-2)
    assert np.allclose(np.asarray(cN[0]), np.asarray(r_c), atol=2e-2, rtol=2e-2)

    print("KERNEL_OK")
</pallas_src>

<mosaic_0001>
module attributes {stable_mosaic.version = 11 : i64} {
  func.func @lstm_kernel(%arg0: i32, %arg1: i32, %arg2: memref<2x16x16xf32, #tpu.memory_space<vmem>>, %arg3: memref<16x128xf32, #tpu.memory_space<vmem>>, %arg4: memref<32x128xf32, #tpu.memory_space<vmem>>, %arg5: memref<1x128xf32, #tpu.memory_space<vmem>>, %arg6: memref<2x16x32xf32, #tpu.memory_space<vmem>>, %arg7: memref<2x32xf32, #tpu.memory_space<vmem>>, %arg8: memref<2x32xf32, #tpu.memory_space<vmem>>, %arg9: memref<2x32xf32, #tpu.memory_space<vmem>>, %arg10: memref<2x32xf32, #tpu.memory_space<vmem>>) attributes {dimension_semantics = [#tpu.dimension_semantics<parallel>, #tpu.dimension_semantics<arbitrary>], iteration_bounds = array<i64: 1, 1>, scalar_prefetch = 0 : i64, scratch_operands = 2 : i64, tpu.core_type = #tpu.core_type<tc>, window_params = [{transform_indices = @transform_0, window_bounds = array<i64: 2, 16, 16>}, {pipeline_mode = #tpu.pipeline_mode<synchronous>, transform_indices = @transform_1, window_bounds = array<i64: 16, 128>}, {pipeline_mode = #tpu.pipeline_mode<synchronous>, transform_indices = @transform_2, window_bounds = array<i64: 32, 128>}, {pipeline_mode = #tpu.pipeline_mode<synchronous>, transform_indices = @transform_3, window_bounds = array<i64: 1, 128>}, {transform_indices = @transform_4, window_bounds = array<i64: 2, 16, 32>}, {transform_indices = @transform_5, window_bounds = array<i64: 2, 32>}, {transform_indices = @transform_6, window_bounds = array<i64: 2, 32>}]} {
    %c0_i32 = arith.constant 0 : i32
    %0 = arith.cmpi eq, %arg1, %c0_i32 : i32
    %1 = arith.extui %0 : i1 to i32
    %c0_i32_0 = arith.constant 0 : i32
    %2 = arith.cmpi ne, %1, %c0_i32_0 : i32
    scf.if %2 {
      %cst_116 = arith.constant 0.000000e+00 : f32
      %531 = vector.broadcast %cst_116 : f32 to vector<2x32xf32>
      %c0_117 = arith.constant 0 : index
      %c0_118 = arith.constant 0 : index
      %532 = vector.load %arg9[%c0_117, %c0_118] : memref<2x32xf32, #tpu.memory_space<vmem>>, vector<2x32xf32>
      tpu.vector_store %arg9[%c0_117, %c0_118], %531 {strides = array<i32>} : memref<2x32xf32, #tpu.memory_space<vmem>>, vector<2x32xf32>,
      %cst_119 = arith.constant 0.000000e+00 : f32
      %533 = vector.broadcast %cst_119 : f32 to vector<2x32xf32>
      %c0_120 = arith.constant 0 : index
      %c0_121 = arith.constant 0 : index
      %534 = vector.load %arg10[%c0_120, %c0_121] : memref<2x32xf32, #tpu.memory_space<vmem>>, vector<2x32xf32>
      tpu.vector_store %arg10[%c0_120, %c0_121], %533 {strides = array<i32>} : memref<2x32xf32, #tpu.memory_space<vmem>>, vector<2x32xf32>,
    } else {
    }
    %c0 = arith.constant 0 : index
    %c0_1 = arith.constant 0 : index
    %c0_2 = arith.constant 0 : index
    %3 = vector.load %arg2[%c0, %c0_1, %c0_2] : memref<2x16x16xf32, #tpu.memory_space<vmem>>, vector<2x16x16xf32>
    %4 = vector.shape_cast %3 : vector<2x16x16xf32> to vector<32x16xf32>
    %c0_3 = arith.constant 0 : index
    %c0_4 = arith.constant 0 : index
    %5 = vector.load %arg3[%c0_3, %c0_4] : memref<16x128xf32, #tpu.memory_space<vmem>>, vector<16x128xf32>
    %cst = arith.constant dense<0.000000e+00> : vector<32x128xf32>
    %6 = tpu.matmul %4, %5, %cst {dimension_numbers = #tpu.dot_dimension_numbers<[1], [0], [0], [1], [0, 0, 1, 1], [], []>} : vector<32x16xf32>, vector<16x128xf32>, vector<32x128xf32> -> vector<32x128xf32>
    %c0_5 = arith.constant 0 : index
    %c0_6 = arith.constant 0 : index
    %7 = vector.load %arg5[%c0_5, %c0_6] : memref<1x128xf32, #tpu.memory_space<vmem>>, vector<1x128xf32>
    %8 = vector.broadcast %7 : vector<1x128xf32> to vector<32x128xf32>
    %9 = arith.addf %6, %8 : vector<32x128xf32>
    %10 = vector.shape_cast %9 : vector<32x128xf32> to vector<2x16x128xf32>
    %c0_7 = arith.constant 0 : index
    %c0_8 = arith.constant 0 : index
    %11 = vector.load %arg4[%c0_7, %c0_8] : memref<32x128xf32, #tpu.memory_space<vmem>>, vector<32x128xf32>
    %c0_9 = arith.constant 0 : index
    %c0_10 = arith.constant 0 : index
    %12 = vector.load %arg9[%c0_9, %c0_10] : memref<2x32xf32, #tpu.memory_space<vmem>>, vector<2x32xf32>
    %c0_11 = arith.constant 0 : index
    %c0_12 = arith.constant 0 : index
    %13 = vector.load %arg10[%c0_11, %c0_12] : memref<2x32xf32, #tpu.memory_space<vmem>>, vector<2x32xf32>
    %14 = vector.extract_strided_slice %10 {offsets = [0, 0, 0], sizes = [2, 1, 128], strides = [1, 1, 1]} : vector<2x16x128xf32> to vector<2x1x128xf32>
    %15 = vector.shape_cast %14 : vector<2x1x128xf32> to vector<2x128xf32>
    %cst_13 = arith.constant dense<0.000000e+00> : vector<2x128xf32>
    %16 = tpu.matmul %12, %11, %cst_13 {dimension_numbers = #tpu.dot_dimension_numbers<[1], [0], [0], [1], [0, 0, 1, 1], [], []>} : vector<2x32xf32>, vector<32x128xf32>, vector<2x128xf32> -> vector<2x128xf32>
    %17 = arith.addf %15, %16 : vector<2x128xf32>
    %18 = vector.extract_strided_slice %17 {offsets = [0, 0], sizes = [2, 32], strides = [1, 1]} : vector<2x128xf32> to vector<2x32xf32>
    %19 = arith.negf %18 : vector<2x32xf32>
    %20 = math.exp %19 : vector<2x32xf32>
    %cst_14 = arith.constant 1.000000e+00 : f32
    %21 = vector.broadcast %cst_14 : f32 to vector<2x32xf32>
    %22 = arith.addf %21, %20 : vector<2x32xf32>
    %23 = arith.divf %21, %22 : vector<2x32xf32>
    %24 = vector.extract_strided_slice %17 {offsets = [0, 32], sizes = [2, 32], strides = [1, 1]} : vector<2x128xf32> to vector<2x32xf32>
    %25 = arith.negf %24 : vector<2x32xf32>
    %26 = math.exp %25 : vector<2x32xf32>
    %cst_15 = arith.constant 1.000000e+00 : f32
    %27 = vector.broadcast %cst_15 : f32 to vector<2x32xf32>
    %28 = arith.addf %27, %26 : vector<2x32xf32>
    %29 = arith.divf %27, %28 : vector<2x32xf32>
    %30 = vector.extract_strided_slice %17 {offsets = [0, 64], sizes = [2, 32], strides = [1, 1]} : vector<2x128xf32> to vector<2x32xf32>
    %31 = math.tanh %30 : vector<2x32xf32>
    %32 = vector.extract_strided_slice %17 {offsets = [0, 96], sizes = [2, 32], strides = [1, 1]} : vector<2x128xf32> to vector<2x32xf32>
    %33 = arith.negf %32 : vector<2x32xf32>
    %34 = math.exp %33 : vector<2x32xf32>
    %cst_16 = arith.constant 1.000000e+00 : f32
    %35 = vector.broadcast %cst_16 : f32 to vector<2x32xf32>
    %36 = arith.addf %35, %34 : vector<2x32xf32>
    %37 = arith.divf %35, %36 : vector<2x32xf32>
    %38 = arith.mulf %29, %13 : vector<2x32xf32>
    %39 = arith.mulf %23, %31 : vector<2x32xf32>
    %40 = arith.addf %38, %39 : vector<2x32xf32>
    %41 = math.tanh %40 : vector<2x32xf32>
    %42 = arith.mulf %37, %41 : vector<2x32xf32>
    %c0_17 = arith.constant 0 : index
    %c0_18 = arith.constant 0 : index
    %c0_19 = arith.constant 0 : index
    %43 = vector.load %arg6[%c0_17, %c0_18, %c0_19] : memref<2x16x32xf32, #tpu.memory_space<vmem>>, vector<2x1x32xf32>
    %44 = vector.shape_cast %43 : vector<2x1x32xf32> to vector<2x32xf32>
    %45 = vector.shape_cast %42 : vector<2x32xf32> to vector<2x1x32xf32>
    tpu.vector_store %arg6[%c0_17, %c0_18, %c0_19], %45 {strides = array<i32>} : memref<2x16x32xf32, #tpu.memory_space<vmem>>, vector<2x1x32xf32>,
    %46 = vector.extract_strided_slice %10 {offsets = [0, 1, 0], sizes = [2, 1, 128], strides = [1, 1, 1]} : vector<2x16x128xf32> to vector<2x1x128xf32>
    %47 = vector.shape_cast %46 : vector<2x1x128xf32> to vector<2x128xf32>
    %cst_20 = arith.constant dense<0.000000e+00> : vector<2x128xf32>
    %48 = tpu.matmul %42, %11, %cst_20 {dimension_numbers = #tpu.dot_dimension_numbers<[1], [0], [0], [1], [0, 0, 1, 1], [], []>} : vector<2x32xf32>, vector<32x128xf32>, vector<2x128xf32> -> vector<2x128xf32>
    %49 = arith.addf %47, %48 : vector<2x128xf32>
    %50 = vector.extract_strided_slice %49 {offsets = [0, 0], sizes = [2, 32], strides = [1, 1]} : vector<2x128xf32> to vector<2x32xf32>
    %51 = arith.negf %50 : vector<2x32xf32>
    %52 = math.exp %51 : vector<2x32xf32>
    %cst_21 = arith.constant 1.000000e+00 : f32
    %53 = vector.broadcast %cst_21 : f32 to vector<2x32xf32>
    %54 = arith.addf %53, %52 : vector<2x32xf32>
    %55 = arith.divf %53, %54 : vector<2x32xf32>
    %56 = vector.extract_strided_slice %49 {offsets = [0, 32], sizes = [2, 32], strides = [1, 1]} : vector<2x128xf32> to vector<2x32xf32>
    %57 = arith.negf %56 : vector<2x32xf32>
    %58 = math.exp %57 : vector<2x32xf32>
    %cst_22 = arith.constant 1.000000e+00 : f32
    %59 = vector.broadcast %cst_22 : f32 to vector<2x32xf32>
    %60 = arith.addf %59, %58 : vector<2x32xf32>
    %61 = arith.divf %59, %60 : vector<2x32xf32>
    %62 = vector.extract_strided_slice %49 {offsets = [0, 64], sizes = [2, 32], strides = [1, 1]} : vector<2x128xf32> to vector<2x32xf32>
    %63 = math.tanh %62 : vector<2x32xf32>
    %64 = vector.extract_strided_slice %49 {offsets = [0, 96], sizes = [2, 32], strides = [1, 1]} : vector<2x128xf32> to vector<2x32xf32>
    %65 = arith.negf %64 : vector<2x32xf32>
    %66 = math.exp %65 : vector<2x32xf32>
    %cst_23 = arith.constant 1.000000e+00 : f32
    %67 = vector.broadcast %cst_23 : f32 to vector<2x32xf32>
    %68 = arith.addf %67, %66 : vector<2x32xf32>
    %69 = arith.divf %67, %68 : vector<2x32xf32>
    %70 = arith.mulf %61, %40 : vector<2x32xf32>
    %71 = arith.mulf %55, %63 : vector<2x32xf32>
    %72 = arith.addf %70, %71 : vector<2x32xf32>
    %73 = math.tanh %72 : vector<2x32xf32>
    %74 = arith.mulf %69, %73 : vector<2x32xf32>
    %c0_24 = arith.constant 0 : index
    %c1 = arith.constant 1 : index
    %c0_25 = arith.constant 0 : index
    %75 = vector.load %arg6[%c0_24, %c1, %c0_25] : memref<2x16x32xf32, #tpu.memory_space<vmem>>, vector<2x1x32xf32>
    %76 = vector.shape_cast %75 : vector<2x1x32xf32> to vector<2x32xf32>
    %77 = vector.shape_cast %74 : vector<2x32xf32> to vector<2x1x32xf32>
    tpu.vector_store %arg6[%c0_24, %c1, %c0_25], %77 {strides = array<i32>} : memref<2x16x32xf32, #tpu.memory_space<vmem>>, vector<2x1x32xf32>,
    %78 = vector.extract_strided_slice %10 {offsets = [0, 2, 0], sizes = [2, 1, 128], strides = [1, 1, 1]} : vector<2x16x128xf32> to vector<2x1x128xf32>
    %79 = vector.shape_cast %78 : vector<2x1x128xf32> to vector<2x128xf32>
    %cst_26 = arith.constant dense<0.000000e+00> : vector<2x128xf32>
    %80 = tpu.matmul %74, %11, %cst_26 {dimension_numbers = #tpu.dot_dimension_numbers<[1], [0], [0], [1], [0, 0, 1, 1], [], []>} : vector<2x32xf32>, vector<32x128xf32>, vector<2x128xf32> -> vector<2x128xf32>
    %81 = arith.addf %79, %80 : vector<2x128xf32>
    %82 = vector.extract_strided_slice %81 {offsets = [0, 0], sizes = [2, 32], strides = [1, 1]} : vector<2x128xf32> to vector<2x32xf32>
    %83 = arith.negf %82 : vector<2x32xf32>
    %84 = math.exp %83 : vector<2x32xf32>
    %cst_27 = arith.constant 1.000000e+00 : f32
    %85 = vector.broadcast %cst_27 : f32 to vector<2x32xf32>
    %86 = arith.addf %85, %84 : vector<2x32xf32>
    %87 = arith.divf %85, %86 : vector<2x32xf32>
    %88 = vector.extract_strided_slice %81 {offsets = [0, 32], sizes = [2, 32], strides = [1, 1]} : vector<2x128xf32> to vector<2x32xf32>
    %89 = arith.negf %88 : vector<2x32xf32>
    %90 = math.exp %89 : vector<2x32xf32>
    %cst_28 = arith.constant 1.000000e+00 : f32
    %91 = vector.broadcast %cst_28 : f32 to vector<2x32xf32>
    %92 = arith.addf %91, %90 : vector<2x32xf32>
    %93 = arith.divf %91, %92 : vector<2x32xf32>
    %94 = vector.extract_strided_slice %81 {offsets = [0, 64], sizes = [2, 32], strides = [1, 1]} : vector<2x128xf32> to vector<2x32xf32>
    %95 = math.tanh %94 : vector<2x32xf32>
    %96 = vector.extract_strided_slice %81 {offsets = [0, 96], sizes = [2, 32], strides = [1, 1]} : vector<2x128xf32> to vector<2x32xf32>
    %97 = arith.negf %96 : vector<2x32xf32>
    %98 = math.exp %97 : vector<2x32xf32>
    %cst_29 = arith.constant 1.000000e+00 : f32
    %99 = vector.broadcast %cst_29 : f32 to vector<2x32xf32>
    %100 = arith.addf %99, %98 : vector<2x32xf32>
    %101 = arith.divf %99, %100 : vector<2x32xf32>
    %102 = arith.mulf %93, %72 : vector<2x32xf32>
    %103 = arith.mulf %87, %95 : vector<2x32xf32>
    %104 = arith.addf %102, %103 : vector<2x32xf32>
    %105 = math.tanh %104 : vector<2x32xf32>
    %106 = arith.mulf %101, %105 : vector<2x32xf32>
    %c0_30 = arith.constant 0 : index
    %c2 = arith.constant 2 : index
    %c0_31 = arith.constant 0 : index
    %107 = vector.load %arg6[%c0_30, %c2, %c0_31] : memref<2x16x32xf32, #tpu.memory_space<vmem>>, vector<2x1x32xf32>
    %108 = vector.shape_cast %107 : vector<2x1x32xf32> to vector<2x32xf32>
    %109 = vector.shape_cast %106 : vector<2x32xf32> to vector<2x1x32xf32>
    tpu.vector_store %arg6[%c0_30, %c2, %c0_31], %109 {strides = array<i32>} : memref<2x16x32xf32, #tpu.memory_space<vmem>>, vector<2x1x32xf32>,
    %110 = vector.extract_strided_slice %10 {offsets = [0, 3, 0], sizes = [2, 1, 128], strides = [1, 1, 1]} : vector<2x16x128xf32> to vector<2x1x128xf32>
    %111 = vector.shape_cast %110 : vector<2x1x128xf32> to vector<2x128xf32>
    %cst_32 = arith.constant dense<0.000000e+00> : vector<2x128xf32>
    %112 = tpu.matmul %106, %11, %cst_32 {dimension_numbers = #tpu.dot_dimension_numbers<[1], [0], [0], [1], [0, 0, 1, 1], [], []>} : vector<2x32xf32>, vector<32x128xf32>, vector<2x128xf32> -> vector<2x128xf32>
    %113 = arith.addf %111, %112 : vector<2x128xf32>
    %114 = vector.extract_strided_slice %113 {offsets = [0, 0], sizes = [2, 32], strides = [1, 1]} : vector<2x128xf32> to vector<2x32xf32>
    %115 = arith.negf %114 : vector<2x32xf32>
    %116 = math.exp %115 : vector<2x32xf32>
    %cst_33 = arith.constant 1.000000e+00 : f32
    %117 = vector.broadcast %cst_33 : f32 to vector<2x32xf32>
    %118 = arith.addf %117, %116 : vector<2x32xf32>
    %119 = arith.divf %117, %118 : vector<2x32xf32>
    %120 = vector.extract_strided_slice %113 {offsets = [0, 32], sizes = [2, 32], strides = [1, 1]} : vector<2x128xf32> to vector<2x32xf32>
    %121 = arith.negf %120 : vector<2x32xf32>
    %122 = math.exp %121 : vector<2x32xf32>
    %cst_34 = arith.constant 1.000000e+00 : f32
    %123 = vector.broadcast %cst_34 : f32 to vector<2x32xf32>
    %124 = arith.addf %123, %122 : vector<2x32xf32>
    %125 = arith.divf %123, %124 : vector<2x32xf32>
    %126 = vector.extract_strided_slice %113 {offsets = [0, 64], sizes = [2, 32], strides = [1, 1]} : vector<2x128xf32> to vector<2x32xf32>
    %127 = math.tanh %126 : vector<2x32xf32>
    %128 = vector.extract_strided_slice %113 {offsets = [0, 96], sizes = [2, 32], strides = [1, 1]} : vector<2x128xf32> to vector<2x32xf32>
    %129 = arith.negf %128 : vector<2x32xf32>
    %130 = math.exp %129 : vector<2x32xf32>
    %cst_35 = arith.constant 1.000000e+00 : f32
    %131 = vector.broadcast %cst_35 : f32 to vector<2x32xf32>
    %132 = arith.addf %131, %130 : vector<2x32xf32>
    %133 = arith.divf %131, %132 : vector<2x32xf32>
    %134 = arith.mulf %125, %104 : vector<2x32xf32>
    %135 = arith.mulf %119, %127 : vector<2x32xf32>
    %136 = arith.addf %134, %135 : vector<2x32xf32>
    %137 = math.tanh %136 : vector<2x32xf32>
    %138 = arith.mulf %133, %137 : vector<2x32xf32>
    %c0_36 = arith.constant 0 : index
    %c3 = arith.constant 3 : index
    %c0_37 = arith.constant 0 : index
    %139 = vector.load %arg6[%c0_36, %c3, %c0_37] : memref<2x16x32xf32, #tpu.memory_space<vmem>>, vector<2x1x32xf32>
    %140 = vector.shape_cast %139 : vector<2x1x32xf32> to vector<2x32xf32>
    %141 = vector.shape_cast %138 : vector<2x32xf32> to vector<2x1x32xf32>
    tpu.vector_store %arg6[%c0_36, %c3, %c0_37], %141 {strides = array<i32>} : memref<2x16x32xf32, #tpu.memory_space<vmem>>, vector<2x1x32xf32>,
    %142 = vector.extract_strided_slice %10 {offsets = [0, 4, 0], sizes = [2, 1, 128], strides = [1, 1, 1]} : vector<2x16x128xf32> to vector<2x1x128xf32>
    %143 = vector.shape_cast %142 : vector<2x1x128xf32> to vector<2x128xf32>
    %cst_38 = arith.constant dense<0.000000e+00> : vector<2x128xf32>
    %144 = tpu.matmul %138, %11, %cst_38 {dimension_numbers = #tpu.dot_dimension_numbers<[1], [0], [0], [1], [0, 0, 1, 1], [], []>} : vector<2x32xf32>, vector<32x128xf32>, vector<2x128xf32> -> vector<2x128xf32>
    %145 = arith.addf %143, %144 : vector<2x128xf32>
    %146 = vector.extract_strided_slice %145 {offsets = [0, 0], sizes = [2, 32], strides = [1, 1]} : vector<2x128xf32> to vector<2x32xf32>
    %147 = arith.negf %146 : vector<2x32xf32>
    %148 = math.exp %147 : vector<2x32xf32>
    %cst_39 = arith.constant 1.000000e+00 : f32
    %149 = vector.broadcast %cst_39 : f32 to vector<2x32xf32>
    %150 = arith.addf %149, %148 : vector<2x32xf32>
    %151 = arith.divf %149, %150 : vector<2x32xf32>
    %152 = vector.extract_strided_slice %145 {offsets = [0, 32], sizes = [2, 32], strides = [1, 1]} : vector<2x128xf32> to vector<2x32xf32>
    %153 = arith.negf %152 : vector<2x32xf32>
    %154 = math.exp %153 : vector<2x32xf32>
    %cst_40 = arith.constant 1.000000e+00 : f32
    %155 = vector.broadcast %cst_40 : f32 to vector<2x32xf32>
    %156 = arith.addf %155, %154 : vector<2x32xf32>
    %157 = arith.divf %155, %156 : vector<2x32xf32>
    %158 = vector.extract_strided_slice %145 {offsets = [0, 64], sizes = [2, 32], strides = [1, 1]} : vector<2x128xf32> to vector<2x32xf32>
    %159 = math.tanh %158 : vector<2x32xf32>
    %160 = vector.extract_strided_slice %145 {offsets = [0, 96], sizes = [2, 32], strides = [1, 1]} : vector<2x128xf32> to vector<2x32xf32>
    %161 = arith.negf %160 : vector<2x32xf32>
    %162 = math.exp %161 : vector<2x32xf32>
    %cst_41 = arith.constant 1.000000e+00 : f32
    %163 = vector.broadcast %cst_41 : f32 to vector<2x32xf32>
    %164 = arith.addf %163, %162 : vector<2x32xf32>
    %165 = arith.divf %163, %164 : vector<2x32xf32>
    %166 = arith.mulf %157, %136 : vector<2x32xf32>
    %167 = arith.mulf %151, %159 : vector<2x32xf32>
    %168 = arith.addf %166, %167 : vector<2x32xf32>
    %169 = math.tanh %168 : vector<2x32xf32>
    %170 = arith.mulf %165, %169 : vector<2x32xf32>
    %c0_42 = arith.constant 0 : index
    %c4 = arith.constant 4 : index
    %c0_43 = arith.constant 0 : index
    %171 = vector.load %arg6[%c0_42, %c4, %c0_43] : memref<2x16x32xf32, #tpu.memory_space<vmem>>, vector<2x1x32xf32>
    %172 = vector.shape_cast %171 : vector<2x1x32xf32> to vector<2x32xf32>
    %173 = vector.shape_cast %170 : vector<2x32xf32> to vector<2x1x32xf32>
    tpu.vector_store %arg6[%c0_42, %c4, %c0_43], %173 {strides = array<i32>} : memref<2x16x32xf32, #tpu.memory_space<vmem>>, vector<2x1x32xf32>,
    %174 = vector.extract_strided_slice %10 {offsets = [0, 5, 0], sizes = [2, 1, 128], strides = [1, 1, 1]} : vector<2x16x128xf32> to vector<2x1x128xf32>
    %175 = vector.shape_cast %174 : vector<2x1x128xf32> to vector<2x128xf32>
    %cst_44 = arith.constant dense<0.000000e+00> : vector<2x128xf32>
    %176 = tpu.matmul %170, %11, %cst_44 {dimension_numbers = #tpu.dot_dimension_numbers<[1], [0], [0], [1], [0, 0, 1, 1], [], []>} : vector<2x32xf32>, vector<32x128xf32>, vector<2x128xf32> -> vector<2x128xf32>
    %177 = arith.addf %175, %176 : vector<2x128xf32>
    %178 = vector.extract_strided_slice %177 {offsets = [0, 0], sizes = [2, 32], strides = [1, 1]} : vector<2x128xf32> to vector<2x32xf32>
    %179 = arith.negf %178 : vector<2x32xf32>
    %180 = math.exp %179 : vector<2x32xf32>
    %cst_45 = arith.constant 1.000000e+00 : f32
    %181 = vector.broadcast %cst_45 : f32 to vector<2x32xf32>
    %182 = arith.addf %181, %180 : vector<2x32xf32>
    %183 = arith.divf %181, %182 : vector<2x32xf32>
    %184 = vector.extract_strided_slice %177 {offsets = [0, 32], sizes = [2, 32], strides = [1, 1]} : vector<2x128xf32> to vector<2x32xf32>
    %185 = arith.negf %184 : vector<2x32xf32>
    %186 = math.exp %185 : vector<2x32xf32>
    %cst_46 = arith.constant 1.000000e+00 : f32
    %187 = vector.broadcast %cst_46 : f32 to vector<2x32xf32>
    %188 = arith.addf %187, %186 : vector<2x32xf32>
    %189 = arith.divf %187, %188 : vector<2x32xf32>
    %190 = vector.extract_strided_slice %177 {offsets = [0, 64], sizes = [2, 32], strides = [1, 1]} : vector<2x128xf32> to vector<2x32xf32>
    %191 = math.tanh %190 : vector<2x32xf32>
    %192 = vector.extract_strided_slice %177 {offsets = [0, 96], sizes = [2, 32], strides = [1, 1]} : vector<2x128xf32> to vector<2x32xf32>
    %193 = arith.negf %192 : vector<2x32xf32>
    %194 = math.exp %193 : vector<2x32xf32>
    %cst_47 = arith.constant 1.000000e+00 : f32
    %195 = vector.broadcast %cst_47 : f32 to vector<2x32xf32>
    %196 = arith.addf %195, %194 : vector<2x32xf32>
    %197 = arith.divf %195, %196 : vector<2x32xf32>
    %198 = arith.mulf %189, %168 : vector<2x32xf32>
    %199 = arith.mulf %183, %191 : vector<2x32xf32>
    %200 = arith.addf %198, %199 : vector<2x32xf32>
    %201 = math.tanh %200 : vector<2x32xf32>
    %202 = arith.mulf %197, %201 : vector<2x32xf32>
    %c0_48 = arith.constant 0 : index
    %c5 = arith.constant 5 : index
    %c0_49 = arith.constant 0 : index
    %203 = vector.load %arg6[%c0_48, %c5, %c0_49] : memref<2x16x32xf32, #tpu.memory_space<vmem>>, vector<2x1x32xf32>
    %204 = vector.shape_cast %203 : vector<2x1x32xf32> to vector<2x32xf32>
    %205 = vector.shape_cast %202 : vector<2x32xf32> to vector<2x1x32xf32>
    tpu.vector_store %arg6[%c0_48, %c5, %c0_49], %205 {strides = array<i32>} : memref<2x16x32xf32, #tpu.memory_space<vmem>>, vector<2x1x32xf32>,
    %206 = vector.extract_strided_slice %10 {offsets = [0, 6, 0], sizes = [2, 1, 128], strides = [1, 1, 1]} : vector<2x16x128xf32> to vector<2x1x128xf32>
    %207 = vector.shape_cast %206 : vector<2x1x128xf32> to vector<2x128xf32>
    %cst_50 = arith.constant dense<0.000000e+00> : vector<2x128xf32>
    %208 = tpu.matmul %202, %11, %cst_50 {dimension_numbers = #tpu.dot_dimension_numbers<[1], [0], [0], [1], [0, 0, 1, 1], [], []>} : vector<2x32xf32>, vector<32x128xf32>, vector<2x128xf32> -> vector<2x128xf32>
    %209 = arith.addf %207, %208 : vector<2x128xf32>
    %210 = vector.extract_strided_slice %209 {offsets = [0, 0], sizes = [2, 32], strides = [1, 1]} : vector<2x128xf32> to vector<2x32xf32>
    %211 = arith.negf %210 : vector<2x32xf32>
    %212 = math.exp %211 : vector<2x32xf32>
    %cst_51 = arith.constant 1.000000e+00 : f32
    %213 = vector.broadcast %cst_51 : f32 to vector<2x32xf32>
    %214 = arith.addf %213, %212 : vector<2x32xf32>
    %215 = arith.divf %213, %214 : vector<2x32xf32>
    %216 = vector.extract_strided_slice %209 {offsets = [0, 32], sizes = [2, 32], strides = [1, 1]} : vector<2x128xf32> to vector<2x32xf32>
    %217 = arith.negf %216 : vector<2x32xf32>
    %218 = math.exp %217 : vector<2x32xf32>
    %cst_52 = arith.constant 1.000000e+00 : f32
    %219 = vector.broadcast %cst_52 : f32 to vector<2x32xf32>
    %220 = arith.addf %219, %218 : vector<2x32xf32>
    %221 = arith.divf %219, %220 : vector<2x32xf32>
    %222 = vector.extract_strided_slice %209 {offsets = [0, 64], sizes = [2, 32], strides = [1, 1]} : vector<2x128xf32> to vector<2x32xf32>
    %223 = math.tanh %222 : vector<2x32xf32>
    %224 = vector.extract_strided_slice %209 {offsets = [0, 96], sizes = [2, 32], strides = [1, 1]} : vector<2x128xf32> to vector<2x32xf32>
    %225 = arith.negf %224 : vector<2x32xf32>
    %226 = math.exp %225 : vector<2x32xf32>
    %cst_53 = arith.constant 1.000000e+00 : f32
    %227 = vector.broadcast %cst_53 : f32 to vector<2x32xf32>
    %228 = arith.addf %227, %226 : vector<2x32xf32>
    %229 = arith.divf %227, %228 : vector<2x32xf32>
    %230 = arith.mulf %221, %200 : vector<2x32xf32>
    %231 = arith.mulf %215, %223 : vector<2x32xf32>
    %232 = arith.addf %230, %231 : vector<2x32xf32>
    %233 = math.tanh %232 : vector<2x32xf32>
    %234 = arith.mulf %229, %233 : vector<2x32xf32>
    %c0_54 = arith.constant 0 : index
    %c6 = arith.constant 6 : index
    %c0_55 = arith.constant 0 : index
    %235 = vector.load %arg6[%c0_54, %c6, %c0_55] : memref<2x16x32xf32, #tpu.memory_space<vmem>>, vector<2x1x32xf32>
    %236 = vector.shape_cast %235 : vector<2x1x32xf32> to vector<2x32xf32>
    %237 = vector.shape_cast %234 : vector<2x32xf32> to vector<2x1x32xf32>
    tpu.vector_store %arg6[%c0_54, %c6, %c0_55], %237 {strides = array<i32>} : memref<2x16x32xf32, #tpu.memory_space<vmem>>, vector<2x1x32xf32>,
    %238 = vector.extract_strided_slice %10 {offsets = [0, 7, 0], sizes = [2, 1, 128], strides = [1, 1, 1]} : vector<2x16x128xf32> to vector<2x1x128xf32>
    %239 = vector.shape_cast %238 : vector<2x1x128xf32> to vector<2x128xf32>
    %cst_56 = arith.constant dense<0.000000e+00> : vector<2x128xf32>
    %240 = tpu.matmul %234, %11, %cst_56 {dimension_numbers = #tpu.dot_dimension_numbers<[1], [0], [0], [1], [0, 0, 1, 1], [], []>} : vector<2x32xf32>, vector<32x128xf32>, vector<2x128xf32> -> vector<2x128xf32>
    %241 = arith.addf %239, %240 : vector<2x128xf32>
    %242 = vector.extract_strided_slice %241 {offsets = [0, 0], sizes = [2, 32], strides = [1, 1]} : vector<2x128xf32> to vector<2x32xf32>
    %243 = arith.negf %242 : vector<2x32xf32>
    %244 = math.exp %243 : vector<2x32xf32>
    %cst_57 = arith.constant 1.000000e+00 : f32
    %245 = vector.broadcast %cst_57 : f32 to vector<2x32xf32>
    %246 = arith.addf %245, %244 : vector<2x32xf32>
    %247 = arith.divf %245, %246 : vector<2x32xf32>
    %248 = vector.extract_strided_slice %241 {offsets = [0, 32], sizes = [2, 32], strides = [1, 1]} : vector<2x128xf32> to vector<2x32xf32>
    %249 = arith.negf %248 : vector<2x32xf32>
    %250 = math.exp %249 : vector<2x32xf32>
    %cst_58 = arith.constant 1.000000e+00 : f32
    %251 = vector.broadcast %cst_58 : f32 to vector<2x32xf32>
    %252 = arith.addf %251, %250 : vector<2x32xf32>
    %253 = arith.divf %251, %252 : vector<2x32xf32>
    %254 = vector.extract_strided_slice %241 {offsets = [0, 64], sizes = [2, 32], strides = [1, 1]} : vector<2x128xf32> to vector<2x32xf32>
    %255 = math.tanh %254 : vector<2x32xf32>
    %256 = vector.extract_strided_slice %241 {offsets = [0, 96], sizes = [2, 32], strides = [1, 1]} : vector<2x128xf32> to vector<2x32xf32>
    %257 = arith.negf %256 : vector<2x32xf32>
    %258 = math.exp %257 : vector<2x32xf32>
    %cst_59 = arith.constant 1.000000e+00 : f32
    %259 = vector.broadcast %cst_59 : f32 to vector<2x32xf32>
    %260 = arith.addf %259, %258 : vector<2x32xf32>
    %261 = arith.divf %259, %260 : vector<2x32xf32>
    %262 = arith.mulf %253, %232 : vector<2x32xf32>
    %263 = arith.mulf %247, %255 : vector<2x32xf32>
    %264 = arith.addf %262, %263 : vector<2x32xf32>
    %265 = math.tanh %264 : vector<2x32xf32>
    %266 = arith.mulf %261, %265 : vector<2x32xf32>
    %c0_60 = arith.constant 0 : index
    %c7 = arith.constant 7 : index
    %c0_61 = arith.constant 0 : index
    %267 = vector.load %arg6[%c0_60, %c7, %c0_61] : memref<2x16x32xf32, #tpu.memory_space<vmem>>, vector<2x1x32xf32>
    %268 = vector.shape_cast %267 : vector<2x1x32xf32> to vector<2x32xf32>
    %269 = vector.shape_cast %266 : vector<2x32xf32> to vector<2x1x32xf32>
    tpu.vector_store %arg6[%c0_60, %c7, %c0_61], %269 {strides = array<i32>} : memref<2x16x32xf32, #tpu.memory_space<vmem>>, vector<2x1x32xf32>,
    %270 = vector.extract_strided_slice %10 {offsets = [0, 8, 0], sizes = [2, 1, 128], strides = [1, 1, 1]} : vector<2x16x128xf32> to vector<2x1x128xf32>
    %271 = vector.shape_cast %270 : vector<2x1x128xf32> to vector<2x128xf32>
    %cst_62 = arith.constant dense<0.000000e+00> : vector<2x128xf32>
    %272 = tpu.matmul %266, %11, %cst_62 {dimension_numbers = #tpu.dot_dimension_numbers<[1], [0], [0], [1], [0, 0, 1, 1], [], []>} : vector<2x32xf32>, vector<32x128xf32>, vector<2x128xf32> -> vector<2x128xf32>
    %273 = arith.addf %271, %272 : vector<2x128xf32>
    %274 = vector.extract_strided_slice %273 {offsets = [0, 0], sizes = [2, 32], strides = [1, 1]} : vector<2x128xf32> to vector<2x32xf32>
    %275 = arith.negf %274 : vector<2x32xf32>
    %276 = math.exp %275 : vector<2x32xf32>
    %cst_63 = arith.constant 1.000000e+00 : f32
    %277 = vector.broadcast %cst_63 : f32 to vector<2x32xf32>
    %278 = arith.addf %277, %276 : vector<2x32xf32>
    %279 = arith.divf %277, %278 : vector<2x32xf32>
    %280 = vector.extract_strided_slice %273 {offsets = [0, 32], sizes = [2, 32], strides = [1, 1]} : vector<2x128xf32> to vector<2x32xf32>
    %281 = arith.negf %280 : vector<2x32xf32>
    %282 = math.exp %281 : vector<2x32xf32>
    %cst_64 = arith.constant 1.000000e+00 : f32
    %283 = vector.broadcast %cst_64 : f32 to vector<2x32xf32>
    %284 = arith.addf %283, %282 : vector<2x32xf32>
    %285 = arith.divf %283, %284 : vector<2x32xf32>
    %286 = vector.extract_strided_slice %273 {offsets = [0, 64], sizes = [2, 32], strides = [1, 1]} : vector<2x128xf32> to vector<2x32xf32>
    %287 = math.tanh %286 : vector<2x32xf32>
    %288 = vector.extract_strided_slice %273 {offsets = [0, 96], sizes = [2, 32], strides = [1, 1]} : vector<2x128xf32> to vector<2x32xf32>
    %289 = arith.negf %288 : vector<2x32xf32>
    %290 = math.exp %289 : vector<2x32xf32>
    %cst_65 = arith.constant 1.000000e+00 : f32
    %291 = vector.broadcast %cst_65 : f32 to vector<2x32xf32>
    %292 = arith.addf %291, %290 : vector<2x32xf32>
    %293 = arith.divf %291, %292 : vector<2x32xf32>
    %294 = arith.mulf %285, %264 : vector<2x32xf32>
    %295 = arith.mulf %279, %287 : vector<2x32xf32>
    %296 = arith.addf %294, %295 : vector<2x32xf32>
    %297 = math.tanh %296 : vector<2x32xf32>
    %298 = arith.mulf %293, %297 : vector<2x32xf32>
    %c0_66 = arith.constant 0 : index
    %c8 = arith.constant 8 : index
    %c0_67 = arith.constant 0 : index
    %299 = vector.load %arg6[%c0_66, %c8, %c0_67] : memref<2x16x32xf32, #tpu.memory_space<vmem>>, vector<2x1x32xf32>
    %300 = vector.shape_cast %299 : vector<2x1x32xf32> to vector<2x32xf32>
    %301 = vector.shape_cast %298 : vector<2x32xf32> to vector<2x1x32xf32>
    tpu.vector_store %arg6[%c0_66, %c8, %c0_67], %301 {strides = array<i32>} : memref<2x16x32xf32, #tpu.memory_space<vmem>>, vector<2x1x32xf32>,
    %302 = vector.extract_strided_slice %10 {offsets = [0, 9, 0], sizes = [2, 1, 128], strides = [1, 1, 1]} : vector<2x16x128xf32> to vector<2x1x128xf32>
    %303 = vector.shape_cast %302 : vector<2x1x128xf32> to vector<2x128xf32>
    %cst_68 = arith.constant dense<0.000000e+00> : vector<2x128xf32>
    %304 = tpu.matmul %298, %11, %cst_68 {dimension_numbers = #tpu.dot_dimension_numbers<[1], [0], [0], [1], [0, 0, 1, 1], [], []>} : vector<2x32xf32>, vector<32x128xf32>, vector<2x128xf32> -> vector<2x128xf32>
    %305 = arith.addf %303, %304 : vector<2x128xf32>
    %306 = vector.extract_strided_slice %305 {offsets = [0, 0], sizes = [2, 32], strides = [1, 1]} : vector<2x128xf32> to vector<2x32xf32>
    %307 = arith.negf %306 : vector<2x32xf32>
    %308 = math.exp %307 : vector<2x32xf32>
    %cst_69 = arith.constant 1.000000e+00 : f32
    %309 = vector.broadcast %cst_69 : f32 to vector<2x32xf32>
    %310 = arith.addf %309, %308 : vector<2x32xf32>
    %311 = arith.divf %309, %310 : vector<2x32xf32>
    %312 = vector.extract_strided_slice %305 {offsets = [0, 32], sizes = [2, 32], strides = [1, 1]} : vector<2x128xf32> to vector<2x32xf32>
    %313 = arith.negf %312 : vector<2x32xf32>
    %314 = math.exp %313 : vector<2x32xf32>
    %cst_70 = arith.constant 1.000000e+00 : f32
    %315 = vector.broadcast %cst_70 : f32 to vector<2x32xf32>
    %316 = arith.addf %315, %314 : vector<2x32xf32>
    %317 = arith.divf %315, %316 : vector<2x32xf32>
    %318 = vector.extract_strided_slice %305 {offsets = [0, 64], sizes = [2, 32], strides = [1, 1]} : vector<2x128xf32> to vector<2x32xf32>
    %319 = math.tanh %318 : vector<2x32xf32>
    %320 = vector.extract_strided_slice %305 {offsets = [0, 96], sizes = [2, 32], strides = [1, 1]} : vector<2x128xf32> to vector<2x32xf32>
    %321 = arith.negf %320 : vector<2x32xf32>
    %322 = math.exp %321 : vector<2x32xf32>
    %cst_71 = arith.constant 1.000000e+00 : f32
    %323 = vector.broadcast %cst_71 : f32 to vector<2x32xf32>
    %324 = arith.addf %323, %322 : vector<2x32xf32>
    %325 = arith.divf %323, %324 : vector<2x32xf32>
    %326 = arith.mulf %317, %296 : vector<2x32xf32>
    %327 = arith.mulf %311, %319 : vector<2x32xf32>
    %328 = arith.addf %326, %327 : vector<2x32xf32>
    %329 = math.tanh %328 : vector<2x32xf32>
    %330 = arith.mulf %325, %329 : vector<2x32xf32>
    %c0_72 = arith.constant 0 : index
    %c9 = arith.constant 9 : index
    %c0_73 = arith.constant 0 : index
    %331 = vector.load %arg6[%c0_72, %c9, %c0_73] : memref<2x16x32xf32, #tpu.memory_space<vmem>>, vector<2x1x32xf32>
    %332 = vector.shape_cast %331 : vector<2x1x32xf32> to vector<2x32xf32>
    %333 = vector.shape_cast %330 : vector<2x32xf32> to vector<2x1x32xf32>
    tpu.vector_store %arg6[%c0_72, %c9, %c0_73], %333 {strides = array<i32>} : memref<2x16x32xf32, #tpu.memory_space<vmem>>, vector<2x1x32xf32>,
    %334 = vector.extract_strided_slice %10 {offsets = [0, 10, 0], sizes = [2, 1, 128], strides = [1, 1, 1]} : vector<2x16x128xf32> to vector<2x1x128xf32>
    %335 = vector.shape_cast %334 : vector<2x1x128xf32> to vector<2x128xf32>
    %cst_74 = arith.constant dense<0.000000e+00> : vector<2x128xf32>
    %336 = tpu.matmul %330, %11, %cst_74 {dimension_numbers = #tpu.dot_dimension_numbers<[1], [0], [0], [1], [0, 0, 1, 1], [], []>} : vector<2x32xf32>, vector<32x128xf32>, vector<2x128xf32> -> vector<2x128xf32>
    %337 = arith.addf %335, %336 : vector<2x128xf32>
    %338 = vector.extract_strided_slice %337 {offsets = [0, 0], sizes = [2, 32], strides = [1, 1]} : vector<2x128xf32> to vector<2x32xf32>
    %339 = arith.negf %338 : vector<2x32xf32>
    %340 = math.exp %339 : vector<2x32xf32>
    %cst_75 = arith.constant 1.000000e+00 : f32
    %341 = vector.broadcast %cst_75 : f32 to vector<2x32xf32>
    %342 = arith.addf %341, %340 : vector<2x32xf32>
    %343 = arith.divf %341, %342 : vector<2x32xf32>
    %344 = vector.extract_strided_slice %337 {offsets = [0, 32], sizes = [2, 32], strides = [1, 1]} : vector<2x128xf32> to vector<2x32xf32>
    %345 = arith.negf %344 : vector<2x32xf32>
    %346 = math.exp %345 : vector<2x32xf32>
    %cst_76 = arith.constant 1.000000e+00 : f32
    %347 = vector.broadcast %cst_76 : f32 to vector<2x32xf32>
    %348 = arith.addf %347, %346 : vector<2x32xf32>
    %349 = arith.divf %347, %348 : vector<2x32xf32>
    %350 = vector.extract_strided_slice %337 {offsets = [0, 64], sizes = [2, 32], strides = [1, 1]} : vector<2x128xf32> to vector<2x32xf32>
    %351 = math.tanh %350 : vector<2x32xf32>
    %352 = vector.extract_strided_slice %337 {offsets = [0, 96], sizes = [2, 32], strides = [1, 1]} : vector<2x128xf32> to vector<2x32xf32>
    %353 = arith.negf %352 : vector<2x32xf32>
    %354 = math.exp %353 : vector<2x32xf32>
    %cst_77 = arith.constant 1.000000e+00 : f32
    %355 = vector.broadcast %cst_77 : f32 to vector<2x32xf32>
    %356 = arith.addf %355, %354 : vector<2x32xf32>
    %357 = arith.divf %355, %356 : vector<2x32xf32>
    %358 = arith.mulf %349, %328 : vector<2x32xf32>
    %359 = arith.mulf %343, %351 : vector<2x32xf32>
    %360 = arith.addf %358, %359 : vector<2x32xf32>
    %361 = math.tanh %360 : vector<2x32xf32>
    %362 = arith.mulf %357, %361 : vector<2x32xf32>
    %c0_78 = arith.constant 0 : index
    %c10 = arith.constant 10 : index
    %c0_79 = arith.constant 0 : index
    %363 = vector.load %arg6[%c0_78, %c10, %c0_79] : memref<2x16x32xf32, #tpu.memory_space<vmem>>, vector<2x1x32xf32>
    %364 = vector.shape_cast %363 : vector<2x1x32xf32> to vector<2x32xf32>
    %365 = vector.shape_cast %362 : vector<2x32xf32> to vector<2x1x32xf32>
    tpu.vector_store %arg6[%c0_78, %c10, %c0_79], %365 {strides = array<i32>} : memref<2x16x32xf32, #tpu.memory_space<vmem>>, vector<2x1x32xf32>,
    %366 = vector.extract_strided_slice %10 {offsets = [0, 11, 0], sizes = [2, 1, 128], strides = [1, 1, 1]} : vector<2x16x128xf32> to vector<2x1x128xf32>
    %367 = vector.shape_cast %366 : vector<2x1x128xf32> to vector<2x128xf32>
    %cst_80 = arith.constant dense<0.000000e+00> : vector<2x128xf32>
    %368 = tpu.matmul %362, %11, %cst_80 {dimension_numbers = #tpu.dot_dimension_numbers<[1], [0], [0], [1], [0, 0, 1, 1], [], []>} : vector<2x32xf32>, vector<32x128xf32>, vector<2x128xf32> -> vector<2x128xf32>
    %369 = arith.addf %367, %368 : vector<2x128xf32>
    %370 = vector.extract_strided_slice %369 {offsets = [0, 0], sizes = [2, 32], strides = [1, 1]} : vector<2x128xf32> to vector<2x32xf32>
    %371 = arith.negf %370 : vector<2x32xf32>
    %372 = math.exp %371 : vector<2x32xf32>
    %cst_81 = arith.constant 1.000000e+00 : f32
    %373 = vector.broadcast %cst_81 : f32 to vector<2x32xf32>
    %374 = arith.addf %373, %372 : vector<2x32xf32>
    %375 = arith.divf %373, %374 : vector<2x32xf32>
    %376 = vector.extract_strided_slice %369 {offsets = [0, 32], sizes = [2, 32], strides = [1, 1]} : vector<2x128xf32> to vector<2x32xf32>
    %377 = arith.negf %376 : vector<2x32xf32>
    %378 = math.exp %377 : vector<2x32xf32>
    %cst_82 = arith.constant 1.000000e+00 : f32
    %379 = vector.broadcast %cst_82 : f32 to vector<2x32xf32>
    %380 = arith.addf %379, %378 : vector<2x32xf32>
    %381 = arith.divf %379, %380 : vector<2x32xf32>
    %382 = vector.extract_strided_slice %369 {offsets = [0, 64], sizes = [2, 32], strides = [1, 1]} : vector<2x128xf32> to vector<2x32xf32>
    %383 = math.tanh %382 : vector<2x32xf32>
    %384 = vector.extract_strided_slice %369 {offsets = [0, 96], sizes = [2, 32], strides = [1, 1]} : vector<2x128xf32> to vector<2x32xf32>
    %385 = arith.negf %384 : vector<2x32xf32>
    %386 = math.exp %385 : vector<2x32xf32>
    %cst_83 = arith.constant 1.000000e+00 : f32
    %387 = vector.broadcast %cst_83 : f32 to vector<2x32xf32>
    %388 = arith.addf %387, %386 : vector<2x32xf32>
    %389 = arith.divf %387, %388 : vector<2x32xf32>
    %390 = arith.mulf %381, %360 : vector<2x32xf32>
    %391 = arith.mulf %375, %383 : vector<2x32xf32>
    %392 = arith.addf %390, %391 : vector<2x32xf32>
    %393 = math.tanh %392 : vector<2x32xf32>
    %394 = arith.mulf %389, %393 : vector<2x32xf32>
    %c0_84 = arith.constant 0 : index
    %c11 = arith.constant 11 : index
    %c0_85 = arith.constant 0 : index
    %395 = vector.load %arg6[%c0_84, %c11, %c0_85] : memref<2x16x32xf32, #tpu.memory_space<vmem>>, vector<2x1x32xf32>
    %396 = vector.shape_cast %395 : vector<2x1x32xf32> to vector<2x32xf32>
    %397 = vector.shape_cast %394 : vector<2x32xf32> to vector<2x1x32xf32>
    tpu.vector_store %arg6[%c0_84, %c11, %c0_85], %397 {strides = array<i32>} : memref<2x16x32xf32, #tpu.memory_space<vmem>>, vector<2x1x32xf32>,
    %398 = vector.extract_strided_slice %10 {offsets = [0, 12, 0], sizes = [2, 1, 128], strides = [1, 1, 1]} : vector<2x16x128xf32> to vector<2x1x128xf32>
    %399 = vector.shape_cast %398 : vector<2x1x128xf32> to vector<2x128xf32>
    %cst_86 = arith.constant dense<0.000000e+00> : vector<2x128xf32>
    %400 = tpu.matmul %394, %11, %cst_86 {dimension_numbers = #tpu.dot_dimension_numbers<[1], [0], [0], [1], [0, 0, 1, 1], [], []>} : vector<2x32xf32>, vector<32x128xf32>, vector<2x128xf32> -> vector<2x128xf32>
    %401 = arith.addf %399, %400 : vector<2x128xf32>
    %402 = vector.extract_strided_slice %401 {offsets = [0, 0], sizes = [2, 32], strides = [1, 1]} : vector<2x128xf32> to vector<2x32xf32>
    %403 = arith.negf %402 : vector<2x32xf32>
    %404 = math.exp %403 : vector<2x32xf32>
    %cst_87 = arith.constant 1.000000e+00 : f32
    %405 = vector.broadcast %cst_87 : f32 to vector<2x32xf32>
    %406 = arith.addf %405, %404 : vector<2x32xf32>
    %407 = arith.divf %405, %406 : vector<2x32xf32>
    %408 = vector.extract_strided_slice %401 {offsets = [0, 32], sizes = [2, 32], strides = [1, 1]} : vector<2x128xf32> to vector<2x32xf32>
    %409 = arith.negf %408 : vector<2x32xf32>
    %410 = math.exp %409 : vector<2x32xf32>
    %cst_88 = arith.constant 1.000000e+00 : f32
    %411 = vector.broadcast %cst_88 : f32 to vector<2x32xf32>
    %412 = arith.addf %411, %410 : vector<2x32xf32>
    %413 = arith.divf %411, %412 : vector<2x32xf32>
    %414 = vector.extract_strided_slice %401 {offsets = [0, 64], sizes = [2, 32], strides = [1, 1]} : vector<2x128xf32> to vector<2x32xf32>
    %415 = math.tanh %414 : vector<2x32xf32>
    %416 = vector.extract_strided_slice %401 {offsets = [0, 96], sizes = [2, 32], strides = [1, 1]} : vector<2x128xf32> to vector<2x32xf32>
    %417 = arith.negf %416 : vector<2x32xf32>
    %418 = math.exp %417 : vector<2x32xf32>
    %cst_89 = arith.constant 1.000000e+00 : f32
    %419 = vector.broadcast %cst_89 : f32 to vector<2x32xf32>
    %420 = arith.addf %419, %418 : vector<2x32xf32>
    %421 = arith.divf %419, %420 : vector<2x32xf32>
    %422 = arith.mulf %413, %392 : vector<2x32xf32>
    %423 = arith.mulf %407, %415 : vector<2x32xf32>
    %424 = arith.addf %422, %423 : vector<2x32xf32>
    %425 = math.tanh %424 : vector<2x32xf32>
    %426 = arith.mulf %421, %425 : vector<2x32xf32>
    %c0_90 = arith.constant 0 : index
    %c12 = arith.constant 12 : index
    %c0_91 = arith.constant 0 : index
    %427 = vector.load %arg6[%c0_90, %c12, %c0_91] : memref<2x16x32xf32, #tpu.memory_space<vmem>>, vector<2x1x32xf32>
    %428 = vector.shape_cast %427 : vector<2x1x32xf32> to vector<2x32xf32>
    %429 = vector.shape_cast %426 : vector<2x32xf32> to vector<2x1x32xf32>
    tpu.vector_store %arg6[%c0_90, %c12, %c0_91], %429 {strides = array<i32>} : memref<2x16x32xf32, #tpu.memory_space<vmem>>, vector<2x1x32xf32>,
    %430 = vector.extract_strided_slice %10 {offsets = [0, 13, 0], sizes = [2, 1, 128], strides = [1, 1, 1]} : vector<2x16x128xf32> to vector<2x1x128xf32>
    %431 = vector.shape_cast %430 : vector<2x1x128xf32> to vector<2x128xf32>
    %cst_92 = arith.constant dense<0.000000e+00> : vector<2x128xf32>
    %432 = tpu.matmul %426, %11, %cst_92 {dimension_numbers = #tpu.dot_dimension_numbers<[1], [0], [0], [1], [0, 0, 1, 1], [], []>} : vector<2x32xf32>, vector<32x128xf32>, vector<2x128xf32> -> vector<2x128xf32>
    %433 = arith.addf %431, %432 : vector<2x128xf32>
    %434 = vector.extract_strided_slice %433 {offsets = [0, 0], sizes = [2, 32], strides = [1, 1]} : vector<2x128xf32> to vector<2x32xf32>
    %435 = arith.negf %434 : vector<2x32xf32>
    %436 = math.exp %435 : vector<2x32xf32>
    %cst_93 = arith.constant 1.000000e+00 : f32
    %437 = vector.broadcast %cst_93 : f32 to vector<2x32xf32>
    %438 = arith.addf %437, %436 : vector<2x32xf32>
    %439 = arith.divf %437, %438 : vector<2x32xf32>
    %440 = vector.extract_strided_slice %433 {offsets = [0, 32], sizes = [2, 32], strides = [1, 1]} : vector<2x128xf32> to vector<2x32xf32>
    %441 = arith.negf %440 : vector<2x32xf32>
    %442 = math.exp %441 : vector<2x32xf32>
    %cst_94 = arith.constant 1.000000e+00 : f32
    %443 = vector.broadcast %cst_94 : f32 to vector<2x32xf32>
    %444 = arith.addf %443, %442 : vector<2x32xf32>
    %445 = arith.divf %443, %444 : vector<2x32xf32>
    %446 = vector.extract_strided_slice %433 {offsets = [0, 64], sizes = [2, 32], strides = [1, 1]} : vector<2x128xf32> to vector<2x32xf32>
    %447 = math.tanh %446 : vector<2x32xf32>
    %448 = vector.extract_strided_slice %433 {offsets = [0, 96], sizes = [2, 32], strides = [1, 1]} : vector<2x128xf32> to vector<2x32xf32>
    %449 = arith.negf %448 : vector<2x32xf32>
    %450 = math.exp %449 : vector<2x32xf32>
    %cst_95 = arith.constant 1.000000e+00 : f32
    %451 = vector.broadcast %cst_95 : f32 to vector<2x32xf32>
    %452 = arith.addf %451, %450 : vector<2x32xf32>
    %453 = arith.divf %451, %452 : vector<2x32xf32>
    %454 = arith.mulf %445, %424 : vector<2x32xf32>
    %455 = arith.mulf %439, %447 : vector<2x32xf32>
    %456 = arith.addf %454, %455 : vector<2x32xf32>
    %457 = math.tanh %456 : vector<2x32xf32>
    %458 = arith.mulf %453, %457 : vector<2x32xf32>
    %c0_96 = arith.constant 0 : index
    %c13 = arith.constant 13 : index
    %c0_97 = arith.constant 0 : index
    %459 = vector.load %arg6[%c0_96, %c13, %c0_97] : memref<2x16x32xf32, #tpu.memory_space<vmem>>, vector<2x1x32xf32>
    %460 = vector.shape_cast %459 : vector<2x1x32xf32> to vector<2x32xf32>
    %461 = vector.shape_cast %458 : vector<2x32xf32> to vector<2x1x32xf32>
    tpu.vector_store %arg6[%c0_96, %c13, %c0_97], %461 {strides = array<i32>} : memref<2x16x32xf32, #tpu.memory_space<vmem>>, vector<2x1x32xf32>,
    %462 = vector.extract_strided_slice %10 {offsets = [0, 14, 0], sizes = [2, 1, 128], strides = [1, 1, 1]} : vector<2x16x128xf32> to vector<2x1x128xf32>
    %463 = vector.shape_cast %462 : vector<2x1x128xf32> to vector<2x128xf32>
    %cst_98 = arith.constant dense<0.000000e+00> : vector<2x128xf32>
    %464 = tpu.matmul %458, %11, %cst_98 {dimension_numbers = #tpu.dot_dimension_numbers<[1], [0], [0], [1], [0, 0, 1, 1], [], []>} : vector<2x32xf32>, vector<32x128xf32>, vector<2x128xf32> -> vector<2x128xf32>
    %465 = arith.addf %463, %464 : vector<2x128xf32>
    %466 = vector.extract_strided_slice %465 {offsets = [0, 0], sizes = [2, 32], strides = [1, 1]} : vector<2x128xf32> to vector<2x32xf32>
    %467 = arith.negf %466 : vector<2x32xf32>
    %468 = math.exp %467 : vector<2x32xf32>
    %cst_99 = arith.constant 1.000000e+00 : f32
    %469 = vector.broadcast %cst_99 : f32 to vector<2x32xf32>
    %470 = arith.addf %469, %468 : vector<2x32xf32>
    %471 = arith.divf %469, %470 : vector<2x32xf32>
    %472 = vector.extract_strided_slice %465 {offsets = [0, 32], sizes = [2, 32], strides = [1, 1]} : vector<2x128xf32> to vector<2x32xf32>
    %473 = arith.negf %472 : vector<2x32xf32>
    %474 = math.exp %473 : vector<2x32xf32>
    %cst_100 = arith.constant 1.000000e+00 : f32
    %475 = vector.broadcast %cst_100 : f32 to vector<2x32xf32>
    %476 = arith.addf %475, %474 : vector<2x32xf32>
    %477 = arith.divf %475, %476 : vector<2x32xf32>
    %478 = vector.extract_strided_slice %465 {offsets = [0, 64], sizes = [2, 32], strides = [1, 1]} : vector<2x128xf32> to vector<2x32xf32>
    %479 = math.tanh %478 : vector<2x32xf32>
    %480 = vector.extract_strided_slice %465 {offsets = [0, 96], sizes = [2, 32], strides = [1, 1]} : vector<2x128xf32> to vector<2x32xf32>
    %481 = arith.negf %480 : vector<2x32xf32>
    %482 = math.exp %481 : vector<2x32xf32>
    %cst_101 = arith.constant 1.000000e+00 : f32
    %483 = vector.broadcast %cst_101 : f32 to vector<2x32xf32>
    %484 = arith.addf %483, %482 : vector<2x32xf32>
    %485 = arith.divf %483, %484 : vector<2x32xf32>
    %486 = arith.mulf %477, %456 : vector<2x32xf32>
    %487 = arith.mulf %471, %479 : vector<2x32xf32>
    %488 = arith.addf %486, %487 : vector<2x32xf32>
    %489 = math.tanh %488 : vector<2x32xf32>
    %490 = arith.mulf %485, %489 : vector<2x32xf32>
    %c0_102 = arith.constant 0 : index
    %c14 = arith.constant 14 : index
    %c0_103 = arith.constant 0 : index
    %491 = vector.load %arg6[%c0_102, %c14, %c0_103] : memref<2x16x32xf32, #tpu.memory_space<vmem>>, vector<2x1x32xf32>
    %492 = vector.shape_cast %491 : vector<2x1x32xf32> to vector<2x32xf32>
    %493 = vector.shape_cast %490 : vector<2x32xf32> to vector<2x1x32xf32>
    tpu.vector_store %arg6[%c0_102, %c14, %c0_103], %493 {strides = array<i32>} : memref<2x16x32xf32, #tpu.memory_space<vmem>>, vector<2x1x32xf32>,
    %494 = vector.extract_strided_slice %10 {offsets = [0, 15, 0], sizes = [2, 1, 128], strides = [1, 1, 1]} : vector<2x16x128xf32> to vector<2x1x128xf32>
    %495 = vector.shape_cast %494 : vector<2x1x128xf32> to vector<2x128xf32>
    %cst_104 = arith.constant dense<0.000000e+00> : vector<2x128xf32>
    %496 = tpu.matmul %490, %11, %cst_104 {dimension_numbers = #tpu.dot_dimension_numbers<[1], [0], [0], [1], [0, 0, 1, 1], [], []>} : vector<2x32xf32>, vector<32x128xf32>, vector<2x128xf32> -> vector<2x128xf32>
    %497 = arith.addf %495, %496 : vector<2x128xf32>
    %498 = vector.extract_strided_slice %497 {offsets = [0, 0], sizes = [2, 32], strides = [1, 1]} : vector<2x128xf32> to vector<2x32xf32>
    %499 = arith.negf %498 : vector<2x32xf32>
    %500 = math.exp %499 : vector<2x32xf32>
    %cst_105 = arith.constant 1.000000e+00 : f32
    %501 = vector.broadcast %cst_105 : f32 to vector<2x32xf32>
    %502 = arith.addf %501, %500 : vector<2x32xf32>
    %503 = arith.divf %501, %502 : vector<2x32xf32>
    %504 = vector.extract_strided_slice %497 {offsets = [0, 32], sizes = [2, 32], strides = [1, 1]} : vector<2x128xf32> to vector<2x32xf32>
    %505 = arith.negf %504 : vector<2x32xf32>
    %506 = math.exp %505 : vector<2x32xf32>
    %cst_106 = arith.constant 1.000000e+00 : f32
    %507 = vector.broadcast %cst_106 : f32 to vector<2x32xf32>
    %508 = arith.addf %507, %506 : vector<2x32xf32>
    %509 = arith.divf %507, %508 : vector<2x32xf32>
    %510 = vector.extract_strided_slice %497 {offsets = [0, 64], sizes = [2, 32], strides = [1, 1]} : vector<2x128xf32> to vector<2x32xf32>
    %511 = math.tanh %510 : vector<2x32xf32>
    %512 = vector.extract_strided_slice %497 {offsets = [0, 96], sizes = [2, 32], strides = [1, 1]} : vector<2x128xf32> to vector<2x32xf32>
    %513 = arith.negf %512 : vector<2x32xf32>
    %514 = math.exp %513 : vector<2x32xf32>
    %cst_107 = arith.constant 1.000000e+00 : f32
    %515 = vector.broadcast %cst_107 : f32 to vector<2x32xf32>
    %516 = arith.addf %515, %514 : vector<2x32xf32>
    %517 = arith.divf %515, %516 : vector<2x32xf32>
    %518 = arith.mulf %509, %488 : vector<2x32xf32>
    %519 = arith.mulf %503, %511 : vector<2x32xf32>
    %520 = arith.addf %518, %519 : vector<2x32xf32>
    %521 = math.tanh %520 : vector<2x32xf32>
    %522 = arith.mulf %517, %521 : vector<2x32xf32>
    %c0_108 = arith.constant 0 : index
    %c15 = arith.constant 15 : index
    %c0_109 = arith.constant 0 : index
    %523 = vector.load %arg6[%c0_108, %c15, %c0_109] : memref<2x16x32xf32, #tpu.memory_space<vmem>>, vector<2x1x32xf32>
    %524 = vector.shape_cast %523 : vector<2x1x32xf32> to vector<2x32xf32>
    %525 = vector.shape_cast %522 : vector<2x32xf32> to vector<2x1x32xf32>
    tpu.vector_store %arg6[%c0_108, %c15, %c0_109], %525 {strides = array<i32>} : memref<2x16x32xf32, #tpu.memory_space<vmem>>, vector<2x1x32xf32>,
    %c0_110 = arith.constant 0 : index
    %c0_111 = arith.constant 0 : index
    %526 = vector.load %arg9[%c0_110, %c0_111] : memref<2x32xf32, #tpu.memory_space<vmem>>, vector<2x32xf32>
    tpu.vector_store %arg9[%c0_110, %c0_111], %522 {strides = array<i32>} : memref<2x32xf32, #tpu.memory_space<vmem>>, vector<2x32xf32>,
    %c0_112 = arith.constant 0 : index
    %c0_113 = arith.constant 0 : index
    %527 = vector.load %arg10[%c0_112, %c0_113] : memref<2x32xf32, #tpu.memory_space<vmem>>, vector<2x32xf32>
    tpu.vector_store %arg10[%c0_112, %c0_113], %520 {strides = array<i32>} : memref<2x32xf32, #tpu.memory_space<vmem>>, vector<2x32xf32>,
    %c0_i32_114 = arith.constant 0 : i32
    %528 = arith.cmpi eq, %arg1, %c0_i32_114 : i32
    %529 = arith.extui %528 : i1 to i32
    %c0_i32_115 = arith.constant 0 : i32
    %530 = arith.cmpi ne, %529, %c0_i32_115 : i32
    scf.if %530 {
      %c0_116 = arith.constant 0 : index
      %c0_117 = arith.constant 0 : index
      %531 = vector.load %arg7[%c0_116, %c0_117] : memref<2x32xf32, #tpu.memory_space<vmem>>, vector<2x32xf32>
      tpu.vector_store %arg7[%c0_116, %c0_117], %522 {strides = array<i32>} : memref<2x32xf32, #tpu.memory_space<vmem>>, vector<2x32xf32>,
      %c0_118 = arith.constant 0 : index
      %c0_119 = arith.constant 0 : index
      %532 = vector.load %arg8[%c0_118, %c0_119] : memref<2x32xf32, #tpu.memory_space<vmem>>, vector<2x32xf32>
      tpu.vector_store %arg8[%c0_118, %c0_119], %520 {strides = array<i32>} : memref<2x32xf32, #tpu.memory_space<vmem>>, vector<2x32xf32>,
    } else {
    }
    return
  }
  func.func @transform_0(%arg0: i32, %arg1: i32) -> (i32, i32, i32) {
    %c0_i32 = arith.constant 0 : i32
    %c0_i32_0 = arith.constant 0 : i32
    return %arg0, %arg1, %c0_i32 : i32, i32, i32
  }
  func.func @transform_1(%arg0: i32, %arg1: i32) -> (i32, i32) {
    %c0_i32 = arith.constant 0 : i32
    %c0_i32_0 = arith.constant 0 : i32
    %c0_i32_1 = arith.constant 0 : i32
    return %c0_i32, %c0_i32_0 : i32, i32
  }
  func.func @transform_2(%arg0: i32, %arg1: i32) -> (i32, i32) {
    %c0_i32 = arith.constant 0 : i32
    %c0_i32_0 = arith.constant 0 : i32
    %c0_i32_1 = arith.constant 0 : i32
    return %c0_i32, %c0_i32_0 : i32, i32
  }
  func.func @transform_3(%arg0: i32, %arg1: i32) -> (i32, i32) {
    %c0_i32 = arith.constant 0 : i32
    %c0_i32_0 = arith.constant 0 : i32
    %c0_i32_1 = arith.constant 0 : i32
    return %c0_i32, %c0_i32_0 : i32, i32
  }
  func.func @transform_4(%arg0: i32, %arg1: i32) -> (i32, i32, i32) {
    %c0_i32 = arith.constant 0 : i32
    %c0_i32_0 = arith.constant 0 : i32
    return %arg0, %arg1, %c0_i32 : i32, i32, i32
  }
  func.func @transform_5(%arg0: i32, %arg1: i32) -> (i32, i32) {
    %c0_i32 = arith.constant 0 : i32
    %c0_i32_0 = arith.constant 0 : i32
    return %arg0, %c0_i32 : i32, i32
  }
  func.func @transform_6(%arg0: i32, %arg1: i32) -> (i32, i32) {
    %c0_i32 = arith.constant 0 : i32
    %c0_i32_0 = arith.constant 0 : i32
    return %arg0, %c0_i32 : i32, i32
  }
}

</mosaic_0001>

<llo_original>
// kernel: tpu_custom_call.1
$region0: #{tpu_custom_call.1}
  #allocation0 [shape = 'u32[]', space=smem, size = 0x4, offset = 0x4, fixed_abs, tag = 'smem constant byte address 0x4 - core index']
  #allocation1 [shape = 'u32[144,128]{1,0:T(1,128)}', space=vmem, size = 0x12000, scoped, tag = 'internal scratch']
  #allocation2 [shape = 'f32[2,32]{1,0:T(2,128)}', space=vmem, size = 0x400, scoped, tag = 'scratch operand']
  #allocation3 [shape = 'f32[2,32]{1,0:T(2,128)}', space=vmem, size = 0x400, scoped, tag = 'scratch operand']
  %s0 = inlined_call_operand.hbm [shape: f32[2,16,16], index: 0, kind: input, shape index: {}]
  %s1 = inlined_call_operand.hbm [shape: f32[16,128], index: 1, kind: input, shape index: {}]
  %s2 = inlined_call_operand.hbm [shape: f32[32,128], index: 2, kind: input, shape index: {}]
  %s3 = inlined_call_operand.vmem [shape: f32[1,128], index: 3, kind: input, shape index: {}]
  %s4 = inlined_call_operand.hbm [shape: f32[2,16,32], index: 4, kind: output, shape index: {0}]
  %s5 = inlined_call_operand.hbm [shape: f32[2,32], index: 5, kind: output, shape index: {1}]
  %s6 = inlined_call_operand.hbm [shape: f32[2,32], index: 6, kind: output, shape index: {2}]
  %7 = xla_tuple %s4, %s5, %s6
  %s8 = sld [smem:[#allocation0]]
  $region62: #{tpu_custom_call.1} parent=0
    _
  %s10 = ssub.s32 1, %s8
  %s11 = scalar_select 0, %s10, %s8
  $region1: #{tpu_custom_call.1} parent=0
    #allocation4 [shape = 'u8[16384]{0}', space=vmem, size = 0x4000, scoped, tag = 'input window, operand 0, single buffered']
    #allocation5 [shape = 's32[1]{0}', space=sflag, size = 0x4, scoped, tag = 'scoped memory for tpu_custom_call.1']
    #allocation6 [shape = 's32[1]{0}', space=sflag, size = 0x4, scoped, tag = 'scoped memory for tpu_custom_call.1']
    #allocation7 [shape = 'u8[8192]{0}', space=vmem, size = 0x2000, scoped, tag = 'input window, operand 1, single buffered']
    #allocation8 [shape = 's32[1]{0}', space=sflag, size = 0x4, scoped, tag = 'scoped memory for tpu_custom_call.1']
    #allocation9 [shape = 'u8[16384]{0}', space=vmem, size = 0x4000, scoped, tag = 'input window, operand 2, single buffered']
    #allocation10 [shape = 'u8[16384]{0}', space=vmem, size = 0x4000, scoped, tag = 'output window, operand 0, single buffered']
    #allocation11 [shape = 'u8[1024]{0}', space=vmem, size = 0x400, scoped, tag = 'output window, operand 1, single buffered']
    #allocation12 [shape = 's32[1]{0}', space=sflag, size = 0x4, scoped, tag = 'scoped memory for tpu_custom_call.1']
    #allocation13 [shape = 'u8[1024]{0}', space=vmem, size = 0x400, scoped, tag = 'output window, operand 2, single buffered']
    %12 = vsyncpa [#allocation5], 0
    %13 = vsyncpa [#allocation8], 0
    %14 = vsyncpa [#allocation6], 0
    %15 = vsyncpa [#allocation12], 0
    // Predicated region
    $region2: #{tpu_custom_call.1} parent=1 // pred_check
      _
    $region3: #{tpu_custom_call.1} parent=1 // pred_check_branch
      %17 = sbr.rel (0) target = $region5
    $region4: #{tpu_custom_call.1} parent=1 // pred_region
      %s19 = ssub.s32 512, 512
      %20 = vsyncadd [#allocation5], %s19
      %s21 = sshll.u32 [#allocation4], 4
      %s22 = int_to_ptr.vmem [resolvable:$true] %s21
      %27 = dma.hbm_to_vmem [thread:$0]  %s0, 512, %s22, [#allocation5], 128, 128, 8
    $region5: #{tpu_custom_call.1} parent=1 // pred_fallthru
      _
    // Predicated region
    $region6: #{tpu_custom_call.1} parent=1 // pred_check
      _
    $region7: #{tpu_custom_call.1} parent=1 // pred_check_branch
      %29 = sbr.rel (0) target = $region9
    $region8: #{tpu_custom_call.1} parent=1 // pred_region
      %s31 = ssub.s32 256, 256
      %32 = vsyncadd [#allocation8], %s31
      %s33 = sshll.u32 [#allocation7], 4
      %s34 = int_to_ptr.vmem [resolvable:$true] %s33
      %39 = dma.hbm_to_vmem [thread:$0]  %s1, 256, %s34, [#allocation8], 128, 128, 8
    $region9: #{tpu_custom_call.1} parent=1 // pred_fallthru
      _
    // Predicated region
    $region10: #{tpu_custom_call.1} parent=1 // pred_check
      _
    $region11: #{tpu_custom_call.1} parent=1 // pred_check_branch
      %41 = sbr.rel (0) target = $region13
    $region12: #{tpu_custom_call.1} parent=1 // pred_region
      %s43 = ssub.s32 512, 512
      %44 = vsyncadd [#allocation8], %s43
      %s45 = sshll.u32 [#allocation9], 4
      %s46 = int_to_ptr.vmem [resolvable:$true] %s45
      %51 = dma.hbm_to_vmem [thread:$0]  %s2, 512, %s46, [#allocation8], 128, 128, 8
    $region13: #{tpu_custom_call.1} parent=1 // pred_fallthru
      _
    // Predicated region
    $region14: #{tpu_custom_call.1} parent=1 // pred_check
      _
    $region15: #{tpu_custom_call.1} parent=1 // pred_check_branch
      %53 = sbr.rel (0) target = $region17
    $region16: #{tpu_custom_call.1} parent=1 // pred_region
      _
    $region17: #{tpu_custom_call.1} parent=1 // pred_fallthru
      _
    // Predicated region
    $region18: #{tpu_custom_call.1} parent=1 // pred_check
      _
    $region19: #{tpu_custom_call.1} parent=1 // pred_check_branch
      %55 = sbr.rel (0) target = $region21
    $region20: #{tpu_custom_call.1} parent=1 // pred_region
      %56 = dma.done [#allocation5], 512
    $region21: #{tpu_custom_call.1} parent=1 // pred_fallthru
      _
    // Predicated region
    $region22: #{tpu_custom_call.1} parent=1 // pred_check
      _
    $region23: #{tpu_custom_call.1} parent=1 // pred_check_branch
      %58 = sbr.rel (0) target = $region25
    $region24: #{tpu_custom_call.1} parent=1 // pred_region
      %59 = dma.done [#allocation8], 256
    $region25: #{tpu_custom_call.1} parent=1 // pred_fallthru
      _
    // Predicated region
    $region26: #{tpu_custom_call.1} parent=1 // pred_check
      _
    $region27: #{tpu_custom_call.1} parent=1 // pred_check_branch
      %61 = sbr.rel (0) target = $region29
    $region28: #{tpu_custom_call.1} parent=1 // pred_region
      %62 = dma.done [#allocation8], 512
    $region29: #{tpu_custom_call.1} parent=1 // pred_fallthru
      _
    %p63 = scmp.eq.s32.totalorder 0, 0
    // Predicated region
    $region30: #{tpu_custom_call.1} parent=1 // pred_check
      %p64 = pneg %p63
    $region31: #{tpu_custom_call.1} parent=1 // pred_check_branch
      %66 = sbr.rel (%p64) target = $region33
    $region32: #{tpu_custom_call.1} parent=1 // pred_region
      %vm67 = vcmask 254976
      %68 = vst.msk [vmem:[#allocation2] sm:$0x3] %vm67, 0.0
      %69 = vst.msk [vmem:[#allocation3] sm:$0x3] %vm67, 0.0
    $region33: #{tpu_custom_call.1} parent=1 // pred_fallthru
      _
    %v70 = vld [vmem:[#allocation4] sm:$0xff]
    %v71 = vld [vmem:[#allocation4 + $0x8] sm:$0xff]
    %v72 = vld [vmem:[#allocation4 + $0x10] sm:$0xff]
    %v73 = vld [vmem:[#allocation4 + $0x18] sm:$0xff]
    %v74 = vld [vmem:[#allocation7] sm:$0xff]
    %v75 = vld [vmem:[#allocation7 + $0x8] sm:$0xff]
    %v76 = vld [vmem:[%s3] sm:$0x1]
    %v78 = vlaneseq
    %v79 = vshrl.u32 %v78, 7
    %v80 = vsub.s32 0, %v79
    %v81 = vrot.slane %v76, %v80
    %vm83 = vcmask 130048
    %v85 = vsel %vm83, %v70, 0
    %v88 = vsel %vm83, %v71, 0
    %v91 = vsel %vm83, %v72, 0
    %v94 = vsel %vm83, %v73, 0
    %96 = vmatprep.subr.mxu0 0.0
    %97 = vmatpush1.msra.mxu0 0.0
    %98 = vmatprep.subr.mxu0 0.0
    %99 = vmatpush1.msra.mxu0 0.0
    %100 = vmatprep.subr.mxu0 0.0
    %101 = vmatpush1.msra.mxu0 0.0
    %102 = vmatprep.subr.mxu0 0.0
    %103 = vmatpush1.msra.mxu0 0.0
    %104 = vmatprep.subr.mxu0 0.0
    %105 = vmatpush1.msra.mxu0 0.0
    %106 = vmatprep.subr.mxu0 0.0
    %107 = vmatpush1.msra.mxu0 0.0
    %108 = vmatprep.subr.mxu0 0.0
    %109 = vmatpush1.msra.mxu0 0.0
    %110 = vmatprep.subr.mxu0 0.0
    %111 = vmatpush1.msra.mxu0 0.0
    %112 = vmatprep.subr.mxu0 0.0
    %113 = vmatpush1.msra.mxu0 0.0
    %114 = vmatprep.subr.mxu0 0.0
    %115 = vmatpush1.msra.mxu0 0.0
    %116 = vmatprep.subr.mxu0 0.0
    %117 = vmatpush1.msra.mxu0 0.0
    %118 = vmatprep.subr.mxu0 0.0
    %119 = vmatpush1.msra.mxu0 0.0
    %120 = vmatprep.subr.mxu0 0.0
    %121 = vmatpush1.msra.mxu0 0.0
    %122 = vmatprep.subr.mxu0 0.0
    %123 = vmatpush1.msra.mxu0 0.0
    %124 = vmatprep.subr.mxu0 0.0
    %125 = vmatpush1.msra.mxu0 %v75
    %126 = vmatprep.subr.mxu0 0.0
    %127 = vmatpush1.msra.mxu0 %v74
    %128 = vmatprep.subr.mxu0 0.0
    %129 = vmatpush2.msra.mxu0 0.0
    %130 = vmatprep.subr.mxu0 0.0
    %131 = vmatpush2.msra.mxu0 0.0
    %132 = vmatprep.subr.mxu0 0.0
    %133 = vmatpush2.msra.mxu0 0.0
    %134 = vmatprep.subr.mxu0 0.0
    %135 = vmatpush2.msra.mxu0 0.0
    %136 = vmatprep.subr.mxu0 0.0
    %137 = vmatpush2.msra.mxu0 0.0
    %138 = vmatprep.subr.mxu0 0.0
    %139 = vmatpush2.msra.mxu0 0.0
    %140 = vmatprep.subr.mxu0 0.0
    %141 = vmatpush2.msra.mxu0 0.0
    %142 = vmatprep.subr.mxu0 0.0
    %143 = vmatpush2.msra.mxu0 0.0
    %144 = vmatprep.subr.mxu0 0.0
    %145 = vmatpush2.msra.mxu0 0.0
    %146 = vmatprep.subr.mxu0 0.0
    %147 = vmatpush2.msra.mxu0 0.0
    %148 = vmatprep.subr.mxu0 0.0
    %149 = vmatpush2.msra.mxu0 0.0
    %150 = vmatprep.subr.mxu0 0.0
    %151 = vmatpush2.msra.mxu0 0.0
    %152 = vmatprep.subr.mxu0 0.0
    %153 = vmatpush2.msra.mxu0 0.0
    %154 = vmatprep.subr.mxu0 0.0
    %155 = vmatpush2.msra.mxu0 0.0
    %156 = vmatprep.subr.mxu0 0.0
    %157 = vmatpush2.msra.mxu0 0.0
    %158 = vmatprep.subr.mxu0 0.0
    %159 = vmatpush2.msra.mxu0 0.0
    %160 = vmatprep.mubr.f32.mxu0 0.0
    %161 = vmatmul.mubr.f32.gmra.mxu0 %v85
    %v162 = vpop.f32.mrf.mxu0
    %v163 = vadd.f32 %v81, %v162
    %v164 = vpop.f32.mrf.mxu0
    %165 = vmatprep.mubr.f32.mxu0 0.0
    %166 = vmatmul.mubr.f32.gmra.mxu0 %v88
    %v167 = vpop.f32.mrf.mxu0
    %v168 = vadd.f32 %v81, %v167
    %v169 = vpop.f32.mrf.mxu0
    %170 = vmatprep.mubr.f32.mxu0 0.0
    %171 = vmatmul.mubr.f32.gmra.mxu0 %v91
    %v172 = vpop.f32.mrf.mxu0
    %v173 = vadd.f32 %v81, %v172
    %v174 = vpop.f32.mrf.mxu0
    %175 = vmatprep.mubr.f32.mxu0 0.0
    %176 = vmatmul.mubr.f32.gmra.mxu0 %v94
    %v177 = vpop.f32.mrf.mxu0
    %v178 = vadd.f32 %v81, %v177
    %v179 = vpop.f32.mrf.mxu0
    %180 = vdwg.mxu0
    %v181 = vld [vmem:[#allocation9] sm:$0xff]
    %v182 = vld [vmem:[#allocation9 + $0x8] sm:$0xff]
    %v183 = vld [vmem:[#allocation9 + $0x10] sm:$0xff]
    %v184 = vld [vmem:[#allocation9 + $0x18] sm:$0xff]
    %v185 = vld [vmem:[#allocation2] sm:$0x3]
    %v186 = vld [vmem:[#allocation3] sm:$0x3]
    %vm187 = vcmask 261120
    %v189 = vsel %vm187, %v185, 0
    %191 = vmatprep.subr.mxu0 0.0
    %192 = vmatpush1.msra.mxu0 0.0
    %193 = vmatprep.subr.mxu0 0.0
    %194 = vmatpush1.msra.mxu0 0.0
    %195 = vmatprep.subr.mxu0 0.0
    %196 = vmatpush1.msra.mxu0 0.0
    %197 = vmatprep.subr.mxu0 0.0
    %198 = vmatpush1.msra.mxu0 0.0
    %199 = vmatprep.subr.mxu0 0.0
    %200 = vmatpush1.msra.mxu0 0.0
    %201 = vmatprep.subr.mxu0 0.0
    %202 = vmatpush1.msra.mxu0 0.0
    %203 = vmatprep.subr.mxu0 0.0
    %204 = vmatpush1.msra.mxu0 0.0
    %205 = vmatprep.subr.mxu0 0.0
    %206 = vmatpush1.msra.mxu0 0.0
    %207 = vmatprep.subr.mxu0 0.0
    %208 = vmatpush1.msra.mxu0 0.0
    %209 = vmatprep.subr.mxu0 0.0
    %210 = vmatpush1.msra.mxu0 0.0
    %211 = vmatprep.subr.mxu0 0.0
    %212 = vmatpush1.msra.mxu0 0.0
    %213 = vmatprep.subr.mxu0 0.0
    %214 = vmatpush1.msra.mxu0 0.0
    %215 = vmatprep.subr.mxu0 0.0
    %216 = vmatpush1.msra.mxu0 %v184
    %217 = vmatprep.subr.mxu0 0.0
    %218 = vmatpush1.msra.mxu0 %v183
    %219 = vmatprep.subr.mxu0 0.0
    %220 = vmatpush1.msra.mxu0 %v182
    %221 = vmatprep.subr.mxu0 0.0
    %222 = vmatpush1.msra.mxu0 %v181
    %223 = vmatprep.subr.mxu0 0.0
    %224 = vmatpush2.msra.mxu0 0.0
    %225 = vmatprep.subr.mxu0 0.0
    %226 = vmatpush2.msra.mxu0 0.0
    %227 = vmatprep.subr.mxu0 0.0
    %228 = vmatpush2.msra.mxu0 0.0
    %229 = vmatprep.subr.mxu0 0.0
    %230 = vmatpush2.msra.mxu0 0.0
    %231 = vmatprep.subr.mxu0 0.0
    %232 = vmatpush2.msra.mxu0 0.0
    %233 = vmatprep.subr.mxu0 0.0
    %234 = vmatpush2.msra.mxu0 0.0
    %235 = vmatprep.subr.mxu0 0.0
    %236 = vmatpush2.msra.mxu0 0.0
    %237 = vmatprep.subr.mxu0 0.0
    %238 = vmatpush2.msra.mxu0 0.0
    %239 = vmatprep.subr.mxu0 0.0
    %240 = vmatpush2.msra.mxu0 0.0
    %241 = vmatprep.subr.mxu0 0.0
    %242 = vmatpush2.msra.mxu0 0.0
    %243 = vmatprep.subr.mxu0 0.0
    %244 = vmatpush2.msra.mxu0 0.0
    %245 = vmatprep.subr.mxu0 0.0
    %246 = vmatpush2.msra.mxu0 0.0
    %247 = vmatprep.subr.mxu0 0.0
    %248 = vmatpush2.msra.mxu0 0.0
    %249 = vmatprep.subr.mxu0 0.0
    %250 = vmatpush2.msra.mxu0 0.0
    %251 = vmatprep.subr.mxu0 0.0
    %252 = vmatpush2.msra.mxu0 0.0
    %253 = vmatprep.subr.mxu0 0.0
    %254 = vmatpush2.msra.mxu0 0.0
    %255 = vmatprep.mubr.f32.mxu0 0.0
    %256 = vmatmul.mubr.f32.gmra.mxu0 %v189
    %v257 = vpop.f32.mrf.mxu0
    %v258 = vadd.f32 0.0, %v257
    %v259 = vpop.f32.mrf.mxu0
    %260 = vdwg.mxu0
    %v262 = vrot.slane %v258, 1
    %v265 = vadd.f32 %v163, %v258
    %v266 = vadd.f32 %v173, %v262
    %v267 = vxor.u32 %v265, 2147483648
    %v268 = vxor.u32 %v266, 2147483648
    %v269 = vmul.f32 %v267, 1.442695
    %v270 = vpow.pop %v269
    %v271 = vmul.f32 %v268, 1.442695
    %v272 = vpow.pop %v271
    %v273 = vadd.f32 %v270, 1.0
    %v274 = vadd.f32 %v272, 1.0
    %v275 = vrcp.pop %v273
    %v276 = vmul.f32 1.0, %v275
    %v277 = vrcp.pop %v274
    %v278 = vmul.f32 1.0, %v277
    %v279 = vtanh.pop %v265
    %v280 = vtanh.pop %v266
    %v282 = vrot.slane %v186, 1
    %283 = vrot.lane.b32.xlu0 %v186, 32
    %v284 = vpop.permute.xlu0 %283
    %285 = vrot.lane.b32.xlu0 %v282, 32
    %v286 = vpop.permute.xlu0 %285
    %v289 = vmul.f32 %v276, %v284
    %v290 = vmul.f32 %v278, %v286
    %293 = vrot.lane.b32.xlu0 %v279, 64
    %v294 = vpop.permute.xlu0 %293
    %295 = vrot.lane.b32.xlu0 %v280, 64
    %v296 = vpop.permute.xlu0 %295
    %v299 = vmul.f32 %v276, %v294
    %v300 = vmul.f32 %v278, %v296
    %303 = vrot.lane.b32.xlu0 %v299, 32
    %v304 = vpop.permute.xlu0 %303
    %305 = vrot.lane.b32.xlu0 %v300, 32
    %v306 = vpop.permute.xlu0 %305
    %v309 = vadd.f32 %v289, %v304
    %v310 = vadd.f32 %v290, %v306
    %v311 = vtanh.pop %v309
    %v312 = vtanh.pop %v310
    %315 = vrot.lane.b32.xlu0 %v311, 64
    %v316 = vpop.permute.xlu0 %315
    %317 = vrot.lane.b32.xlu0 %v312, 64
    %v318 = vpop.permute.xlu0 %317
    %v321 = vmul.f32 %v276, %v316
    %v322 = vmul.f32 %v278, %v318
    %325 = vrot.lane.b32.xlu0 %v321, 32
    %v326 = vpop.permute.xlu0 %325
    %327 = vrot.lane.b32.xlu0 %v322, 32
    %v328 = vpop.permute.xlu0 %327
    %vm331 = vcmask 253952
    %332 = vst.msk [vmem:[#allocation10] sm:$0x1] %vm331, %v326
    %333 = vst.msk [vmem:[#allocation10 + $0x10] sm:$0x1] %vm331, %v328
    %v334 = vrot.slane %v322, 7
    %vm335 = vcmask 1041409
    %v336 = vsel %vm335, %v334, %v321
    %337 = vrot.lane.b32.xlu0 %v336, 32
    %v338 = vpop.permute.xlu0 %337
    %v339 = vsel %vm187, %v338, 0
    %341 = vmatprep.subr.mxu0 0.0
    %342 = vmatpush1.msra.mxu0 0.0
    %343 = vmatprep.subr.mxu0 0.0
    %344 = vmatpush1.msra.mxu0 0.0
    %345 = vmatprep.subr.mxu0 0.0
    %346 = vmatpush1.msra.mxu0 0.0
    %347 = vmatprep.subr.mxu0 0.0
    %348 = vmatpush1.msra.mxu0 0.0
    %349 = vmatprep.subr.mxu0 0.0
    %350 = vmatpush1.msra.mxu0 0.0
    %351 = vmatprep.subr.mxu0 0.0
    %352 = vmatpush1.msra.mxu0 0.0
    %353 = vmatprep.subr.mxu0 0.0
    %354 = vmatpush1.msra.mxu0 0.0
    %355 = vmatprep.subr.mxu0 0.0
    %356 = vmatpush1.msra.mxu0 0.0
    %357 = vmatprep.subr.mxu0 0.0
    %358 = vmatpush1.msra.mxu0 0.0
    %359 = vmatprep.subr.mxu0 0.0
    %360 = vmatpush1.msra.mxu0 0.0
    %361 = vmatprep.subr.mxu0 0.0
    %362 = vmatpush1.msra.mxu0 0.0
    %363 = vmatprep.subr.mxu0 0.0
    %364 = vmatpush1.msra.mxu0 0.0
    %365 = vmatprep.subr.mxu0 0.0
    %366 = vmatpush1.msra.mxu0 %v184
    %367 = vmatprep.subr.mxu0 0.0
    %368 = vmatpush1.msra.mxu0 %v183
    %369 = vmatprep.subr.mxu0 0.0
    %370 = vmatpush1.msra.mxu0 %v182
    %371 = vmatprep.subr.mxu0 0.0
    %372 = vmatpush1.msra.mxu0 %v181
    %373 = vmatprep.subr.mxu0 0.0
    %374 = vmatpush2.msra.mxu0 0.0
    %375 = vmatprep.subr.mxu0 0.0
    %376 = vmatpush2.msra.mxu0 0.0
    %377 = vmatprep.subr.mxu0 0.0
    %378 = vmatpush2.msra.mxu0 0.0
    %379 = vmatprep.subr.mxu0 0.0
    %380 = vmatpush2.msra.mxu0 0.0
    %381 = vmatprep.subr.mxu0 0.0
    %382 = vmatpush2.msra.mxu0 0.0
    %383 = vmatprep.subr.mxu0 0.0
    %384 = vmatpush2.msra.mxu0 0.0
    %385 = vmatprep.subr.mxu0 0.0
    %386 = vmatpush2.msra.mxu0 0.0
    %387 = vmatprep.subr.mxu0 0.0
    %388 = vmatpush2.msra.mxu0 0.0
    %389 = vmatprep.subr.mxu0 0.0
    %390 = vmatpush2.msra.mxu0 0.0
    %391 = vmatprep.subr.mxu0 0.0
    %392 = vmatpush2.msra.mxu0 0.0
    %393 = vmatprep.subr.mxu0 0.0
    %394 = vmatpush2.msra.mxu0 0.0
    %395 = vmatprep.subr.mxu0 0.0
    %396 = vmatpush2.msra.mxu0 0.0
    %397 = vmatprep.subr.mxu0 0.0
    %398 = vmatpush2.msra.mxu0 0.0
    %399 = vmatprep.subr.mxu0 0.0
    %400 = vmatpush2.msra.mxu0 0.0
    %401 = vmatprep.subr.mxu0 0.0
    %402 = vmatpush2.msra.mxu0 0.0
    %403 = vmatprep.subr.mxu0 0.0
    %404 = vmatpush2.msra.mxu0 0.0
    %405 = vmatprep.mubr.f32.mxu0 0.0
    %406 = vmatmul.mubr.f32.gmra.mxu0 %v339
    %v407 = vpop.f32.mrf.mxu0
    %v408 = vadd.f32 0.0, %v407
    %v409 = vpop.f32.mrf.mxu0
    %410 = vdwg.mxu0
    %v412 = vrot.slane %v408, 7
    %v415 = vadd.f32 %v163, %v412
    %v416 = vadd.f32 %v173, %v408
    %v417 = vxor.u32 %v415, 2147483648
    %v418 = vxor.u32 %v416, 2147483648
    %v419 = vmul.f32 %v417, 1.442695
    %v420 = vpow.pop %v419
    %v421 = vmul.f32 %v418, 1.442695
    %v422 = vpow.pop %v421
    %v423 = vadd.f32 %v420, 1.0
    %v424 = vadd.f32 %v422, 1.0
    %v425 = vrcp.pop %v423
    %v426 = vmul.f32 1.0, %v425
    %v427 = vrcp.pop %v424
    %v428 = vmul.f32 1.0, %v427
    %v429 = vtanh.pop %v415
    %v430 = vtanh.pop %v416
    %v433 = vrot.slane %v309, 7
    %v434 = vrot.slane %v310, 7
    %v437 = vmul.f32 %v426, %v433
    %v438 = vmul.f32 %v428, %v434
    %441 = vrot.lane.b32.xlu0 %v429, 64
    %v442 = vpop.permute.xlu0 %441
    %443 = vrot.lane.b32.xlu0 %v430, 64
    %v444 = vpop.permute.xlu0 %443
    %v447 = vmul.f32 %v426, %v442
    %v448 = vmul.f32 %v428, %v444
    %451 = vrot.lane.b32.xlu0 %v447, 32
    %v452 = vpop.permute.xlu0 %451
    %453 = vrot.lane.b32.xlu0 %v448, 32
    %v454 = vpop.permute.xlu0 %453
    %v457 = vadd.f32 %v437, %v452
    %v458 = vadd.f32 %v438, %v454
    %v459 = vtanh.pop %v457
    %v460 = vtanh.pop %v458
    %463 = vrot.lane.b32.xlu0 %v459, 64
    %v464 = vpop.permute.xlu0 %463
    %465 = vrot.lane.b32.xlu0 %v460, 64
    %v466 = vpop.permute.xlu0 %465
    %v469 = vmul.f32 %v426, %v464
    %v470 = vmul.f32 %v428, %v466
    %473 = vrot.lane.b32.xlu0 %v469, 32
    %v474 = vpop.permute.xlu0 %473
    %475 = vrot.lane.b32.xlu0 %v470, 32
    %v476 = vpop.permute.xlu0 %475
    %vm479 = vcmask 254977
    %480 = vst.msk [vmem:[#allocation10] sm:$0x2] %vm479, %v474
    %481 = vst.msk [vmem:[#allocation10 + $0x10] sm:$0x2] %vm479, %v476
    %v482 = vrot.slane %v469, 1
    %v483 = vsel %vm335, %v470, %v482
    %484 = vrot.lane.b32.xlu0 %v483, 32
    %v485 = vpop.permute.xlu0 %484
    %v486 = vsel %vm187, %v485, 0
    %488 = vmatprep.subr.mxu0 0.0
    %489 = vmatpush1.msra.mxu0 0.0
    %490 = vmatprep.subr.mxu0 0.0
    %491 = vmatpush1.msra.mxu0 0.0
    %492 = vmatprep.subr.mxu0 0.0
    %493 = vmatpush1.msra.mxu0 0.0
    %494 = vmatprep.subr.mxu0 0.0
    %495 = vmatpush1.msra.mxu0 0.0
    %496 = vmatprep.subr.mxu0 0.0
    %497 = vmatpush1.msra.mxu0 0.0
    %498 = vmatprep.subr.mxu0 0.0
    %499 = vmatpush1.msra.mxu0 0.0
    %500 = vmatprep.subr.mxu0 0.0
    %501 = vmatpush1.msra.mxu0 0.0
    %502 = vmatprep.subr.mxu0 0.0
    %503 = vmatpush1.msra.mxu0 0.0
    %504 = vmatprep.subr.mxu0 0.0
    %505 = vmatpush1.msra.mxu0 0.0
    %506 = vmatprep.subr.mxu0 0.0
    %507 = vmatpush1.msra.mxu0 0.0
    %508 = vmatprep.subr.mxu0 0.0
    %509 = vmatpush1.msra.mxu0 0.0
    %510 = vmatprep.subr.mxu0 0.0
    %511 = vmatpush1.msra.mxu0 0.0
    %512 = vmatprep.subr.mxu0 0.0
    %513 = vmatpush1.msra.mxu0 %v184
    %514 = vmatprep.subr.mxu0 0.0
    %515 = vmatpush1.msra.mxu0 %v183
    %516 = vmatprep.subr.mxu0 0.0
    %517 = vmatpush1.msra.mxu0 %v182
    %518 = vmatprep.subr.mxu0 0.0
    %519 = vmatpush1.msra.mxu0 %v181
    %520 = vmatprep.subr.mxu0 0.0
    %521 = vmatpush2.msra.mxu0 0.0
    %522 = vmatprep.subr.mxu0 0.0
    %523 = vmatpush2.msra.mxu0 0.0
    %524 = vmatprep.subr.mxu0 0.0
    %525 = vmatpush2.msra.mxu0 0.0
    %526 = vmatprep.subr.mxu0 0.0
    %527 = vmatpush2.msra.mxu0 0.0
    %528 = vmatprep.subr.mxu0 0.0
    %529 = vmatpush2.msra.mxu0 0.0
    %530 = vmatprep.subr.mxu0 0.0
    %531 = vmatpush2.msra.mxu0 0.0
    %532 = vmatprep.subr.mxu0 0.0
    %533 = vmatpush2.msra.mxu0 0.0
    %534 = vmatprep.subr.mxu0 0.0
    %535 = vmatpush2.msra.mxu0 0.0
    %536 = vmatprep.subr.mxu0 0.0
    %537 = vmatpush2.msra.mxu0 0.0
    %538 = vmatprep.subr.mxu0 0.0
    %539 = vmatpush2.msra.mxu0 0.0
    %540 = vmatprep.subr.mxu0 0.0
    %541 = vmatpush2.msra.mxu0 0.0
    %542 = vmatprep.subr.mxu0 0.0
    %543 = vmatpush2.msra.mxu0 0.0
    %544 = vmatprep.subr.mxu0 0.0
    %545 = vmatpush2.msra.mxu0 0.0
    %546 = vmatprep.subr.mxu0 0.0
    %547 = vmatpush2.msra.mxu0 0.0
    %548 = vmatprep.subr.mxu0 0.0
    %549 = vmatpush2.msra.mxu0 0.0
    %550 = vmatprep.subr.mxu0 0.0
    %551 = vmatpush2.msra.mxu0 0.0
    %552 = vmatprep.mubr.f32.mxu0 0.0
    %553 = vmatmul.mubr.f32.gmra.mxu0 %v486
    %v554 = vpop.f32.mrf.mxu0
    %v555 = vadd.f32 0.0, %v554
    %v556 = vpop.f32.mrf.mxu0
    %557 = vdwg.mxu0
    %v559 = vrot.slane %v555, 6
    %v560 = vrot.slane %v555, 7
    %v563 = vadd.f32 %v163, %v559
    %v564 = vadd.f32 %v173, %v560
    %v565 = vxor.u32 %v563, 2147483648
    %v566 = vxor.u32 %v564, 2147483648
    %v567 = vmul.f32 %v565, 1.442695
    %v568 = vpow.pop %v567
    %v569 = vmul.f32 %v566, 1.442695
    %v570 = vpow.pop %v569
    %v571 = vadd.f32 %v568, 1.0
    %v572 = vadd.f32 %v570, 1.0
    %v573 = vrcp.pop %v571
    %v574 = vmul.f32 1.0, %v573
    %v575 = vrcp.pop %v572
    %v576 = vmul.f32 1.0, %v575
    %v577 = vtanh.pop %v563
    %v578 = vtanh.pop %v564
    %v581 = vrot.slane %v457, 7
    %v582 = vrot.slane %v458, 7
    %v585 = vmul.f32 %v574, %v581
    %v586 = vmul.f32 %v576, %v582
    %589 = vrot.lane.b32.xlu0 %v577, 64
    %v590 = vpop.permute.xlu0 %589
    %591 = vrot.lane.b32.xlu0 %v578, 64
    %v592 = vpop.permute.xlu0 %591
    %v595 = vmul.f32 %v574, %v590
    %v596 = vmul.f32 %v576, %v592
    %599 = vrot.lane.b32.xlu0 %v595, 32
    %v600 = vpop.permute.xlu0 %599
    %601 = vrot.lane.b32.xlu0 %v596, 32
    %v602 = vpop.permute.xlu0 %601
    %v605 = vadd.f32 %v585, %v600
    %v606 = vadd.f32 %v586, %v602
    %v607 = vtanh.pop %v605
    %v608 = vtanh.pop %v606
    %611 = vrot.lane.b32.xlu0 %v607, 64
    %v612 = vpop.permute.xlu0 %611
    %613 = vrot.lane.b32.xlu0 %v608, 64
    %v614 = vpop.permute.xlu0 %613
    %v617 = vmul.f32 %v574, %v612
    %v618 = vmul.f32 %v576, %v614
    %621 = vrot.lane.b32.xlu0 %v617, 32
    %v622 = vpop.permute.xlu0 %621
    %623 = vrot.lane.b32.xlu0 %v618, 32
    %v624 = vpop.permute.xlu0 %623
    %vm627 = vcmask 256002
    %628 = vst.msk [vmem:[#allocation10] sm:$0x4] %vm627, %v622
    %629 = vst.msk [vmem:[#allocation10 + $0x10] sm:$0x4] %vm627, %v624
    %v630 = vrot.slane %v617, 2
    %v631 = vrot.slane %v618, 1
    %v632 = vsel %vm335, %v631, %v630
    %633 = vrot.lane.b32.xlu0 %v632, 32
    %v634 = vpop.permute.xlu0 %633
    %v635 = vsel %vm187, %v634, 0
    %637 = vmatprep.subr.mxu0 0.0
    %638 = vmatpush1.msra.mxu0 0.0
    %639 = vmatprep.subr.mxu0 0.0
    %640 = vmatpush1.msra.mxu0 0.0
    %641 = vmatprep.subr.mxu0 0.0
    %642 = vmatpush1.msra.mxu0 0.0
    %643 = vmatprep.subr.mxu0 0.0
    %644 = vmatpush1.msra.mxu0 0.0
    %645 = vmatprep.subr.mxu0 0.0
    %646 = vmatpush1.msra.mxu0 0.0
    %647 = vmatprep.subr.mxu0 0.0
    %648 = vmatpush1.msra.mxu0 0.0
    %649 = vmatprep.subr.mxu0 0.0
    %650 = vmatpush1.msra.mxu0 0.0
    %651 = vmatprep.subr.mxu0 0.0
    %652 = vmatpush1.msra.mxu0 0.0
    %653 = vmatprep.subr.mxu0 0.0
    %654 = vmatpush1.msra.mxu0 0.0
    %655 = vmatprep.subr.mxu0 0.0
    %656 = vmatpush1.msra.mxu0 0.0
    %657 = vmatprep.subr.mxu0 0.0
    %658 = vmatpush1.msra.mxu0 0.0
    %659 = vmatprep.subr.mxu0 0.0
    %660 = vmatpush1.msra.mxu0 0.0
    %661 = vmatprep.subr.mxu0 0.0
    %662 = vmatpush1.msra.mxu0 %v184
    %663 = vmatprep.subr.mxu0 0.0
    %664 = vmatpush1.msra.mxu0 %v183
    %665 = vmatprep.subr.mxu0 0.0
    %666 = vmatpush1.msra.mxu0 %v182
    %667 = vmatprep.subr.mxu0 0.0
    %668 = vmatpush1.msra.mxu0 %v181
    %669 = vmatprep.subr.mxu0 0.0
    %670 = vmatpush2.msra.mxu0 0.0
    %671 = vmatprep.subr.mxu0 0.0
    %672 = vmatpush2.msra.mxu0 0.0
    %673 = vmatprep.subr.mxu0 0.0
    %674 = vmatpush2.msra.mxu0 0.0
    %675 = vmatprep.subr.mxu0 0.0
    %676 = vmatpush2.msra.mxu0 0.0
    %677 = vmatprep.subr.mxu0 0.0
    %678 = vmatpush2.msra.mxu0 0.0
    %679 = vmatprep.subr.mxu0 0.0
    %680 = vmatpush2.msra.mxu0 0.0
    %681 = vmatprep.subr.mxu0 0.0
    %682 = vmatpush2.msra.mxu0 0.0
    %683 = vmatprep.subr.mxu0 0.0
    %684 = vmatpush2.msra.mxu0 0.0
    %685 = vmatprep.subr.mxu0 0.0
    %686 = vmatpush2.msra.mxu0 0.0
    %687 = vmatprep.subr.mxu0 0.0
    %688 = vmatpush2.msra.mxu0 0.0
    %689 = vmatprep.subr.mxu0 0.0
    %690 = vmatpush2.msra.mxu0 0.0
    %691 = vmatprep.subr.mxu0 0.0
    %692 = vmatpush2.msra.mxu0 0.0
    %693 = vmatprep.subr.mxu0 0.0
    %694 = vmatpush2.msra.mxu0 0.0
    %695 = vmatprep.subr.mxu0 0.0
    %696 = vmatpush2.msra.mxu0 0.0
    %697 = vmatprep.subr.mxu0 0.0
    %698 = vmatpush2.msra.mxu0 0.0
    %699 = vmatprep.subr.mxu0 0.0
    %700 = vmatpush2.msra.mxu0 0.0
    %701 = vmatprep.mubr.f32.mxu0 0.0
    %702 = vmatmul.mubr.f32.gmra.mxu0 %v635
    %v703 = vpop.f32.mrf.mxu0
    %v704 = vadd.f32 0.0, %v703
    %v705 = vpop.f32.mrf.mxu0
    %706 = vdwg.mxu0
    %v708 = vrot.slane %v704, 5
    %v709 = vrot.slane %v704, 6
    %v712 = vadd.f32 %v163, %v708
    %v713 = vadd.f32 %v173, %v709
    %v714 = vxor.u32 %v712, 2147483648
    %v715 = vxor.u32 %v713, 2147483648
    %v716 = vmul.f32 %v714, 1.442695
    %v717 = vpow.pop %v716
    %v718 = vmul.f32 %v715, 1.442695
    %v719 = vpow.pop %v718
    %v720 = vadd.f32 %v717, 1.0
    %v721 = vadd.f32 %v719, 1.0
    %v722 = vrcp.pop %v720
    %v723 = vmul.f32 1.0, %v722
    %v724 = vrcp.pop %v721
    %v725 = vmul.f32 1.0, %v724
    %v726 = vtanh.pop %v712
    %v727 = vtanh.pop %v713
    %v730 = vrot.slane %v605, 7
    %v731 = vrot.slane %v606, 7
    %v734 = vmul.f32 %v723, %v730
    %v735 = vmul.f32 %v725, %v731
    %738 = vrot.lane.b32.xlu0 %v726, 64
    %v739 = vpop.permute.xlu0 %738
    %740 = vrot.lane.b32.xlu0 %v727, 64
    %v741 = vpop.permute.xlu0 %740
    %v744 = vmul.f32 %v723, %v739
    %v745 = vmul.f32 %v725, %v741
    %748 = vrot.lane.b32.xlu0 %v744, 32
    %v749 = vpop.permute.xlu0 %748
    %750 = vrot.lane.b32.xlu0 %v745, 32
    %v751 = vpop.permute.xlu0 %750
    %v754 = vadd.f32 %v734, %v749
    %v755 = vadd.f32 %v735, %v751
    %v756 = vtanh.pop %v754
    %v757 = vtanh.pop %v755
    %760 = vrot.lane.b32.xlu0 %v756, 64
    %v761 = vpop.permute.xlu0 %760
    %762 = vrot.lane.b32.xlu0 %v757, 64
    %v763 = vpop.permute.xlu0 %762
    %v766 = vmul.f32 %v723, %v761
    %v767 = vmul.f32 %v725, %v763
    %770 = vrot.lane.b32.xlu0 %v766, 32
    %v771 = vpop.permute.xlu0 %770
    %772 = vrot.lane.b32.xlu0 %v767, 32
    %v773 = vpop.permute.xlu0 %772
    %vm776 = vcmask 257027
    %777 = vst.msk [vmem:[#allocation10] sm:$0x8] %vm776, %v771
    %778 = vst.msk [vmem:[#allocation10 + $0x10] sm:$0x8] %vm776, %v773
    %v779 = vrot.slane %v766, 3
    %v780 = vrot.slane %v767, 2
    %v781 = vsel %vm335, %v780, %v779
    %782 = vrot.lane.b32.xlu0 %v781, 32
    %v783 = vpop.permute.xlu0 %782
    %v784 = vsel %vm187, %v783, 0
    %786 = vmatprep.subr.mxu0 0.0
    %787 = vmatpush1.msra.mxu0 0.0
    %788 = vmatprep.subr.mxu0 0.0
    %789 = vmatpush1.msra.mxu0 0.0
    %790 = vmatprep.subr.mxu0 0.0
    %791 = vmatpush1.msra.mxu0 0.0
    %792 = vmatprep.subr.mxu0 0.0
    %793 = vmatpush1.msra.mxu0 0.0
    %794 = vmatprep.subr.mxu0 0.0
    %795 = vmatpush1.msra.mxu0 0.0
    %796 = vmatprep.subr.mxu0 0.0
    %797 = vmatpush1.msra.mxu0 0.0
    %798 = vmatprep.subr.mxu0 0.0
    %799 = vmatpush1.msra.mxu0 0.0
    %800 = vmatprep.subr.mxu0 0.0
    %801 = vmatpush1.msra.mxu0 0.0
    %802 = vmatprep.subr.mxu0 0.0
    %803 = vmatpush1.msra.mxu0 0.0
    %804 = vmatprep.subr.mxu0 0.0
    %805 = vmatpush1.msra.mxu0 0.0
    %806 = vmatprep.subr.mxu0 0.0
    %807 = vmatpush1.msra.mxu0 0.0
    %808 = vmatprep.subr.mxu0 0.0
    %809 = vmatpush1.msra.mxu0 0.0
    %810 = vmatprep.subr.mxu0 0.0
    %811 = vmatpush1.msra.mxu0 %v184
    %812 = vmatprep.subr.mxu0 0.0
    %813 = vmatpush1.msra.mxu0 %v183
    %814 = vmatprep.subr.mxu0 0.0
    %815 = vmatpush1.msra.mxu0 %v182
    %816 = vmatprep.subr.mxu0 0.0
    %817 = vmatpush1.msra.mxu0 %v181
    %818 = vmatprep.subr.mxu0 0.0
    %819 = vmatpush2.msra.mxu0 0.0
    %820 = vmatprep.subr.mxu0 0.0
    %821 = vmatpush2.msra.mxu0 0.0
    %822 = vmatprep.subr.mxu0 0.0
    %823 = vmatpush2.msra.mxu0 0.0
    %824 = vmatprep.subr.mxu0 0.0
    %825 = vmatpush2.msra.mxu0 0.0
    %826 = vmatprep.subr.mxu0 0.0
    %827 = vmatpush2.msra.mxu0 0.0
    %828 = vmatprep.subr.mxu0 0.0
    %829 = vmatpush2.msra.mxu0 0.0
    %830 = vmatprep.subr.mxu0 0.0
    %831 = vmatpush2.msra.mxu0 0.0
    %832 = vmatprep.subr.mxu0 0.0
    %833 = vmatpush2.msra.mxu0 0.0
    %834 = vmatprep.subr.mxu0 0.0
    %835 = vmatpush2.msra.mxu0 0.0
    %836 = vmatprep.subr.mxu0 0.0
    %837 = vmatpush2.msra.mxu0 0.0
    %838 = vmatprep.subr.mxu0 0.0
    %839 = vmatpush2.msra.mxu0 0.0
    %840 = vmatprep.subr.mxu0 0.0
    %841 = vmatpush2.msra.mxu0 0.0
    %842 = vmatprep.subr.mxu0 0.0
    %843 = vmatpush2.msra.mxu0 0.0
    %844 = vmatprep.subr.mxu0 0.0
    %845 = vmatpush2.msra.mxu0 0.0
    %846 = vmatprep.subr.mxu0 0.0
    %847 = vmatpush2.msra.mxu0 0.0
    %848 = vmatprep.subr.mxu0 0.0
    %849 = vmatpush2.msra.mxu0 0.0
    %850 = vmatprep.mubr.f32.mxu0 0.0
    %851 = vmatmul.mubr.f32.gmra.mxu0 %v784
    %v852 = vpop.f32.mrf.mxu0
    %v853 = vadd.f32 0.0, %v852
    %v854 = vpop.f32.mrf.mxu0
    %855 = vdwg.mxu0
    %v857 = vrot.slane %v853, 4
    %v858 = vrot.slane %v853, 5
    %v861 = vadd.f32 %v163, %v857
    %v862 = vadd.f32 %v173, %v858
    %v863 = vxor.u32 %v861, 2147483648
    %v864 = vxor.u32 %v862, 2147483648
    %v865 = vmul.f32 %v863, 1.442695
    %v866 = vpow.pop %v865
    %v867 = vmul.f32 %v864, 1.442695
    %v868 = vpow.pop %v867
    %v869 = vadd.f32 %v866, 1.0
    %v870 = vadd.f32 %v868, 1.0
    %v871 = vrcp.pop %v869
    %v872 = vmul.f32 1.0, %v871
    %v873 = vrcp.pop %v870
    %v874 = vmul.f32 1.0, %v873
    %v875 = vtanh.pop %v861
    %v876 = vtanh.pop %v862
    %v879 = vrot.slane %v754, 7
    %v880 = vrot.slane %v755, 7
    %v883 = vmul.f32 %v872, %v879
    %v884 = vmul.f32 %v874, %v880
    %887 = vrot.lane.b32.xlu0 %v875, 64
    %v888 = vpop.permute.xlu0 %887
    %889 = vrot.lane.b32.xlu0 %v876, 64
    %v890 = vpop.permute.xlu0 %889
    %v893 = vmul.f32 %v872, %v888
    %v894 = vmul.f32 %v874, %v890
    %897 = vrot.lane.b32.xlu0 %v893, 32
    %v898 = vpop.permute.xlu0 %897
    %899 = vrot.lane.b32.xlu0 %v894, 32
    %v900 = vpop.permute.xlu0 %899
    %v903 = vadd.f32 %v883, %v898
    %v904 = vadd.f32 %v884, %v900
    %v905 = vtanh.pop %v903
    %v906 = vtanh.pop %v904
    %909 = vrot.lane.b32.xlu0 %v905, 64
    %v910 = vpop.permute.xlu0 %909
    %911 = vrot.lane.b32.xlu0 %v906, 64
    %v912 = vpop.permute.xlu0 %911
    %v915 = vmul.f32 %v872, %v910
    %v916 = vmul.f32 %v874, %v912
    %919 = vrot.lane.b32.xlu0 %v915, 32
    %v920 = vpop.permute.xlu0 %919
    %921 = vrot.lane.b32.xlu0 %v916, 32
    %v922 = vpop.permute.xlu0 %921
    %vm925 = vcmask 258052
    %926 = vst.msk [vmem:[#allocation10] sm:$0x10] %vm925, %v920
    %927 = vst.msk [vmem:[#allocation10 + $0x10] sm:$0x10] %vm925, %v922
    %v928 = vrot.slane %v915, 4
    %v929 = vrot.slane %v916, 3
    %v930 = vsel %vm335, %v929, %v928
    %931 = vrot.lane.b32.xlu0 %v930, 32
    %v932 = vpop.permute.xlu0 %931
    %v933 = vsel %vm187, %v932, 0
    %935 = vmatprep.subr.mxu0 0.0
    %936 = vmatpush1.msra.mxu0 0.0
    %937 = vmatprep.subr.mxu0 0.0
    %938 = vmatpush1.msra.mxu0 0.0
    %939 = vmatprep.subr.mxu0 0.0
    %940 = vmatpush1.msra.mxu0 0.0
    %941 = vmatprep.subr.mxu0 0.0
    %942 = vmatpush1.msra.mxu0 0.0
    %943 = vmatprep.subr.mxu0 0.0
    %944 = vmatpush1.msra.mxu0 0.0
    %945 = vmatprep.subr.mxu0 0.0
    %946 = vmatpush1.msra.mxu0 0.0
    %947 = vmatprep.subr.mxu0 0.0
    %948 = vmatpush1.msra.mxu0 0.0
    %949 = vmatprep.subr.mxu0 0.0
    %950 = vmatpush1.msra.mxu0 0.0
    %951 = vmatprep.subr.mxu0 0.0
    %952 = vmatpush1.msra.mxu0 0.0
    %953 = vmatprep.subr.mxu0 0.0
    %954 = vmatpush1.msra.mxu0 0.0
    %955 = vmatprep.subr.mxu0 0.0
    %956 = vmatpush1.msra.mxu0 0.0
    %957 = vmatprep.subr.mxu0 0.0
    %958 = vmatpush1.msra.mxu0 0.0
    %959 = vmatprep.subr.mxu0 0.0
    %960 = vmatpush1.msra.mxu0 %v184
    %961 = vmatprep.subr.mxu0 0.0
    %962 = vmatpush1.msra.mxu0 %v183
    %963 = vmatprep.subr.mxu0 0.0
    %964 = vmatpush1.msra.mxu0 %v182
    %965 = vmatprep.subr.mxu0 0.0
    %966 = vmatpush1.msra.mxu0 %v181
    %967 = vmatprep.subr.mxu0 0.0
    %968 = vmatpush2.msra.mxu0 0.0
    %969 = vmatprep.subr.mxu0 0.0
    %970 = vmatpush2.msra.mxu0 0.0
    %971 = vmatprep.subr.mxu0 0.0
    %972 = vmatpush2.msra.mxu0 0.0
    %973 = vmatprep.subr.mxu0 0.0
    %974 = vmatpush2.msra.mxu0 0.0
    %975 = vmatprep.subr.mxu0 0.0
    %976 = vmatpush2.msra.mxu0 0.0
    %977 = vmatprep.subr.mxu0 0.0
    %978 = vmatpush2.msra.mxu0 0.0
    %979 = vmatprep.subr.mxu0 0.0
    %980 = vmatpush2.msra.mxu0 0.0
    %981 = vmatprep.subr.mxu0 0.0
    %982 = vmatpush2.msra.mxu0 0.0
    %983 = vmatprep.subr.mxu0 0.0
    %984 = vmatpush2.msra.mxu0 0.0
    %985 = vmatprep.subr.mxu0 0.0
    %986 = vmatpush2.msra.mxu0 0.0
    %987 = vmatprep.subr.mxu0 0.0
    %988 = vmatpush2.msra.mxu0 0.0
    %989 = vmatprep.subr.mxu0 0.0
    %990 = vmatpush2.msra.mxu0 0.0
    %991 = vmatprep.subr.mxu0 0.0
    %992 = vmatpush2.msra.mxu0 0.0
    %993 = vmatprep.subr.mxu0 0.0
    %994 = vmatpush2.msra.mxu0 0.0
    %995 = vmatprep.subr.mxu0 0.0
    %996 = vmatpush2.msra.mxu0 0.0
    %997 = vmatprep.subr.mxu0 0.0
    %998 = vmatpush2.msra.mxu0 0.0
    %999 = vmatprep.mubr.f32.mxu0 0.0
    %1000 = vmatmul.mubr.f32.gmra.mxu0 %v933
    %v1001 = vpop.f32.mrf.mxu0
    %v1002 = vadd.f32 0.0, %v1001
    %v1003 = vpop.f32.mrf.mxu0
    %1004 = vdwg.mxu0
    %v1006 = vrot.slane %v1002, 3
    %v1007 = vrot.slane %v1002, 4
    %v1010 = vadd.f32 %v163, %v1006
    %v1011 = vadd.f32 %v173, %v1007
    %v1012 = vxor.u32 %v1010, 2147483648
    %v1013 = vxor.u32 %v1011, 2147483648
    %v1014 = vmul.f32 %v1012, 1.442695
    %v1015 = vpow.pop %v1014
    %v1016 = vmul.f32 %v1013, 1.442695
    %v1017 = vpow.pop %v1016
    %v1018 = vadd.f32 %v1015, 1.0
    %v1019 = vadd.f32 %v1017, 1.0
    %v1020 = vrcp.pop %v1018
    %v1021 = vmul.f32 1.0, %v1020
    %v1022 = vrcp.pop %v1019
    %v1023 = vmul.f32 1.0, %v1022
    %v1024 = vtanh.pop %v1010
    %v1025 = vtanh.pop %v1011
    %v1028 = vrot.slane %v903, 7
    %v1029 = vrot.slane %v904, 7
    %v1032 = vmul.f32 %v1021, %v1028
    %v1033 = vmul.f32 %v1023, %v1029
    %1036 = vrot.lane.b32.xlu0 %v1024, 64
    %v1037 = vpop.permute.xlu0 %1036
    %1038 = vrot.lane.b32.xlu0 %v1025, 64
    %v1039 = vpop.permute.xlu0 %1038
    %v1042 = vmul.f32 %v1021, %v1037
    %v1043 = vmul.f32 %v1023, %v1039
    %1046 = vrot.lane.b32.xlu0 %v1042, 32
    %v1047 = vpop.permute.xlu0 %1046
    %1048 = vrot.lane.b32.xlu0 %v1043, 32
    %v1049 = vpop.permute.xlu0 %1048
    %v1052 = vadd.f32 %v1032, %v1047
    %v1053 = vadd.f32 %v1033, %v1049
    %v1054 = vtanh.pop %v1052
    %v1055 = vtanh.pop %v1053
    %1058 = vrot.lane.b32.xlu0 %v1054, 64
    %v1059 = vpop.permute.xlu0 %1058
    %1060 = vrot.lane.b32.xlu0 %v1055, 64
    %v1061 = vpop.permute.xlu0 %1060
    %v1064 = vmul.f32 %v1021, %v1059
    %v1065 = vmul.f32 %v1023, %v1061
    %1068 = vrot.lane.b32.xlu0 %v1064, 32
    %v1069 = vpop.permute.xlu0 %1068
    %1070 = vrot.lane.b32.xlu0 %v1065, 32
    %v1071 = vpop.permute.xlu0 %1070
    %vm1074 = vcmask 259077
    %1075 = vst.msk [vmem:[#allocation10] sm:$0x20] %vm1074, %v1069
    %1076 = vst.msk [vmem:[#allocation10 + $0x10] sm:$0x20] %vm1074, %v1071
    %v1077 = vrot.slane %v1064, 5
    %v1078 = vrot.slane %v1065, 4
    %v1079 = vsel %vm335, %v1078, %v1077
    %1080 = vrot.lane.b32.xlu0 %v1079, 32
    %v1081 = vpop.permute.xlu0 %1080
    %v1082 = vsel %vm187, %v1081, 0
    %1084 = vmatprep.subr.mxu0 0.0
    %1085 = vmatpush1.msra.mxu0 0.0
    %1086 = vmatprep.subr.mxu0 0.0
    %1087 = vmatpush1.msra.mxu0 0.0
    %1088 = vmatprep.subr.mxu0 0.0
    %1089 = vmatpush1.msra.mxu0 0.0
    %1090 = vmatprep.subr.mxu0 0.0
    %1091 = vmatpush1.msra.mxu0 0.0
    %1092 = vmatprep.subr.mxu0 0.0
    %1093 = vmatpush1.msra.mxu0 0.0
    %1094 = vmatprep.subr.mxu0 0.0
    %1095 = vmatpush1.msra.mxu0 0.0
    %1096 = vmatprep.subr.mxu0 0.0
    %1097 = vmatpush1.msra.mxu0 0.0
    %1098 = vmatprep.subr.mxu0 0.0
    %1099 = vmatpush1.msra.mxu0 0.0
    %1100 = vmatprep.subr.mxu0 0.0
    %1101 = vmatpush1.msra.mxu0 0.0
    %1102 = vmatprep.subr.mxu0 0.0
    %1103 = vmatpush1.msra.mxu0 0.0
    %1104 = vmatprep.subr.mxu0 0.0
    %1105 = vmatpush1.msra.mxu0 0.0
    %1106 = vmatprep.subr.mxu0 0.0
    %1107 = vmatpush1.msra.mxu0 0.0
    %1108 = vmatprep.subr.mxu0 0.0
    %1109 = vmatpush1.msra.mxu0 %v184
    %1110 = vmatprep.subr.mxu0 0.0
    %1111 = vmatpush1.msra.mxu0 %v183
    %1112 = vmatprep.subr.mxu0 0.0
    %1113 = vmatpush1.msra.mxu0 %v182
    %1114 = vmatprep.subr.mxu0 0.0
    %1115 = vmatpush1.msra.mxu0 %v181
    %1116 = vmatprep.subr.mxu0 0.0
    %1117 = vmatpush2.msra.mxu0 0.0
    %1118 = vmatprep.subr.mxu0 0.0
    %1119 = vmatpush2.msra.mxu0 0.0
    %1120 = vmatprep.subr.mxu0 0.0
    %1121 = vmatpush2.msra.mxu0 0.0
    %1122 = vmatprep.subr.mxu0 0.0
    %1123 = vmatpush2.msra.mxu0 0.0
    %1124 = vmatprep.subr.mxu0 0.0
    %1125 = vmatpush2.msra.mxu0 0.0
    %1126 = vmatprep.subr.mxu0 0.0
    %1127 = vmatpush2.msra.mxu0 0.0
    %1128 = vmatprep.subr.mxu0 0.0
    %1129 = vmatpush2.msra.mxu0 0.0
    %1130 = vmatprep.subr.mxu0 0.0
    %1131 = vmatpush2.msra.mxu0 0.0
    %1132 = vmatprep.subr.mxu0 0.0
    %1133 = vmatpush2.msra.mxu0 0.0
    %1134 = vmatprep.subr.mxu0 0.0
    %1135 = vmatpush2.msra.mxu0 0.0
    %1136 = vmatprep.subr.mxu0 0.0
    %1137 = vmatpush2.msra.mxu0 0.0
    %1138 = vmatprep.subr.mxu0 0.0
    %1139 = vmatpush2.msra.mxu0 0.0
    %1140 = vmatprep.subr.mxu0 0.0
    %1141 = vmatpush2.msra.mxu0 0.0
    %1142 = vmatprep.subr.mxu0 0.0
    %1143 = vmatpush2.msra.mxu0 0.0
    %1144 = vmatprep.subr.mxu0 0.0
    %1145 = vmatpush2.msra.mxu0 0.0
    %1146 = vmatprep.subr.mxu0 0.0
    %1147 = vmatpush2.msra.mxu0 0.0
    %1148 = vmatprep.mubr.f32.mxu0 0.0
    %1149 = vmatmul.mubr.f32.gmra.mxu0 %v1082
    %v1150 = vpop.f32.mrf.mxu0
    %v1151 = vadd.f32 0.0, %v1150
    %v1152 = vpop.f32.mrf.mxu0
    %1153 = vdwg.mxu0
    %v1155 = vrot.slane %v1151, 2
    %v1156 = vrot.slane %v1151, 3
    %v1159 = vadd.f32 %v163, %v1155
    %v1160 = vadd.f32 %v173, %v1156
    %v1161 = vxor.u32 %v1159, 2147483648
    %v1162 = vxor.u32 %v1160, 2147483648
    %v1163 = vmul.f32 %v1161, 1.442695
    %v1164 = vpow.pop %v1163
    %v1165 = vmul.f32 %v1162, 1.442695
    %v1166 = vpow.pop %v1165
    %v1167 = vadd.f32 %v1164, 1.0
    %v1168 = vadd.f32 %v1166, 1.0
    %v1169 = vrcp.pop %v1167
    %v1170 = vmul.f32 1.0, %v1169
    %v1171 = vrcp.pop %v1168
    %v1172 = vmul.f32 1.0, %v1171
    %v1173 = vtanh.pop %v1159
    %v1174 = vtanh.pop %v1160
    %v1177 = vrot.slane %v1052, 7
    %v1178 = vrot.slane %v1053, 7
    %v1181 = vmul.f32 %v1170, %v1177
    %v1182 = vmul.f32 %v1172, %v1178
    %1185 = vrot.lane.b32.xlu0 %v1173, 64
    %v1186 = vpop.permute.xlu0 %1185
    %1187 = vrot.lane.b32.xlu0 %v1174, 64
    %v1188 = vpop.permute.xlu0 %1187
    %v1191 = vmul.f32 %v1170, %v1186
    %v1192 = vmul.f32 %v1172, %v1188
    %1195 = vrot.lane.b32.xlu0 %v1191, 32
    %v1196 = vpop.permute.xlu0 %1195
    %1197 = vrot.lane.b32.xlu0 %v1192, 32
    %v1198 = vpop.permute.xlu0 %1197
    %v1201 = vadd.f32 %v1181, %v1196
    %v1202 = vadd.f32 %v1182, %v1198
    %v1203 = vtanh.pop %v1201
    %v1204 = vtanh.pop %v1202
    %1207 = vrot.lane.b32.xlu0 %v1203, 64
    %v1208 = vpop.permute.xlu0 %1207
    %1209 = vrot.lane.b32.xlu0 %v1204, 64
    %v1210 = vpop.permute.xlu0 %1209
    %v1213 = vmul.f32 %v1170, %v1208
    %v1214 = vmul.f32 %v1172, %v1210
    %1217 = vrot.lane.b32.xlu0 %v1213, 32
    %v1218 = vpop.permute.xlu0 %1217
    %1219 = vrot.lane.b32.xlu0 %v1214, 32
    %v1220 = vpop.permute.xlu0 %1219
    %vm1223 = vcmask 260102
    %1224 = vst.msk [vmem:[#allocation10] sm:$0x40] %vm1223, %v1218
    %1225 = vst.msk [vmem:[#allocation10 + $0x10] sm:$0x40] %vm1223, %v1220
    %v1226 = vrot.slane %v1213, 6
    %v1227 = vrot.slane %v1214, 5
    %v1228 = vsel %vm335, %v1227, %v1226
    %1229 = vrot.lane.b32.xlu0 %v1228, 32
    %v1230 = vpop.permute.xlu0 %1229
    %v1231 = vsel %vm187, %v1230, 0
    %1233 = vmatprep.subr.mxu0 0.0
    %1234 = vmatpush1.msra.mxu0 0.0
    %1235 = vmatprep.subr.mxu0 0.0
    %1236 = vmatpush1.msra.mxu0 0.0
    %1237 = vmatprep.subr.mxu0 0.0
    %1238 = vmatpush1.msra.mxu0 0.0
    %1239 = vmatprep.subr.mxu0 0.0
    %1240 = vmatpush1.msra.mxu0 0.0
    %1241 = vmatprep.subr.mxu0 0.0
    %1242 = vmatpush1.msra.mxu0 0.0
    %1243 = vmatprep.subr.mxu0 0.0
    %1244 = vmatpush1.msra.mxu0 0.0
    %1245 = vmatprep.subr.mxu0 0.0
    %1246 = vmatpush1.msra.mxu0 0.0
    %1247 = vmatprep.subr.mxu0 0.0
    %1248 = vmatpush1.msra.mxu0 0.0
    %1249 = vmatprep.subr.mxu0 0.0
    %1250 = vmatpush1.msra.mxu0 0.0
    %1251 = vmatprep.subr.mxu0 0.0
    %1252 = vmatpush1.msra.mxu0 0.0
    %1253 = vmatprep.subr.mxu0 0.0
    %1254 = vmatpush1.msra.mxu0 0.0
    %1255 = vmatprep.subr.mxu0 0.0
    %1256 = vmatpush1.msra.mxu0 0.0
    %1257 = vmatprep.subr.mxu0 0.0
    %1258 = vmatpush1.msra.mxu0 %v184
    %1259 = vmatprep.subr.mxu0 0.0
    %1260 = vmatpush1.msra.mxu0 %v183
    %1261 = vmatprep.subr.mxu0 0.0
    %1262 = vmatpush1.msra.mxu0 %v182
    %1263 = vmatprep.subr.mxu0 0.0
    %1264 = vmatpush1.msra.mxu0 %v181
    %1265 = vmatprep.subr.mxu0 0.0
    %1266 = vmatpush2.msra.mxu0 0.0
    %1267 = vmatprep.subr.mxu0 0.0
    %1268 = vmatpush2.msra.mxu0 0.0
    %1269 = vmatprep.subr.mxu0 0.0
    %1270 = vmatpush2.msra.mxu0 0.0
    %1271 = vmatprep.subr.mxu0 0.0
    %1272 = vmatpush2.msra.mxu0 0.0
    %1273 = vmatprep.subr.mxu0 0.0
    %1274 = vmatpush2.msra.mxu0 0.0
    %1275 = vmatprep.subr.mxu0 0.0
    %1276 = vmatpush2.msra.mxu0 0.0
    %1277 = vmatprep.subr.mxu0 0.0
    %1278 = vmatpush2.msra.mxu0 0.0
    %1279 = vmatprep.subr.mxu0 0.0
    %1280 = vmatpush2.msra.mxu0 0.0
    %1281 = vmatprep.subr.mxu0 0.0
    %1282 = vmatpush2.msra.mxu0 0.0
    %1283 = vmatprep.subr.mxu0 0.0
    %1284 = vmatpush2.msra.mxu0 0.0
    %1285 = vmatprep.subr.mxu0 0.0
    %1286 = vmatpush2.msra.mxu0 0.0
    %1287 = vmatprep.subr.mxu0 0.0
    %1288 = vmatpush2.msra.mxu0 0.0
    %1289 = vmatprep.subr.mxu0 0.0
    %1290 = vmatpush2.msra.mxu0 0.0
    %1291 = vmatprep.subr.mxu0 0.0
    %1292 = vmatpush2.msra.mxu0 0.0
    %1293 = vmatprep.subr.mxu0 0.0
    %1294 = vmatpush2.msra.mxu0 0.0
    %1295 = vmatprep.subr.mxu0 0.0
    %1296 = vmatpush2.msra.mxu0 0.0
    %1297 = vmatprep.mubr.f32.mxu0 0.0
    %1298 = vmatmul.mubr.f32.gmra.mxu0 %v1231
    %v1299 = vpop.f32.mrf.mxu0
    %v1300 = vadd.f32 0.0, %v1299
    %v1301 = vpop.f32.mrf.mxu0
    %1302 = vdwg.mxu0
    %v1304 = vrot.slane %v1300, 1
    %v1305 = vrot.slane %v1300, 2
    %v1308 = vadd.f32 %v163, %v1304
    %v1309 = vadd.f32 %v173, %v1305
    %v1310 = vxor.u32 %v1308, 2147483648
    %v1311 = vxor.u32 %v1309, 2147483648
    %v1312 = vmul.f32 %v1310, 1.442695
    %v1313 = vpow.pop %v1312
    %v1314 = vmul.f32 %v1311, 1.442695
    %v1315 = vpow.pop %v1314
    %v1316 = vadd.f32 %v1313, 1.0
    %v1317 = vadd.f32 %v1315, 1.0
    %v1318 = vrcp.pop %v1316
    %v1319 = vmul.f32 1.0, %v1318
    %v1320 = vrcp.pop %v1317
    %v1321 = vmul.f32 1.0, %v1320
    %v1322 = vtanh.pop %v1308
    %v1323 = vtanh.pop %v1309
    %v1326 = vrot.slane %v1201, 7
    %v1327 = vrot.slane %v1202, 7
    %v1330 = vmul.f32 %v1319, %v1326
    %v1331 = vmul.f32 %v1321, %v1327
    %1334 = vrot.lane.b32.xlu0 %v1322, 64
    %v1335 = vpop.permute.xlu0 %1334
    %1336 = vrot.lane.b32.xlu0 %v1323, 64
    %v1337 = vpop.permute.xlu0 %1336
    %v1340 = vmul.f32 %v1319, %v1335
    %v1341 = vmul.f32 %v1321, %v1337
    %1344 = vrot.lane.b32.xlu0 %v1340, 32
    %v1345 = vpop.permute.xlu0 %1344
    %1346 = vrot.lane.b32.xlu0 %v1341, 32
    %v1347 = vpop.permute.xlu0 %1346
    %v1350 = vadd.f32 %v1330, %v1345
    %v1351 = vadd.f32 %v1331, %v1347
    %v1352 = vtanh.pop %v1350
    %v1353 = vtanh.pop %v1351
    %1356 = vrot.lane.b32.xlu0 %v1352, 64
    %v1357 = vpop.permute.xlu0 %1356
    %1358 = vrot.lane.b32.xlu0 %v1353, 64
    %v1359 = vpop.permute.xlu0 %1358
    %v1362 = vmul.f32 %v1319, %v1357
    %v1363 = vmul.f32 %v1321, %v1359
    %1366 = vrot.lane.b32.xlu0 %v1362, 32
    %v1367 = vpop.permute.xlu0 %1366
    %1368 = vrot.lane.b32.xlu0 %v1363, 32
    %v1369 = vpop.permute.xlu0 %1368
    %vm1372 = vcmask 261127
    %1373 = vst.msk [vmem:[#allocation10] sm:$0x80] %vm1372, %v1367
    %1374 = vst.msk [vmem:[#allocation10 + $0x10] sm:$0x80] %vm1372, %v1369
    %v1375 = vrot.slane %v1362, 7
    %v1376 = vrot.slane %v1363, 6
    %v1377 = vsel %vm335, %v1376, %v1375
    %1378 = vrot.lane.b32.xlu0 %v1377, 32
    %v1379 = vpop.permute.xlu0 %1378
    %v1380 = vsel %vm187, %v1379, 0
    %1382 = vmatprep.subr.mxu0 0.0
    %1383 = vmatpush1.msra.mxu0 0.0
    %1384 = vmatprep.subr.mxu0 0.0
    %1385 = vmatpush1.msra.mxu0 0.0
    %1386 = vmatprep.subr.mxu0 0.0
    %1387 = vmatpush1.msra.mxu0 0.0
    %1388 = vmatprep.subr.mxu0 0.0
    %1389 = vmatpush1.msra.mxu0 0.0
    %1390 = vmatprep.subr.mxu0 0.0
    %1391 = vmatpush1.msra.mxu0 0.0
    %1392 = vmatprep.subr.mxu0 0.0
    %1393 = vmatpush1.msra.mxu0 0.0
    %1394 = vmatprep.subr.mxu0 0.0
    %1395 = vmatpush1.msra.mxu0 0.0
    %1396 = vmatprep.subr.mxu0 0.0
    %1397 = vmatpush1.msra.mxu0 0.0
    %1398 = vmatprep.subr.mxu0 0.0
    %1399 = vmatpush1.msra.mxu0 0.0
    %1400 = vmatprep.subr.mxu0 0.0
    %1401 = vmatpush1.msra.mxu0 0.0
    %1402 = vmatprep.subr.mxu0 0.0
    %1403 = vmatpush1.msra.mxu0 0.0
    %1404 = vmatprep.subr.mxu0 0.0
    %1405 = vmatpush1.msra.mxu0 0.0
    %1406 = vmatprep.subr.mxu0 0.0
    %1407 = vmatpush1.msra.mxu0 %v184
    %1408 = vmatprep.subr.mxu0 0.0
    %1409 = vmatpush1.msra.mxu0 %v183
    %1410 = vmatprep.subr.mxu0 0.0
    %1411 = vmatpush1.msra.mxu0 %v182
    %1412 = vmatprep.subr.mxu0 0.0
    %1413 = vmatpush1.msra.mxu0 %v181
    %1414 = vmatprep.subr.mxu0 0.0
    %1415 = vmatpush2.msra.mxu0 0.0
    %1416 = vmatprep.subr.mxu0 0.0
    %1417 = vmatpush2.msra.mxu0 0.0
    %1418 = vmatprep.subr.mxu0 0.0
    %1419 = vmatpush2.msra.mxu0 0.0
    %1420 = vmatprep.subr.mxu0 0.0
    %1421 = vmatpush2.msra.mxu0 0.0
    %1422 = vmatprep.subr.mxu0 0.0
    %1423 = vmatpush2.msra.mxu0 0.0
    %1424 = vmatprep.subr.mxu0 0.0
    %1425 = vmatpush2.msra.mxu0 0.0
    %1426 = vmatprep.subr.mxu0 0.0
    %1427 = vmatpush2.msra.mxu0 0.0
    %1428 = vmatprep.subr.mxu0 0.0
    %1429 = vmatpush2.msra.mxu0 0.0
    %1430 = vmatprep.subr.mxu0 0.0
    %1431 = vmatpush2.msra.mxu0 0.0
    %1432 = vmatprep.subr.mxu0 0.0
    %1433 = vmatpush2.msra.mxu0 0.0
    %1434 = vmatprep.subr.mxu0 0.0
    %1435 = vmatpush2.msra.mxu0 0.0
    %1436 = vmatprep.subr.mxu0 0.0
    %1437 = vmatpush2.msra.mxu0 0.0
    %1438 = vmatprep.subr.mxu0 0.0
    %1439 = vmatpush2.msra.mxu0 0.0
    %1440 = vmatprep.subr.mxu0 0.0
    %1441 = vmatpush2.msra.mxu0 0.0
    %1442 = vmatprep.subr.mxu0 0.0
    %1443 = vmatpush2.msra.mxu0 0.0
    %1444 = vmatprep.subr.mxu0 0.0
    %1445 = vmatpush2.msra.mxu0 0.0
    %1446 = vmatprep.mubr.f32.mxu0 0.0
    %1447 = vmatmul.mubr.f32.gmra.mxu0 %v1380
    %v1448 = vpop.f32.mrf.mxu0
    %v1449 = vadd.f32 0.0, %v1448
    %v1450 = vpop.f32.mrf.mxu0
    %1451 = vdwg.mxu0
    %v1453 = vrot.slane %v1449, 1
    %v1456 = vadd.f32 %v168, %v1449
    %v1457 = vadd.f32 %v178, %v1453
    %v1458 = vxor.u32 %v1456, 2147483648
    %v1459 = vxor.u32 %v1457, 2147483648
    %v1460 = vmul.f32 %v1458, 1.442695
    %v1461 = vpow.pop %v1460
    %v1462 = vmul.f32 %v1459, 1.442695
    %v1463 = vpow.pop %v1462
    %v1464 = vadd.f32 %v1461, 1.0
    %v1465 = vadd.f32 %v1463, 1.0
    %v1466 = vrcp.pop %v1464
    %v1467 = vmul.f32 1.0, %v1466
    %v1468 = vrcp.pop %v1465
    %v1469 = vmul.f32 1.0, %v1468
    %v1470 = vtanh.pop %v1456
    %v1471 = vtanh.pop %v1457
    %v1474 = vrot.slane %v1350, 7
    %v1475 = vrot.slane %v1351, 7
    %v1478 = vmul.f32 %v1467, %v1474
    %v1479 = vmul.f32 %v1469, %v1475
    %1482 = vrot.lane.b32.xlu0 %v1470, 64
    %v1483 = vpop.permute.xlu0 %1482
    %1484 = vrot.lane.b32.xlu0 %v1471, 64
    %v1485 = vpop.permute.xlu0 %1484
    %v1488 = vmul.f32 %v1467, %v1483
    %v1489 = vmul.f32 %v1469, %v1485
    %1492 = vrot.lane.b32.xlu0 %v1488, 32
    %v1493 = vpop.permute.xlu0 %1492
    %1494 = vrot.lane.b32.xlu0 %v1489, 32
    %v1495 = vpop.permute.xlu0 %1494
    %v1498 = vadd.f32 %v1478, %v1493
    %v1499 = vadd.f32 %v1479, %v1495
    %v1500 = vtanh.pop %v1498
    %v1501 = vtanh.pop %v1499
    %1504 = vrot.lane.b32.xlu0 %v1500, 64
    %v1505 = vpop.permute.xlu0 %1504
    %1506 = vrot.lane.b32.xlu0 %v1501, 64
    %v1507 = vpop.permute.xlu0 %1506
    %v1510 = vmul.f32 %v1467, %v1505
    %v1511 = vmul.f32 %v1469, %v1507
    %1514 = vrot.lane.b32.xlu0 %v1510, 32
    %v1515 = vpop.permute.xlu0 %1514
    %1516 = vrot.lane.b32.xlu0 %v1511, 32
    %v1517 = vpop.permute.xlu0 %1516
    %1520 = vst.msk [vmem:[#allocation10 + $0x8] sm:$0x1] %vm331, %v1515
    %1521 = vst.msk [vmem:[#allocation10 + $0x18] sm:$0x1] %vm331, %v1517
    %v1522 = vrot.slane %v1511, 7
    %v1523 = vsel %vm335, %v1522, %v1510
    %1524 = vrot.lane.b32.xlu0 %v1523, 32
    %v1525 = vpop.permute.xlu0 %1524
    %v1526 = vsel %vm187, %v1525, 0
    %1528 = vmatprep.subr.mxu0 0.0
    %1529 = vmatpush1.msra.mxu0 0.0
    %1530 = vmatprep.subr.mxu0 0.0
    %1531 = vmatpush1.msra.mxu0 0.0
    %1532 = vmatprep.subr.mxu0 0.0
    %1533 = vmatpush1.msra.mxu0 0.0
    %1534 = vmatprep.subr.mxu0 0.0
    %1535 = vmatpush1.msra.mxu0 0.0
    %1536 = vmatprep.subr.mxu0 0.0
    %1537 = vmatpush1.msra.mxu0 0.0
    %1538 = vmatprep.subr.mxu0 0.0
    %1539 = vmatpush1.msra.mxu0 0.0
    %1540 = vmatprep.subr.mxu0 0.0
    %1541 = vmatpush1.msra.mxu0 0.0
    %1542 = vmatprep.subr.mxu0 0.0
    %1543 = vmatpush1.msra.mxu0 0.0
    %1544 = vmatprep.subr.mxu0 0.0
    %1545 = vmatpush1.msra.mxu0 0.0
    %1546 = vmatprep.subr.mxu0 0.0
    %1547 = vmatpush1.msra.mxu0 0.0
    %1548 = vmatprep.subr.mxu0 0.0
    %1549 = vmatpush1.msra.mxu0 0.0
    %1550 = vmatprep.subr.mxu0 0.0
    %1551 = vmatpush1.msra.mxu0 0.0
    %1552 = vmatprep.subr.mxu0 0.0
    %1553 = vmatpush1.msra.mxu0 %v184
    %1554 = vmatprep.subr.mxu0 0.0
    %1555 = vmatpush1.msra.mxu0 %v183
    %1556 = vmatprep.subr.mxu0 0.0
    %1557 = vmatpush1.msra.mxu0 %v182
    %1558 = vmatprep.subr.mxu0 0.0
    %1559 = vmatpush1.msra.mxu0 %v181
    %1560 = vmatprep.subr.mxu0 0.0
    %1561 = vmatpush2.msra.mxu0 0.0
    %1562 = vmatprep.subr.mxu0 0.0
    %1563 = vmatpush2.msra.mxu0 0.0
    %1564 = vmatprep.subr.mxu0 0.0
    %1565 = vmatpush2.msra.mxu0 0.0
    %1566 = vmatprep.subr.mxu0 0.0
    %1567 = vmatpush2.msra.mxu0 0.0
    %1568 = vmatprep.subr.mxu0 0.0
    %1569 = vmatpush2.msra.mxu0 0.0
    %1570 = vmatprep.subr.mxu0 0.0
    %1571 = vmatpush2.msra.mxu0 0.0
    %1572 = vmatprep.subr.mxu0 0.0
    %1573 = vmatpush2.msra.mxu0 0.0
    %1574 = vmatprep.subr.mxu0 0.0
    %1575 = vmatpush2.msra.mxu0 0.0
    %1576 = vmatprep.subr.mxu0 0.0
    %1577 = vmatpush2.msra.mxu0 0.0
    %1578 = vmatprep.subr.mxu0 0.0
    %1579 = vmatpush2.msra.mxu0 0.0
    %1580 = vmatprep.subr.mxu0 0.0
    %1581 = vmatpush2.msra.mxu0 0.0
    %1582 = vmatprep.subr.mxu0 0.0
    %1583 = vmatpush2.msra.mxu0 0.0
    %1584 = vmatprep.subr.mxu0 0.0
    %1585 = vmatpush2.msra.mxu0 0.0
    %1586 = vmatprep.subr.mxu0 0.0
    %1587 = vmatpush2.msra.mxu0 0.0
    %1588 = vmatprep.subr.mxu0 0.0
    %1589 = vmatpush2.msra.mxu0 0.0
    %1590 = vmatprep.subr.mxu0 0.0
    %1591 = vmatpush2.msra.mxu0 0.0
    %1592 = vmatprep.mubr.f32.mxu0 0.0
    %1593 = vmatmul.mubr.f32.gmra.mxu0 %v1526
    %v1594 = vpop.f32.mrf.mxu0
    %v1595 = vadd.f32 0.0, %v1594
    %v1596 = vpop.f32.mrf.mxu0
    %1597 = vdwg.mxu0
    %v1599 = vrot.slane %v1595, 7
    %v1602 = vadd.f32 %v168, %v1599
    %v1603 = vadd.f32 %v178, %v1595
    %v1604 = vxor.u32 %v1602, 2147483648
    %v1605 = vxor.u32 %v1603, 2147483648
    %v1606 = vmul.f32 %v1604, 1.442695
    %v1607 = vpow.pop %v1606
    %v1608 = vmul.f32 %v1605, 1.442695
    %v1609 = vpow.pop %v1608
    %v1610 = vadd.f32 %v1607, 1.0
    %v1611 = vadd.f32 %v1609, 1.0
    %v1612 = vrcp.pop %v1610
    %v1613 = vmul.f32 1.0, %v1612
    %v1614 = vrcp.pop %v1611
    %v1615 = vmul.f32 1.0, %v1614
    %v1616 = vtanh.pop %v1602
    %v1617 = vtanh.pop %v1603
    %v1620 = vrot.slane %v1498, 7
    %v1621 = vrot.slane %v1499, 7
    %v1624 = vmul.f32 %v1613, %v1620
    %v1625 = vmul.f32 %v1615, %v1621
    %1628 = vrot.lane.b32.xlu0 %v1616, 64
    %v1629 = vpop.permute.xlu0 %1628
    %1630 = vrot.lane.b32.xlu0 %v1617, 64
    %v1631 = vpop.permute.xlu0 %1630
    %v1634 = vmul.f32 %v1613, %v1629
    %v1635 = vmul.f32 %v1615, %v1631
    %1638 = vrot.lane.b32.xlu0 %v1634, 32
    %v1639 = vpop.permute.xlu0 %1638
    %1640 = vrot.lane.b32.xlu0 %v1635, 32
    %v1641 = vpop.permute.xlu0 %1640
    %v1644 = vadd.f32 %v1624, %v1639
    %v1645 = vadd.f32 %v1625, %v1641
    %v1646 = vtanh.pop %v1644
    %v1647 = vtanh.pop %v1645
    %1650 = vrot.lane.b32.xlu0 %v1646, 64
    %v1651 = vpop.permute.xlu0 %1650
    %1652 = vrot.lane.b32.xlu0 %v1647, 64
    %v1653 = vpop.permute.xlu0 %1652
    %v1656 = vmul.f32 %v1613, %v1651
    %v1657 = vmul.f32 %v1615, %v1653
    %1660 = vrot.lane.b32.xlu0 %v1656, 32
    %v1661 = vpop.permute.xlu0 %1660
    %1662 = vrot.lane.b32.xlu0 %v1657, 32
    %v1663 = vpop.permute.xlu0 %1662
    %1666 = vst.msk [vmem:[#allocation10 + $0x8] sm:$0x2] %vm479, %v1661
    %1667 = vst.msk [vmem:[#allocation10 + $0x18] sm:$0x2] %vm479, %v1663
    %v1668 = vrot.slane %v1656, 1
    %v1669 = vsel %vm335, %v1657, %v1668
    %1670 = vrot.lane.b32.xlu0 %v1669, 32
    %v1671 = vpop.permute.xlu0 %1670
    %v1672 = vsel %vm187, %v1671, 0
    %1674 = vmatprep.subr.mxu0 0.0
    %1675 = vmatpush1.msra.mxu0 0.0
    %1676 = vmatprep.subr.mxu0 0.0
    %1677 = vmatpush1.msra.mxu0 0.0
    %1678 = vmatprep.subr.mxu0 0.0
    %1679 = vmatpush1.msra.mxu0 0.0
    %1680 = vmatprep.subr.mxu0 0.0
    %1681 = vmatpush1.msra.mxu0 0.0
    %1682 = vmatprep.subr.mxu0 0.0
    %1683 = vmatpush1.msra.mxu0 0.0
    %1684 = vmatprep.subr.mxu0 0.0
    %1685 = vmatpush1.msra.mxu0 0.0
    %1686 = vmatprep.subr.mxu0 0.0
    %1687 = vmatpush1.msra.mxu0 0.0
    %1688 = vmatprep.subr.mxu0 0.0
    %1689 = vmatpush1.msra.mxu0 0.0
    %1690 = vmatprep.subr.mxu0 0.0
    %1691 = vmatpush1.msra.mxu0 0.0
    %1692 = vmatprep.subr.mxu0 0.0
    %1693 = vmatpush1.msra.mxu0 0.0
    %1694 = vmatprep.subr.mxu0 0.0
    %1695 = vmatpush1.msra.mxu0 0.0
    %1696 = vmatprep.subr.mxu0 0.0
    %1697 = vmatpush1.msra.mxu0 0.0
    %1698 = vmatprep.subr.mxu0 0.0
    %1699 = vmatpush1.msra.mxu0 %v184
    %1700 = vmatprep.subr.mxu0 0.0
    %1701 = vmatpush1.msra.mxu0 %v183
    %1702 = vmatprep.subr.mxu0 0.0
    %1703 = vmatpush1.msra.mxu0 %v182
    %1704 = vmatprep.subr.mxu0 0.0
    %1705 = vmatpush1.msra.mxu0 %v181
    %1706 = vmatprep.subr.mxu0 0.0
    %1707 = vmatpush2.msra.mxu0 0.0
    %1708 = vmatprep.subr.mxu0 0.0
    %1709 = vmatpush2.msra.mxu0 0.0
    %1710 = vmatprep.subr.mxu0 0.0
    %1711 = vmatpush2.msra.mxu0 0.0
    %1712 = vmatprep.subr.mxu0 0.0
    %1713 = vmatpush2.msra.mxu0 0.0
    %1714 = vmatprep.subr.mxu0 0.0
    %1715 = vmatpush2.msra.mxu0 0.0
    %1716 = vmatprep.subr.mxu0 0.0
    %1717 = vmatpush2.msra.mxu0 0.0
    %1718 = vmatprep.subr.mxu0 0.0
    %1719 = vmatpush2.msra.mxu0 0.0
    %1720 = vmatprep.subr.mxu0 0.0
    %1721 = vmatpush2.msra.mxu0 0.0
    %1722 = vmatprep.subr.mxu0 0.0
    %1723 = vmatpush2.msra.mxu0 0.0
    %1724 = vmatprep.subr.mxu0 0.0
    %1725 = vmatpush2.msra.mxu0 0.0
    %1726 = vmatprep.subr.mxu0 0.0
    %1727 = vmatpush2.msra.mxu0 0.0
    %1728 = vmatprep.subr.mxu0 0.0
    %1729 = vmatpush2.msra.mxu0 0.0
    %1730 = vmatprep.subr.mxu0 0.0
    %1731 = vmatpush2.msra.mxu0 0.0
    %1732 = vmatprep.subr.mxu0 0.0
    %1733 = vmatpush2.msra.mxu0 0.0
    %1734 = vmatprep.subr.mxu0 0.0
    %1735 = vmatpush2.msra.mxu0 0.0
    %1736 = vmatprep.subr.mxu0 0.0
    %1737 = vmatpush2.msra.mxu0 0.0
    %1738 = vmatprep.mubr.f32.mxu0 0.0
    %1739 = vmatmul.mubr.f32.gmra.mxu0 %v1672
    %v1740 = vpop.f32.mrf.mxu0
    %v1741 = vadd.f32 0.0, %v1740
    %v1742 = vpop.f32.mrf.mxu0
    %1743 = vdwg.mxu0
    %v1745 = vrot.slane %v1741, 6
    %v1746 = vrot.slane %v1741, 7
    %v1749 = vadd.f32 %v168, %v1745
    %v1750 = vadd.f32 %v178, %v1746
    %v1751 = vxor.u32 %v1749, 2147483648
    %v1752 = vxor.u32 %v1750, 2147483648
    %v1753 = vmul.f32 %v1751, 1.442695
    %v1754 = vpow.pop %v1753
    %v1755 = vmul.f32 %v1752, 1.442695
    %v1756 = vpow.pop %v1755
    %v1757 = vadd.f32 %v1754, 1.0
    %v1758 = vadd.f32 %v1756, 1.0
    %v1759 = vrcp.pop %v1757
    %v1760 = vmul.f32 1.0, %v1759
    %v1761 = vrcp.pop %v1758
    %v1762 = vmul.f32 1.0, %v1761
    %v1763 = vtanh.pop %v1749
    %v1764 = vtanh.pop %v1750
    %v1767 = vrot.slane %v1644, 7
    %v1768 = vrot.slane %v1645, 7
    %v1771 = vmul.f32 %v1760, %v1767
    %v1772 = vmul.f32 %v1762, %v1768
    %1775 = vrot.lane.b32.xlu0 %v1763, 64
    %v1776 = vpop.permute.xlu0 %1775
    %1777 = vrot.lane.b32.xlu0 %v1764, 64
    %v1778 = vpop.permute.xlu0 %1777
    %v1781 = vmul.f32 %v1760, %v1776
    %v1782 = vmul.f32 %v1762, %v1778
    %1785 = vrot.lane.b32.xlu0 %v1781, 32
    %v1786 = vpop.permute.xlu0 %1785
    %1787 = vrot.lane.b32.xlu0 %v1782, 32
    %v1788 = vpop.permute.xlu0 %1787
    %v1791 = vadd.f32 %v1771, %v1786
    %v1792 = vadd.f32 %v1772, %v1788
    %v1793 = vtanh.pop %v1791
    %v1794 = vtanh.pop %v1792
    %1797 = vrot.lane.b32.xlu0 %v1793, 64
    %v1798 = vpop.permute.xlu0 %1797
    %1799 = vrot.lane.b32.xlu0 %v1794, 64
    %v1800 = vpop.permute.xlu0 %1799
    %v1803 = vmul.f32 %v1760, %v1798
    %v1804 = vmul.f32 %v1762, %v1800
    %1807 = vrot.lane.b32.xlu0 %v1803, 32
    %v1808 = vpop.permute.xlu0 %1807
    %1809 = vrot.lane.b32.xlu0 %v1804, 32
    %v1810 = vpop.permute.xlu0 %1809
    %1813 = vst.msk [vmem:[#allocation10 + $0x8] sm:$0x4] %vm627, %v1808
    %1814 = vst.msk [vmem:[#allocation10 + $0x18] sm:$0x4] %vm627, %v1810
    %v1815 = vrot.slane %v1803, 2
    %v1816 = vrot.slane %v1804, 1
    %v1817 = vsel %vm335, %v1816, %v1815
    %1818 = vrot.lane.b32.xlu0 %v1817, 32
    %v1819 = vpop.permute.xlu0 %1818
    %v1820 = vsel %vm187, %v1819, 0
    %1822 = vmatprep.subr.mxu0 0.0
    %1823 = vmatpush1.msra.mxu0 0.0
    %1824 = vmatprep.subr.mxu0 0.0
    %1825 = vmatpush1.msra.mxu0 0.0
    %1826 = vmatprep.subr.mxu0 0.0
    %1827 = vmatpush1.msra.mxu0 0.0
    %1828 = vmatprep.subr.mxu0 0.0
    %1829 = vmatpush1.msra.mxu0 0.0
    %1830 = vmatprep.subr.mxu0 0.0
    %1831 = vmatpush1.msra.mxu0 0.0
    %1832 = vmatprep.subr.mxu0 0.0
    %1833 = vmatpush1.msra.mxu0 0.0
    %1834 = vmatprep.subr.mxu0 0.0
    %1835 = vmatpush1.msra.mxu0 0.0
    %1836 = vmatprep.subr.mxu0 0.0
    %1837 = vmatpush1.msra.mxu0 0.0
    %1838 = vmatprep.subr.mxu0 0.0
    %1839 = vmatpush1.msra.mxu0 0.0
    %1840 = vmatprep.subr.mxu0 0.0
    %1841 = vmatpush1.msra.mxu0 0.0
    %1842 = vmatprep.subr.mxu0 0.0
    %1843 = vmatpush1.msra.mxu0 0.0
    %1844 = vmatprep.subr.mxu0 0.0
    %1845 = vmatpush1.msra.mxu0 0.0
    %1846 = vmatprep.subr.mxu0 0.0
    %1847 = vmatpush1.msra.mxu0 %v184
    %1848 = vmatprep.subr.mxu0 0.0
    %1849 = vmatpush1.msra.mxu0 %v183
    %1850 = vmatprep.subr.mxu0 0.0
    %1851 = vmatpush1.msra.mxu0 %v182
    %1852 = vmatprep.subr.mxu0 0.0
    %1853 = vmatpush1.msra.mxu0 %v181
    %1854 = vmatprep.subr.mxu0 0.0
    %1855 = vmatpush2.msra.mxu0 0.0
    %1856 = vmatprep.subr.mxu0 0.0
    %1857 = vmatpush2.msra.mxu0 0.0
    %1858 = vmatprep.subr.mxu0 0.0
    %1859 = vmatpush2.msra.mxu0 0.0
    %1860 = vmatprep.subr.mxu0 0.0
    %1861 = vmatpush2.msra.mxu0 0.0
    %1862 = vmatprep.subr.mxu0 0.0
    %1863 = vmatpush2.msra.mxu0 0.0
    %1864 = vmatprep.subr.mxu0 0.0
    %1865 = vmatpush2.msra.mxu0 0.0
    %1866 = vmatprep.subr.mxu0 0.0
    %1867 = vmatpush2.msra.mxu0 0.0
    %1868 = vmatprep.subr.mxu0 0.0
    %1869 = vmatpush2.msra.mxu0 0.0
    %1870 = vmatprep.subr.mxu0 0.0
    %1871 = vmatpush2.msra.mxu0 0.0
    %1872 = vmatprep.subr.mxu0 0.0
    %1873 = vmatpush2.msra.mxu0 0.0
    %1874 = vmatprep.subr.mxu0 0.0
    %1875 = vmatpush2.msra.mxu0 0.0
    %1876 = vmatprep.subr.mxu0 0.0
    %1877 = vmatpush2.msra.mxu0 0.0
    %1878 = vmatprep.subr.mxu0 0.0
    %1879 = vmatpush2.msra.mxu0 0.0
    %1880 = vmatprep.subr.mxu0 0.0
    %1881 = vmatpush2.msra.mxu0 0.0
    %1882 = vmatprep.subr.mxu0 0.0
    %1883 = vmatpush2.msra.mxu0 0.0
    %1884 = vmatprep.subr.mxu0 0.0
    %1885 = vmatpush2.msra.mxu0 0.0
    %1886 = vmatprep.mubr.f32.mxu0 0.0
    %1887 = vmatmul.mubr.f32.gmra.mxu0 %v1820
    %v1888 = vpop.f32.mrf.mxu0
    %v1889 = vadd.f32 0.0, %v1888
    %v1890 = vpop.f32.mrf.mxu0
    %1891 = vdwg.mxu0
    %v1893 = vrot.slane %v1889, 5
    %v1894 = vrot.slane %v1889, 6
    %v1897 = vadd.f32 %v168, %v1893
    %v1898 = vadd.f32 %v178, %v1894
    %v1899 = vxor.u32 %v1897, 2147483648
    %v1900 = vxor.u32 %v1898, 2147483648
    %v1901 = vmul.f32 %v1899, 1.442695
    %v1902 = vpow.pop %v1901
    %v1903 = vmul.f32 %v1900, 1.442695
    %v1904 = vpow.pop %v1903
    %v1905 = vadd.f32 %v1902, 1.0
    %v1906 = vadd.f32 %v1904, 1.0
    %v1907 = vrcp.pop %v1905
    %v1908 = vmul.f32 1.0, %v1907
    %v1909 = vrcp.pop %v1906
    %v1910 = vmul.f32 1.0, %v1909
    %v1911 = vtanh.pop %v1897
    %v1912 = vtanh.pop %v1898
    %v1915 = vrot.slane %v1791, 7
    %v1916 = vrot.slane %v1792, 7
    %v1919 = vmul.f32 %v1908, %v1915
    %v1920 = vmul.f32 %v1910, %v1916
    %1923 = vrot.lane.b32.xlu0 %v1911, 64
    %v1924 = vpop.permute.xlu0 %1923
    %1925 = vrot.lane.b32.xlu0 %v1912, 64
    %v1926 = vpop.permute.xlu0 %1925
    %v1929 = vmul.f32 %v1908, %v1924
    %v1930 = vmul.f32 %v1910, %v1926
    %1933 = vrot.lane.b32.xlu0 %v1929, 32
    %v1934 = vpop.permute.xlu0 %1933
    %1935 = vrot.lane.b32.xlu0 %v1930, 32
    %v1936 = vpop.permute.xlu0 %1935
    %v1939 = vadd.f32 %v1919, %v1934
    %v1940 = vadd.f32 %v1920, %v1936
    %v1941 = vtanh.pop %v1939
    %v1942 = vtanh.pop %v1940
    %1945 = vrot.lane.b32.xlu0 %v1941, 64
    %v1946 = vpop.permute.xlu0 %1945
    %1947 = vrot.lane.b32.xlu0 %v1942, 64
    %v1948 = vpop.permute.xlu0 %1947
    %v1951 = vmul.f32 %v1908, %v1946
    %v1952 = vmul.f32 %v1910, %v1948
    %1955 = vrot.lane.b32.xlu0 %v1951, 32
    %v1956 = vpop.permute.xlu0 %1955
    %1957 = vrot.lane.b32.xlu0 %v1952, 32
    %v1958 = vpop.permute.xlu0 %1957
    %1961 = vst.msk [vmem:[#allocation10 + $0x8] sm:$0x8] %vm776, %v1956
    %1962 = vst.msk [vmem:[#allocation10 + $0x18] sm:$0x8] %vm776, %v1958
    %v1963 = vrot.slane %v1951, 3
    %v1964 = vrot.slane %v1952, 2
    %v1965 = vsel %vm335, %v1964, %v1963
    %1966 = vrot.lane.b32.xlu0 %v1965, 32
    %v1967 = vpop.permute.xlu0 %1966
    %v1968 = vsel %vm187, %v1967, 0
    %1970 = vmatprep.subr.mxu0 0.0
    %1971 = vmatpush1.msra.mxu0 0.0
    %1972 = vmatprep.subr.mxu0 0.0
    %1973 = vmatpush1.msra.mxu0 0.0
    %1974 = vmatprep.subr.mxu0 0.0
    %1975 = vmatpush1.msra.mxu0 0.0
    %1976 = vmatprep.subr.mxu0 0.0
    %1977 = vmatpush1.msra.mxu0 0.0
    %1978 = vmatprep.subr.mxu0 0.0
    %1979 = vmatpush1.msra.mxu0 0.0
    %1980 = vmatprep.subr.mxu0 0.0
    %1981 = vmatpush1.msra.mxu0 0.0
    %1982 = vmatprep.subr.mxu0 0.0
    %1983 = vmatpush1.msra.mxu0 0.0
    %1984 = vmatprep.subr.mxu0 0.0
    %1985 = vmatpush1.msra.mxu0 0.0
    %1986 = vmatprep.subr.mxu0 0.0
    %1987 = vmatpush1.msra.mxu0 0.0
    %1988 = vmatprep.subr.mxu0 0.0
    %1989 = vmatpush1.msra.mxu0 0.0
    %1990 = vmatprep.subr.mxu0 0.0
    %1991 = vmatpush1.msra.mxu0 0.0
    %1992 = vmatprep.subr.mxu0 0.0
    %1993 = vmatpush1.msra.mxu0 0.0
    %1994 = vmatprep.subr.mxu0 0.0
    %1995 = vmatpush1.msra.mxu0 %v184
    %1996 = vmatprep.subr.mxu0 0.0
    %1997 = vmatpush1.msra.mxu0 %v183
    %1998 = vmatprep.subr.mxu0 0.0
    %1999 = vmatpush1.msra.mxu0 %v182
    %2000 = vmatprep.subr.mxu0 0.0
    %2001 = vmatpush1.msra.mxu0 %v181
    %2002 = vmatprep.subr.mxu0 0.0
    %2003 = vmatpush2.msra.mxu0 0.0
    %2004 = vmatprep.subr.mxu0 0.0
    %2005 = vmatpush2.msra.mxu0 0.0
    %2006 = vmatprep.subr.mxu0 0.0
    %2007 = vmatpush2.msra.mxu0 0.0
    %2008 = vmatprep.subr.mxu0 0.0
    %2009 = vmatpush2.msra.mxu0 0.0
    %2010 = vmatprep.subr.mxu0 0.0
    %2011 = vmatpush2.msra.mxu0 0.0
    %2012 = vmatprep.subr.mxu0 0.0
    %2013 = vmatpush2.msra.mxu0 0.0
    %2014 = vmatprep.subr.mxu0 0.0
    %2015 = vmatpush2.msra.mxu0 0.0
    %2016 = vmatprep.subr.mxu0 0.0
    %2017 = vmatpush2.msra.mxu0 0.0
    %2018 = vmatprep.subr.mxu0 0.0
    %2019 = vmatpush2.msra.mxu0 0.0
    %2020 = vmatprep.subr.mxu0 0.0
    %2021 = vmatpush2.msra.mxu0 0.0
    %2022 = vmatprep.subr.mxu0 0.0
    %2023 = vmatpush2.msra.mxu0 0.0
    %2024 = vmatprep.subr.mxu0 0.0
    %2025 = vmatpush2.msra.mxu0 0.0
    %2026 = vmatprep.subr.mxu0 0.0
    %2027 = vmatpush2.msra.mxu0 0.0
    %2028 = vmatprep.subr.mxu0 0.0
    %2029 = vmatpush2.msra.mxu0 0.0
    %2030 = vmatprep.subr.mxu0 0.0
    %2031 = vmatpush2.msra.mxu0 0.0
    %2032 = vmatprep.subr.mxu0 0.0
    %2033 = vmatpush2.msra.mxu0 0.0
    %2034 = vmatprep.mubr.f32.mxu0 0.0
    %2035 = vmatmul.mubr.f32.gmra.mxu0 %v1968
    %v2036 = vpop.f32.mrf.mxu0
    %v2037 = vadd.f32 0.0, %v2036
    %v2038 = vpop.f32.mrf.mxu0
    %2039 = vdwg.mxu0
    %v2041 = vrot.slane %v2037, 4
    %v2042 = vrot.slane %v2037, 5
    %v2045 = vadd.f32 %v168, %v2041
    %v2046 = vadd.f32 %v178, %v2042
    %v2047 = vxor.u32 %v2045, 2147483648
    %v2048 = vxor.u32 %v2046, 2147483648
    %v2049 = vmul.f32 %v2047, 1.442695
    %v2050 = vpow.pop %v2049
    %v2051 = vmul.f32 %v2048, 1.442695
    %v2052 = vpow.pop %v2051
    %v2053 = vadd.f32 %v2050, 1.0
    %v2054 = vadd.f32 %v2052, 1.0
    %v2055 = vrcp.pop %v2053
    %v2056 = vmul.f32 1.0, %v2055
    %v2057 = vrcp.pop %v2054
    %v2058 = vmul.f32 1.0, %v2057
    %v2059 = vtanh.pop %v2045
    %v2060 = vtanh.pop %v2046
    %v2063 = vrot.slane %v1939, 7
    %v2064 = vrot.slane %v1940, 7
    %v2067 = vmul.f32 %v2056, %v2063
    %v2068 = vmul.f32 %v2058, %v2064
    %2071 = vrot.lane.b32.xlu0 %v2059, 64
    %v2072 = vpop.permute.xlu0 %2071
    %2073 = vrot.lane.b32.xlu0 %v2060, 64
    %v2074 = vpop.permute.xlu0 %2073
    %v2077 = vmul.f32 %v2056, %v2072
    %v2078 = vmul.f32 %v2058, %v2074
    %2081 = vrot.lane.b32.xlu0 %v2077, 32
    %v2082 = vpop.permute.xlu0 %2081
    %2083 = vrot.lane.b32.xlu0 %v2078, 32
    %v2084 = vpop.permute.xlu0 %2083
    %v2087 = vadd.f32 %v2067, %v2082
    %v2088 = vadd.f32 %v2068, %v2084
    %v2089 = vtanh.pop %v2087
    %v2090 = vtanh.pop %v2088
    %2093 = vrot.lane.b32.xlu0 %v2089, 64
    %v2094 = vpop.permute.xlu0 %2093
    %2095 = vrot.lane.b32.xlu0 %v2090, 64
    %v2096 = vpop.permute.xlu0 %2095
    %v2099 = vmul.f32 %v2056, %v2094
    %v2100 = vmul.f32 %v2058, %v2096
    %2103 = vrot.lane.b32.xlu0 %v2099, 32
    %v2104 = vpop.permute.xlu0 %2103
    %2105 = vrot.lane.b32.xlu0 %v2100, 32
    %v2106 = vpop.permute.xlu0 %2105
    %2109 = vst.msk [vmem:[#allocation10 + $0x8] sm:$0x10] %vm925, %v2104
    %2110 = vst.msk [vmem:[#allocation10 + $0x18] sm:$0x10] %vm925, %v2106
    %v2111 = vrot.slane %v2099, 4
    %v2112 = vrot.slane %v2100, 3
    %v2113 = vsel %vm335, %v2112, %v2111
    %2114 = vrot.lane.b32.xlu0 %v2113, 32
    %v2115 = vpop.permute.xlu0 %2114
    %v2116 = vsel %vm187, %v2115, 0
    %2118 = vmatprep.subr.mxu0 0.0
    %2119 = vmatpush1.msra.mxu0 0.0
    %2120 = vmatprep.subr.mxu0 0.0
    %2121 = vmatpush1.msra.mxu0 0.0
    %2122 = vmatprep.subr.mxu0 0.0
    %2123 = vmatpush1.msra.mxu0 0.0
    %2124 = vmatprep.subr.mxu0 0.0
    %2125 = vmatpush1.msra.mxu0 0.0
    %2126 = vmatprep.subr.mxu0 0.0
    %2127 = vmatpush1.msra.mxu0 0.0
    %2128 = vmatprep.subr.mxu0 0.0
    %2129 = vmatpush1.msra.mxu0 0.0
    %2130 = vmatprep.subr.mxu0 0.0
    %2131 = vmatpush1.msra.mxu0 0.0
    %2132 = vmatprep.subr.mxu0 0.0
    %2133 = vmatpush1.msra.mxu0 0.0
    %2134 = vmatprep.subr.mxu0 0.0
    %2135 = vmatpush1.msra.mxu0 0.0
    %2136 = vmatprep.subr.mxu0 0.0
    %2137 = vmatpush1.msra.mxu0 0.0
    %2138 = vmatprep.subr.mxu0 0.0
    %2139 = vmatpush1.msra.mxu0 0.0
    %2140 = vmatprep.subr.mxu0 0.0
    %2141 = vmatpush1.msra.mxu0 0.0
    %2142 = vmatprep.subr.mxu0 0.0
    %2143 = vmatpush1.msra.mxu0 %v184
    %2144 = vmatprep.subr.mxu0 0.0
    %2145 = vmatpush1.msra.mxu0 %v183
    %2146 = vmatprep.subr.mxu0 0.0
    %2147 = vmatpush1.msra.mxu0 %v182
    %2148 = vmatprep.subr.mxu0 0.0
    %2149 = vmatpush1.msra.mxu0 %v181
    %2150 = vmatprep.subr.mxu0 0.0
    %2151 = vmatpush2.msra.mxu0 0.0
    %2152 = vmatprep.subr.mxu0 0.0
    %2153 = vmatpush2.msra.mxu0 0.0
    %2154 = vmatprep.subr.mxu0 0.0
    %2155 = vmatpush2.msra.mxu0 0.0
    %2156 = vmatprep.subr.mxu0 0.0
    %2157 = vmatpush2.msra.mxu0 0.0
    %2158 = vmatprep.subr.mxu0 0.0
    %2159 = vmatpush2.msra.mxu0 0.0
    %2160 = vmatprep.subr.mxu0 0.0
    %2161 = vmatpush2.msra.mxu0 0.0
    %2162 = vmatprep.subr.mxu0 0.0
    %2163 = vmatpush2.msra.mxu0 0.0
    %2164 = vmatprep.subr.mxu0 0.0
    %2165 = vmatpush2.msra.mxu0 0.0
    %2166 = vmatprep.subr.mxu0 0.0
    %2167 = vmatpush2.msra.mxu0 0.0
    %2168 = vmatprep.subr.mxu0 0.0
    %2169 = vmatpush2.msra.mxu0 0.0
    %2170 = vmatprep.subr.mxu0 0.0
    %2171 = vmatpush2.msra.mxu0 0.0
    %2172 = vmatprep.subr.mxu0 0.0
    %2173 = vmatpush2.msra.mxu0 0.0
    %2174 = vmatprep.subr.mxu0 0.0
    %2175 = vmatpush2.msra.mxu0 0.0
    %2176 = vmatprep.subr.mxu0 0.0
    %2177 = vmatpush2.msra.mxu0 0.0
    %2178 = vmatprep.subr.mxu0 0.0
    %2179 = vmatpush2.msra.mxu0 0.0
    %2180 = vmatprep.subr.mxu0 0.0
    %2181 = vmatpush2.msra.mxu0 0.0
    %2182 = vmatprep.mubr.f32.mxu0 0.0
    %2183 = vmatmul.mubr.f32.gmra.mxu0 %v2116
    %v2184 = vpop.f32.mrf.mxu0
    %v2185 = vadd.f32 0.0, %v2184
    %v2186 = vpop.f32.mrf.mxu0
    %2187 = vdwg.mxu0
    %v2189 = vrot.slane %v2185, 3
    %v2190 = vrot.slane %v2185, 4
    %v2193 = vadd.f32 %v168, %v2189
    %v2194 = vadd.f32 %v178, %v2190
    %v2195 = vxor.u32 %v2193, 2147483648
    %v2196 = vxor.u32 %v2194, 2147483648
    %v2197 = vmul.f32 %v2195, 1.442695
    %v2198 = vpow.pop %v2197
    %v2199 = vmul.f32 %v2196, 1.442695
    %v2200 = vpow.pop %v2199
    %v2201 = vadd.f32 %v2198, 1.0
    %v2202 = vadd.f32 %v2200, 1.0
    %v2203 = vrcp.pop %v2201
    %v2204 = vmul.f32 1.0, %v2203
    %v2205 = vrcp.pop %v2202
    %v2206 = vmul.f32 1.0, %v2205
    %v2207 = vtanh.pop %v2193
    %v2208 = vtanh.pop %v2194
    %v2211 = vrot.slane %v2087, 7
    %v2212 = vrot.slane %v2088, 7
    %v2215 = vmul.f32 %v2204, %v2211
    %v2216 = vmul.f32 %v2206, %v2212
    %2219 = vrot.lane.b32.xlu0 %v2207, 64
    %v2220 = vpop.permute.xlu0 %2219
    %2221 = vrot.lane.b32.xlu0 %v2208, 64
    %v2222 = vpop.permute.xlu0 %2221
    %v2225 = vmul.f32 %v2204, %v2220
    %v2226 = vmul.f32 %v2206, %v2222
    %2229 = vrot.lane.b32.xlu0 %v2225, 32
    %v2230 = vpop.permute.xlu0 %2229
    %2231 = vrot.lane.b32.xlu0 %v2226, 32
    %v2232 = vpop.permute.xlu0 %2231
    %v2235 = vadd.f32 %v2215, %v2230
    %v2236 = vadd.f32 %v2216, %v2232
    %v2237 = vtanh.pop %v2235
    %v2238 = vtanh.pop %v2236
    %2241 = vrot.lane.b32.xlu0 %v2237, 64
    %v2242 = vpop.permute.xlu0 %2241
    %2243 = vrot.lane.b32.xlu0 %v2238, 64
    %v2244 = vpop.permute.xlu0 %2243
    %v2247 = vmul.f32 %v2204, %v2242
    %v2248 = vmul.f32 %v2206, %v2244
    %2251 = vrot.lane.b32.xlu0 %v2247, 32
    %v2252 = vpop.permute.xlu0 %2251
    %2253 = vrot.lane.b32.xlu0 %v2248, 32
    %v2254 = vpop.permute.xlu0 %2253
    %2257 = vst.msk [vmem:[#allocation10 + $0x8] sm:$0x20] %vm1074, %v2252
    %2258 = vst.msk [vmem:[#allocation10 + $0x18] sm:$0x20] %vm1074, %v2254
    %v2259 = vrot.slane %v2247, 5
    %v2260 = vrot.slane %v2248, 4
    %v2261 = vsel %vm335, %v2260, %v2259
    %2262 = vrot.lane.b32.xlu0 %v2261, 32
    %v2263 = vpop.permute.xlu0 %2262
    %v2264 = vsel %vm187, %v2263, 0
    %2266 = vmatprep.subr.mxu0 0.0
    %2267 = vmatpush1.msra.mxu0 0.0
    %2268 = vmatprep.subr.mxu0 0.0
    %2269 = vmatpush1.msra.mxu0 0.0
    %2270 = vmatprep.subr.mxu0 0.0
    %2271 = vmatpush1.msra.mxu0 0.0
    %2272 = vmatprep.subr.mxu0 0.0
    %2273 = vmatpush1.msra.mxu0 0.0
    %2274 = vmatprep.subr.mxu0 0.0
    %2275 = vmatpush1.msra.mxu0 0.0
    %2276 = vmatprep.subr.mxu0 0.0
    %2277 = vmatpush1.msra.mxu0 0.0
    %2278 = vmatprep.subr.mxu0 0.0
    %2279 = vmatpush1.msra.mxu0 0.0
    %2280 = vmatprep.subr.mxu0 0.0
    %2281 = vmatpush1.msra.mxu0 0.0
    %2282 = vmatprep.subr.mxu0 0.0
    %2283 = vmatpush1.msra.mxu0 0.0
    %2284 = vmatprep.subr.mxu0 0.0
    %2285 = vmatpush1.msra.mxu0 0.0
    %2286 = vmatprep.subr.mxu0 0.0
    %2287 = vmatpush1.msra.mxu0 0.0
    %2288 = vmatprep.subr.mxu0 0.0
    %2289 = vmatpush1.msra.mxu0 0.0
    %2290 = vmatprep.subr.mxu0 0.0
    %2291 = vmatpush1.msra.mxu0 %v184
    %2292 = vmatprep.subr.mxu0 0.0
    %2293 = vmatpush1.msra.mxu0 %v183
    %2294 = vmatprep.subr.mxu0 0.0
    %2295 = vmatpush1.msra.mxu0 %v182
    %2296 = vmatprep.subr.mxu0 0.0
    %2297 = vmatpush1.msra.mxu0 %v181
    %2298 = vmatprep.subr.mxu0 0.0
    %2299 = vmatpush2.msra.mxu0 0.0
    %2300 = vmatprep.subr.mxu0 0.0
    %2301 = vmatpush2.msra.mxu0 0.0
    %2302 = vmatprep.subr.mxu0 0.0
    %2303 = vmatpush2.msra.mxu0 0.0
    %2304 = vmatprep.subr.mxu0 0.0
    %2305 = vmatpush2.msra.mxu0 0.0
    %2306 = vmatprep.subr.mxu0 0.0
    %2307 = vmatpush2.msra.mxu0 0.0
    %2308 = vmatprep.subr.mxu0 0.0
    %2309 = vmatpush2.msra.mxu0 0.0
    %2310 = vmatprep.subr.mxu0 0.0
    %2311 = vmatpush2.msra.mxu0 0.0
    %2312 = vmatprep.subr.mxu0 0.0
    %2313 = vmatpush2.msra.mxu0 0.0
    %2314 = vmatprep.subr.mxu0 0.0
    %2315 = vmatpush2.msra.mxu0 0.0
    %2316 = vmatprep.subr.mxu0 0.0
    %2317 = vmatpush2.msra.mxu0 0.0
    %2318 = vmatprep.subr.mxu0 0.0
    %2319 = vmatpush2.msra.mxu0 0.0
    %2320 = vmatprep.subr.mxu0 0.0
    %2321 = vmatpush2.msra.mxu0 0.0
    %2322 = vmatprep.subr.mxu0 0.0
    %2323 = vmatpush2.msra.mxu0 0.0
    %2324 = vmatprep.subr.mxu0 0.0
    %2325 = vmatpush2.msra.mxu0 0.0
    %2326 = vmatprep.subr.mxu0 0.0
    %2327 = vmatpush2.msra.mxu0 0.0
    %2328 = vmatprep.subr.mxu0 0.0
    %2329 = vmatpush2.msra.mxu0 0.0
    %2330 = vmatprep.mubr.f32.mxu0 0.0
    %2331 = vmatmul.mubr.f32.gmra.mxu0 %v2264
    %v2332 = vpop.f32.mrf.mxu0
    %v2333 = vadd.f32 0.0, %v2332
    %v2334 = vpop.f32.mrf.mxu0
    %2335 = vdwg.mxu0
    %v2337 = vrot.slane %v2333, 2
    %v2338 = vrot.slane %v2333, 3
    %v2341 = vadd.f32 %v168, %v2337
    %v2342 = vadd.f32 %v178, %v2338
    %v2343 = vxor.u32 %v2341, 2147483648
    %v2344 = vxor.u32 %v2342, 2147483648
    %v2345 = vmul.f32 %v2343, 1.442695
    %v2346 = vpow.pop %v2345
    %v2347 = vmul.f32 %v2344, 1.442695
    %v2348 = vpow.pop %v2347
    %v2349 = vadd.f32 %v2346, 1.0
    %v2350 = vadd.f32 %v2348, 1.0
    %v2351 = vrcp.pop %v2349
    %v2352 = vmul.f32 1.0, %v2351
    %v2353 = vrcp.pop %v2350
    %v2354 = vmul.f32 1.0, %v2353
    %v2355 = vtanh.pop %v2341
    %v2356 = vtanh.pop %v2342
    %v2359 = vrot.slane %v2235, 7
    %v2360 = vrot.slane %v2236, 7
    %v2363 = vmul.f32 %v2352, %v2359
    %v2364 = vmul.f32 %v2354, %v2360
    %2367 = vrot.lane.b32.xlu0 %v2355, 64
    %v2368 = vpop.permute.xlu0 %2367
    %2369 = vrot.lane.b32.xlu0 %v2356, 64
    %v2370 = vpop.permute.xlu0 %2369
    %v2373 = vmul.f32 %v2352, %v2368
    %v2374 = vmul.f32 %v2354, %v2370
    %2377 = vrot.lane.b32.xlu0 %v2373, 32
    %v2378 = vpop.permute.xlu0 %2377
    %2379 = vrot.lane.b32.xlu0 %v2374, 32
    %v2380 = vpop.permute.xlu0 %2379
    %v2383 = vadd.f32 %v2363, %v2378
    %v2384 = vadd.f32 %v2364, %v2380
    %v2385 = vtanh.pop %v2383
    %v2386 = vtanh.pop %v2384
    %2389 = vrot.lane.b32.xlu0 %v2385, 64
    %v2390 = vpop.permute.xlu0 %2389
    %2391 = vrot.lane.b32.xlu0 %v2386, 64
    %v2392 = vpop.permute.xlu0 %2391
    %v2395 = vmul.f32 %v2352, %v2390
    %v2396 = vmul.f32 %v2354, %v2392
    %2399 = vrot.lane.b32.xlu0 %v2395, 32
    %v2400 = vpop.permute.xlu0 %2399
    %2401 = vrot.lane.b32.xlu0 %v2396, 32
    %v2402 = vpop.permute.xlu0 %2401
    %2405 = vst.msk [vmem:[#allocation10 + $0x8] sm:$0x40] %vm1223, %v2400
    %2406 = vst.msk [vmem:[#allocation10 + $0x18] sm:$0x40] %vm1223, %v2402
    %v2407 = vrot.slane %v2395, 6
    %v2408 = vrot.slane %v2396, 5
    %v2409 = vsel %vm335, %v2408, %v2407
    %2410 = vrot.lane.b32.xlu0 %v2409, 32
    %v2411 = vpop.permute.xlu0 %2410
    %v2412 = vsel %vm187, %v2411, 0
    %2414 = vmatprep.subr.mxu0 0.0
    %2415 = vmatpush1.msra.mxu0 0.0
    %2416 = vmatprep.subr.mxu0 0.0
    %2417 = vmatpush1.msra.mxu0 0.0
    %2418 = vmatprep.subr.mxu0 0.0
    %2419 = vmatpush1.msra.mxu0 0.0
    %2420 = vmatprep.subr.mxu0 0.0
    %2421 = vmatpush1.msra.mxu0 0.0
    %2422 = vmatprep.subr.mxu0 0.0
    %2423 = vmatpush1.msra.mxu0 0.0
    %2424 = vmatprep.subr.mxu0 0.0
    %2425 = vmatpush1.msra.mxu0 0.0
    %2426 = vmatprep.subr.mxu0 0.0
    %2427 = vmatpush1.msra.mxu0 0.0
    %2428 = vmatprep.subr.mxu0 0.0
    %2429 = vmatpush1.msra.mxu0 0.0
    %2430 = vmatprep.subr.mxu0 0.0
    %2431 = vmatpush1.msra.mxu0 0.0
    %2432 = vmatprep.subr.mxu0 0.0
    %2433 = vmatpush1.msra.mxu0 0.0
    %2434 = vmatprep.subr.mxu0 0.0
    %2435 = vmatpush1.msra.mxu0 0.0
    %2436 = vmatprep.subr.mxu0 0.0
    %2437 = vmatpush1.msra.mxu0 0.0
    %2438 = vmatprep.subr.mxu0 0.0
    %2439 = vmatpush1.msra.mxu0 %v184
    %2440 = vmatprep.subr.mxu0 0.0
    %2441 = vmatpush1.msra.mxu0 %v183
    %2442 = vmatprep.subr.mxu0 0.0
    %2443 = vmatpush1.msra.mxu0 %v182
    %2444 = vmatprep.subr.mxu0 0.0
    %2445 = vmatpush1.msra.mxu0 %v181
    %2446 = vmatprep.subr.mxu0 0.0
    %2447 = vmatpush2.msra.mxu0 0.0
    %2448 = vmatprep.subr.mxu0 0.0
    %2449 = vmatpush2.msra.mxu0 0.0
    %2450 = vmatprep.subr.mxu0 0.0
    %2451 = vmatpush2.msra.mxu0 0.0
    %2452 = vmatprep.subr.mxu0 0.0
    %2453 = vmatpush2.msra.mxu0 0.0
    %2454 = vmatprep.subr.mxu0 0.0
    %2455 = vmatpush2.msra.mxu0 0.0
    %2456 = vmatprep.subr.mxu0 0.0
    %2457 = vmatpush2.msra.mxu0 0.0
    %2458 = vmatprep.subr.mxu0 0.0
    %2459 = vmatpush2.msra.mxu0 0.0
    %2460 = vmatprep.subr.mxu0 0.0
    %2461 = vmatpush2.msra.mxu0 0.0
    %2462 = vmatprep.subr.mxu0 0.0
    %2463 = vmatpush2.msra.mxu0 0.0
    %2464 = vmatprep.subr.mxu0 0.0
    %2465 = vmatpush2.msra.mxu0 0.0
    %2466 = vmatprep.subr.mxu0 0.0
    %2467 = vmatpush2.msra.mxu0 0.0
    %2468 = vmatprep.subr.mxu0 0.0
    %2469 = vmatpush2.msra.mxu0 0.0
    %2470 = vmatprep.subr.mxu0 0.0
    %2471 = vmatpush2.msra.mxu0 0.0
    %2472 = vmatprep.subr.mxu0 0.0
    %2473 = vmatpush2.msra.mxu0 0.0
    %2474 = vmatprep.subr.mxu0 0.0
    %2475 = vmatpush2.msra.mxu0 0.0
    %2476 = vmatprep.subr.mxu0 0.0
    %2477 = vmatpush2.msra.mxu0 0.0
    %2478 = vmatprep.mubr.f32.mxu0 0.0
    %2479 = vmatmul.mubr.f32.gmra.mxu0 %v2412
    %v2480 = vpop.f32.mrf.mxu0
    %v2481 = vadd.f32 0.0, %v2480
    %v2482 = vpop.f32.mrf.mxu0
    %2483 = vdwg.mxu0
    %v2485 = vrot.slane %v2481, 1
    %v2486 = vrot.slane %v2481, 2
    %v2489 = vadd.f32 %v168, %v2485
    %v2490 = vadd.f32 %v178, %v2486
    %v2491 = vxor.u32 %v2489, 2147483648
    %v2492 = vxor.u32 %v2490, 2147483648
    %v2493 = vmul.f32 %v2491, 1.442695
    %v2494 = vpow.pop %v2493
    %v2495 = vmul.f32 %v2492, 1.442695
    %v2496 = vpow.pop %v2495
    %v2497 = vadd.f32 %v2494, 1.0
    %v2498 = vadd.f32 %v2496, 1.0
    %v2499 = vrcp.pop %v2497
    %v2500 = vmul.f32 1.0, %v2499
    %v2501 = vrcp.pop %v2498
    %v2502 = vmul.f32 1.0, %v2501
    %v2503 = vtanh.pop %v2489
    %v2504 = vtanh.pop %v2490
    %v2507 = vrot.slane %v2383, 7
    %v2508 = vrot.slane %v2384, 7
    %v2511 = vmul.f32 %v2500, %v2507
    %v2512 = vmul.f32 %v2502, %v2508
    %2515 = vrot.lane.b32.xlu0 %v2503, 64
    %v2516 = vpop.permute.xlu0 %2515
    %2517 = vrot.lane.b32.xlu0 %v2504, 64
    %v2518 = vpop.permute.xlu0 %2517
    %v2521 = vmul.f32 %v2500, %v2516
    %v2522 = vmul.f32 %v2502, %v2518
    %2525 = vrot.lane.b32.xlu0 %v2521, 32
    %v2526 = vpop.permute.xlu0 %2525
    %2527 = vrot.lane.b32.xlu0 %v2522, 32
    %v2528 = vpop.permute.xlu0 %2527
    %v2531 = vadd.f32 %v2511, %v2526
    %v2532 = vadd.f32 %v2512, %v2528
    %v2533 = vtanh.pop %v2531
    %v2534 = vtanh.pop %v2532
    %2537 = vrot.lane.b32.xlu0 %v2533, 64
    %v2538 = vpop.permute.xlu0 %2537
    %2539 = vrot.lane.b32.xlu0 %v2534, 64
    %v2540 = vpop.permute.xlu0 %2539
    %v2543 = vmul.f32 %v2500, %v2538
    %v2544 = vmul.f32 %v2502, %v2540
    %2547 = vrot.lane.b32.xlu0 %v2543, 32
    %v2548 = vpop.permute.xlu0 %2547
    %2549 = vrot.lane.b32.xlu0 %v2544, 32
    %v2550 = vpop.permute.xlu0 %2549
    %2553 = vst.msk [vmem:[#allocation10 + $0x8] sm:$0x80] %vm1372, %v2548
    %2554 = vst.msk [vmem:[#allocation10 + $0x18] sm:$0x80] %vm1372, %v2550
    %v2555 = vrot.slane %v2544, 7
    %2556 = vrot.lane.b32.xlu0 %v2555, 32
    %v2557 = vpop.permute.xlu0 %2556
    %2559 = vst.msk [vmem:[#allocation2 - $0x7] sm:$0x80] %vm1372, %v2548
    %2560 = vst.msk [vmem:[#allocation2 + $0x1] sm:$0x1] %vm331, %v2557
    %v2563 = vrot.slane %v2532, 7
    %2564 = vrot.lane.b32.xlu0 %v2531, 96
    %v2565 = vpop.permute.xlu0 %2564
    %2566 = vrot.lane.b32.xlu0 %v2563, 96
    %v2567 = vpop.permute.xlu0 %2566
    %2570 = vst.msk [vmem:[#allocation3 - $0x7] sm:$0x80] %vm1372, %v2565
    %2571 = vst.msk [vmem:[#allocation3 + $0x1] sm:$0x1] %vm331, %v2567
    // Predicated region
    $region34: #{tpu_custom_call.1} parent=1 // pred_check
      %p2572 = pneg %p63
    $region35: #{tpu_custom_call.1} parent=1 // pred_check_branch
      %2574 = sbr.rel (%p2572) target = $region37
    $region36: #{tpu_custom_call.1} parent=1 // pred_region
      %2575 = vst.msk [vmem:[#allocation11 - $0x7] sm:$0x80] %vm1372, %v2548
      %2576 = vst.msk [vmem:[#allocation11 + $0x1] sm:$0x1] %vm331, %v2557
      %2577 = vst.msk [vmem:[#allocation13 - $0x7] sm:$0x80] %vm1372, %v2565
      %2578 = vst.msk [vmem:[#allocation13 + $0x1] sm:$0x1] %vm331, %v2567
    $region37: #{tpu_custom_call.1} parent=1 // pred_fallthru
      _
    // Predicated region
    $region38: #{tpu_custom_call.1} parent=1 // pred_check
      _
    $region39: #{tpu_custom_call.1} parent=1 // pred_check_branch
      %2580 = sbr.rel (0) target = $region41
    $region40: #{tpu_custom_call.1} parent=1 // pred_region
      %s2582 = ssub.s32 512, 512
      %2583 = vsyncadd [#allocation6], %s2582
      %s2584 = sshll.u32 [#allocation10], 4
      %s2585 = int_to_ptr.vmem [resolvable:$true] %s2584
      %2590 = dma.vmem_to_hbm [thread:$0]  %s2585, 512, %s4, [#allocation6], 128, 128, 8
    $region41: #{tpu_custom_call.1} parent=1 // pred_fallthru
      _
    // Predicated region
    $region42: #{tpu_custom_call.1} parent=1 // pred_check
      _
    $region43: #{tpu_custom_call.1} parent=1 // pred_check_branch
      %2592 = sbr.rel (0) target = $region45
    $region44: #{tpu_custom_call.1} parent=1 // pred_region
      %s2594 = ssub.s32 32, 32
      %2595 = vsyncadd [#allocation12], %s2594
      %s2597 = sshll.u32 [#allocation11], 4
      %s2598 = int_to_ptr.vmem [resolvable:$true] %s2597
      %2600 = dma.vmem_to_hbm [thread:$0]  %s2598, 32, %s5, [#allocation12]
    $region45: #{tpu_custom_call.1} parent=1 // pred_fallthru
      _
    // Predicated region
    $region46: #{tpu_custom_call.1} parent=1 // pred_check
      _
    $region47: #{tpu_custom_call.1} parent=1 // pred_check_branch
      %2602 = sbr.rel (0) target = $region49
    $region48: #{tpu_custom_call.1} parent=1 // pred_region
      %s2604 = ssub.s32 32, 32
      %2605 = vsyncadd [#allocation12], %s2604
      %s2607 = sshll.u32 [#allocation13], 4
      %s2608 = int_to_ptr.vmem [resolvable:$true] %s2607
      %2610 = dma.vmem_to_hbm [thread:$0]  %s2608, 32, %s6, [#allocation12]
    $region49: #{tpu_custom_call.1} parent=1 // pred_fallthru
      _
    // Predicated region
    $region50: #{tpu_custom_call.1} parent=1 // pred_check
      _
    $region51: #{tpu_custom_call.1} parent=1 // pred_check_branch
      %2612 = sbr.rel (0) target = $region53
    $region52: #{tpu_custom_call.1} parent=1 // pred_region
      %2613 = dma.done [#allocation6], 512
    $region53: #{tpu_custom_call.1} parent=1 // pred_fallthru
      _
    // Predicated region
    $region54: #{tpu_custom_call.1} parent=1 // pred_check
      _
    $region55: #{tpu_custom_call.1} parent=1 // pred_check_branch
      %2615 = sbr.rel (0) target = $region57
    $region56: #{tpu_custom_call.1} parent=1 // pred_region
      %2616 = dma.done [#allocation12], 32
    $region57: #{tpu_custom_call.1} parent=1 // pred_fallthru
      _
    // Predicated region
    $region58: #{tpu_custom_call.1} parent=1 // pred_check
      _
    $region59: #{tpu_custom_call.1} parent=1 // pred_check_branch
      %2618 = sbr.rel (0) target = $region61
    $region60: #{tpu_custom_call.1} parent=1 // pred_region
      %2619 = dma.done [#allocation12], 32
    $region61: #{tpu_custom_call.1} parent=1 // pred_fallthru
      _
    %2620 = vsyncpa [#allocation5], 1
    %2621 = vsyncpa [#allocation8], 1
    %2622 = vsyncpa [#allocation6], 1
    %2623 = vsyncpa [#allocation12], 1

</llo_original>
